<compile_context>
chip_gen: v6e
topology: v6e:2x2x1
jax: 0.10.0
libtpu: 0.0.40
codegen_flags: <defaults>
</compile_context>

<pallas_src>
import functools

import jax
import jax.numpy as jnp
from jax.experimental import pallas as pl
from jax.experimental.pallas import tpu as pltpu

BN_EPS = 1e-5                      # torch.nn.BatchNorm2d default
_PAD_W = 8                         # left halo width (sublane aligned interior store)
_VMEM_LIMIT = 32 * 1024 * 1024     # safe on v5e/v6e (128 MiB) and v7x (64 MiB)


# --------------------------------------------------------------------------- #
# Kernel 1: ReLU -> 1x1 conv (matmul) -> BatchNorm(affine=False), M-tiled.
# Grid = (ops, phase, m_tiles).  phase 0 accumulates per-channel sum / sumsq,
# phase 1 finalizes (mean, inv_std) once and normalizes + stores every tile.
# --------------------------------------------------------------------------- #
def _pre_relu_conv_bn_kernel(x_ref, w_ref, o_ref, ssum_ref, ssq_ref, *, m_total):
    phase = pl.program_id(1)
    i = pl.program_id(2)

    @pl.when((phase == 0) & (i == 0))
    def _init():
        ssum_ref[...] = jnp.zeros_like(ssum_ref)
        ssq_ref[...] = jnp.zeros_like(ssq_ref)

    x = jnp.maximum(x_ref[...].astype(jnp.float32), 0.0)
    z = jnp.dot(x, w_ref[...].astype(jnp.float32),
                preferred_element_type=jnp.float32)

    @pl.when(phase == 0)
    def _accumulate():
        ssum_ref[...] += jnp.sum(z, axis=0, keepdims=True)
        ssq_ref[...] += jnp.sum(z * z, axis=0, keepdims=True)

    @pl.when((phase == 1) & (i == 0))
    def _finalize_stats():
        inv_m = 1.0 / m_total
        mean = ssum_ref[...] * inv_m
        var = jnp.maximum(ssq_ref[...] * inv_m - mean * mean, 0.0)
        ssum_ref[...] = mean                              # repurpose: mean
        ssq_ref[...] = jax.lax.rsqrt(var + BN_EPS)        # repurpose: 1 / std

    @pl.when(phase == 1)
    def _normalize_store():
        o_ref[...] = ((z - ssum_ref[...]) * ssq_ref[...]).astype(o_ref.dtype)
    # Phase 0 leaves o_ref unwritten; that (don't-care) block is fully
    # overwritten when the same block is revisited in phase 1.


def _pick_m_tile(m):
    for t in (2048, 1024, 512, 256, 128, 64, 32, 16, 8):
        if m % t == 0:
            return t
    return m


def relu_conv1x1_bn(x_stack, w_stack):
    """x_stack: (B, M, Cin), w_stack: (B, Cin, Cout) -> (B, M, Cout), f32."""
    B, M, Cin = x_stack.shape
    Cout = w_stack.shape[-1]
    TM = _pick_m_tile(M)
    T = M // TM
    return pl.pallas_call(
        functools.partial(_pre_relu_conv_bn_kernel, m_total=float(M)),
        out_shape=jax.ShapeDtypeStruct((B, M, Cout), jnp.float32),
        grid=(B, 2, T),
        in_specs=[
            pl.BlockSpec((None, TM, Cin), lambda b, p, i: (b, i, 0)),
            pl.BlockSpec((None, Cin, Cout), lambda b, p, i: (b, 0, 0)),
        ],
        out_specs=pl.BlockSpec((None, TM, Cout), lambda b, p, i: (b, i, 0)),
        scratch_shapes=[pltpu.VMEM((1, Cout), jnp.float32),
                        pltpu.VMEM((1, Cout), jnp.float32)],
        compiler_params=pltpu.CompilerParams(
            dimension_semantics=("parallel", "arbitrary", "arbitrary"),
            vmem_limit_bytes=_VMEM_LIMIT),
    )(x_stack, w_stack)


# --------------------------------------------------------------------------- #
# Kernel 2: fully fused SepConv-3x3 chain, one grid step per (independent) op.
#   ReLU -> dw3x3 -> pw1x1 -> BN -> ReLU -> dw3x3 -> pw1x1 -> BN  (affine=False)
# All intermediates stay in VMEM; only the input activation and the final result
# touch HBM.  The zero halo for both depthwise stages lives in one VMEM scratch:
# the interior store is (8,128)-aligned (W offset = _PAD_W = 8) and the nine taps
# are static Ref-window loads (pure address offsets).
# --------------------------------------------------------------------------- #
def _sep_conv3x3_kernel(x_ref, dw1_ref, pw1_ref, dw2_ref, pw2_ref, o_ref, xp_ref):
    N, H, W, C = x_ref.shape

    # Zero the halo once; both depthwise stages only rewrite the interior.
    xp_ref[...] = jnp.zeros_like(xp_ref)

    def relu_dw3x3(h, dw):
        # ReLU then depthwise 3x3 (stride 1, padding 1).  ReLU(0) == 0, so a
        # zero halo around the post-ReLU interior reproduces torch's zero pad.
        xp_ref[:, 1:H + 1, _PAD_W:_PAD_W + W, :] = jnp.maximum(h, 0.0)
        acc = jnp.zeros((N, H, W, C), jnp.float32)
        for di in range(3):
            for dj in range(3):
                j0 = _PAD_W - 1 + dj
                tap = xp_ref[:, di:di + H, j0:j0 + W, :]
                acc = acc + tap * dw[di, dj]              # (C,) broadcast on VPU
        return acc

    def pw1x1_bn(h, pw):
        # 1x1 conv == channel matmul on the MXU; BatchNorm2d(affine=False) with
        # training-mode batch statistics, all fused (z never leaves VMEM).
        z = jnp.dot(h.reshape(N * H * W, C), pw,
                    preferred_element_type=jnp.float32)
        mean = jnp.mean(z, axis=0, keepdims=True)
        var = jnp.mean(jnp.square(z - mean), axis=0, keepdims=True)
        zn = (z - mean) * jax.lax.rsqrt(var + BN_EPS)
        return zn.reshape(N, H, W, C)

    h = x_ref[...].astype(jnp.float32)
    h = relu_dw3x3(h, dw1_ref[...].astype(jnp.float32))
    h = pw1x1_bn(h, pw1_ref[...].astype(jnp.float32))
    h = relu_dw3x3(h, dw2_ref[...].astype(jnp.float32))
    h = pw1x1_bn(h, pw2_ref[...].astype(jnp.float32))
    o_ref[...] = h.astype(o_ref.dtype)


def sep_conv3x3_wave(x_stack, dw1, pw1, dw2, pw2):
    """x_stack: (B, N, H, W, C) stacked independent ops -> same-shaped output."""
    B, N, H, W, C = x_stack.shape
    # TODO(synk): for large activations (e.g. batch-96 CIFAR on v7x's 64 MiB VMEM)
    # this per-op whole-activation block needs an additional spatial/batch tiling
    # with cross-tile BN statistics (two-phase, as in the preprocess kernel).
    return pl.pallas_call(
        _sep_conv3x3_kernel,
        out_shape=jax.ShapeDtypeStruct((B, N, H, W, C), jnp.float32),
        grid=(B,),
        in_specs=[
            pl.BlockSpec((None, N, H, W, C), lambda b: (b, 0, 0, 0, 0)),
            pl.BlockSpec((None, 3, 3, C), lambda b: (b, 0, 0, 0)),
            pl.BlockSpec((None, C, C), lambda b: (b, 0, 0)),
            pl.BlockSpec((None, 3, 3, C), lambda b: (b, 0, 0, 0)),
            pl.BlockSpec((None, C, C), lambda b: (b, 0, 0)),
        ],
        out_specs=pl.BlockSpec((None, N, H, W, C), lambda b: (b, 0, 0, 0, 0)),
        scratch_shapes=[pltpu.VMEM((N, H + 2, W + 2 * _PAD_W, C), jnp.float32)],
        compiler_params=pltpu.CompilerParams(
            dimension_semantics=("parallel",),      # independent ops -> megacore
            vmem_limit_bytes=_VMEM_LIMIT),
    )(x_stack, dw1, pw1, dw2, pw2)


# --------------------------------------------------------------------------- #
# Cell wrapper (normal cell: reduction=False, reduction_prev=False), training BN.
# --------------------------------------------------------------------------- #
class PallasCell:

    def __init__(self, genotype, concat, C_prev_prev, C_prev, C, key):
        op_names, idx_in, idx_out = zip(*genotype)
        assert len(op_names) == len(idx_in) == len(idx_out)
        self._op_names = op_names
        self._indices_input = idx_in
        self._indices_output = idx_out
        self._steps = len(op_names) // 2
        self._concat = sorted(set(idx_out))        # == list(set(...)) for small ints
        self.multiplier = len(self._concat)
        self.C = C

        keys = iter(jax.random.split(key, 2 + 4 * len(op_names)))

        def init(shape):
            return (0.1 * jax.random.normal(next(keys), shape)).astype(jnp.float32)

        # 1x1 preprocess conv weights, stored as [Cin, Cout]
        self.w_pre0 = init((C_prev_prev, C))
        self.w_pre1 = init((C_prev, C))

        self._params = []
        for name in op_names:
            if name == "skip_connect":
                self._params.append(None)                       # Identity, stride 1
            elif name == "sep_conv_3x3":
                self._params.append({"dw1": init((3, 3, C)), "pw1": init((C, C)),
                                     "dw2": init((3, 3, C)), "pw2": init((C, C))})
            else:
                raise NotImplementedError(name)

        self._edges_into = {}
        for j in range(len(op_names)):
            self._edges_into.setdefault(idx_out[j], []).append(j)   # genotype order
        self._waves = self._build_schedule()

    def _build_schedule(self):
        """Static wavefront schedule: batch all sep_conv edges whose input state
        is already available into one fused pallas_call (weights pre-stacked)."""
        n_edges = len(self._op_names)
        done_nodes = {0, 1}
        remaining = set(range(n_edges))
        computed = set()
        waves = []
        while remaining:
            ready = [j for j in sorted(remaining)
                     if self._indices_input[j] in done_nodes]
            if not ready:
                raise ValueError("genotype has unsatisfiable edge dependencies")
            remaining -= set(ready)
            computed |= set(ready)
            sep_js = [j for j in ready if self._op_names[j] == "sep_conv_3x3"]
            skip_js = [j for j in ready if self._op_names[j] == "skip_connect"]
            finalized = [node for node in sorted(self._edges_into)
                         if node not in done_nodes
                         and all(j in computed for j in self._edges_into[node])]
            done_nodes |= set(finalized)
            stacked = None
            if sep_js:
                stacked = tuple(
                    jnp.stack([self._params[j][k] for j in sep_js])
                    for k in ("dw1", "pw1", "dw2", "pw2"))
            waves.append({"sep": sep_js, "skip": skip_js,
                          "finalize": finalized, "weights": stacked})
        return waves

    def __call__(self, s0_nchw, s1_nchw, drop_prob=0.0):
        # TODO(synk): drop_path (per-sample stochastic scaling) not implemented;
        # forward matches the PyTorch module exactly for drop_prob == 0.0.
        s0n = jnp.transpose(s0_nchw, (0, 2, 3, 1))       # NCHW -> NHWC
        s1n = jnp.transpose(s1_nchw, (0, 2, 3, 1))
        N, H, W, _ = s0n.shape
        M = N * H * W

        if s0n.shape[-1] == s1n.shape[-1]:
            # batch both preprocess ops in one pallas_call (parallel op axis)
            y = relu_conv1x1_bn(
                jnp.stack([s0n.reshape(M, -1), s1n.reshape(M, -1)]),
                jnp.stack([self.w_pre0, self.w_pre1]))
            s0 = y[0].reshape(N, H, W, self.C)
            s1 = y[1].reshape(N, H, W, self.C)
        else:
            s0 = relu_conv1x1_bn(s0n.reshape(M, -1)[None],
                                 self.w_pre0[None])[0].reshape(N, H, W, self.C)
            s1 = relu_conv1x1_bn(s1n.reshape(M, -1)[None],
                                 self.w_pre1[None])[0].reshape(N, H, W, self.C)

        states = {0: s0, 1: s1}
        edge_out = {}
        for wave in self._waves:
            for j in wave["skip"]:
                edge_out[j] = states[self._indices_input[j]]        # Identity
            if wave["sep"]:
                x_stack = jnp.stack(
                    [states[self._indices_input[j]] for j in wave["sep"]], axis=0)
                y_stack = sep_conv3x3_wave(x_stack, *wave["weights"])
                for k, j in enumerate(wave["sep"]):
                    edge_out[j] = y_stack[k]
            for node in wave["finalize"]:
                ej = self._edges_into[node]        # genotype order == PyTorch sum order
                s = edge_out[ej[0]]
                for j in ej[1:]:
                    s = s + edge_out[j]
                states[node] = s

        out = jnp.concatenate([states[i] for i in self._concat], axis=-1)
        return jnp.transpose(out, (0, 3, 1, 2))                      # NHWC -> NCHW


# --------------------------------------------------------------------------- #
# Pure-JAX/XLA reference (NCHW) used only for the self-check in __main__.
# --------------------------------------------------------------------------- #
def _reference_cell(cell, s0_nchw, s1_nchw):
    hp = jax.lax.Precision.HIGHEST

    def conv1x1_bn(x, w):                       # x: NCHW, w: (Cin, Cout)
        z = jnp.einsum("nchw,cd->ndhw", x, w, precision=hp)
        mean = jnp.mean(z, axis=(0, 2, 3), keepdims=True)
        var = jnp.mean((z - mean) ** 2, axis=(0, 2, 3), keepdims=True)
        return (z - mean) * jax.lax.rsqrt(var + BN_EPS)

    def dw3x3(x, dw):                           # dw: (3, 3, C)
        H, W = x.shape[2], x.shape[3]
        xp = jnp.pad(x, ((0, 0), (0, 0), (1, 1), (1, 1)))
        out = jnp.zeros_like(x)
        for di in range(3):
            for dj in range(3):
                out = out + xp[:, :, di:di + H, dj:dj + W] \
                    * dw[di, dj][None, :, None, None]
        return out

    def sep_conv(x, p):
        h = dw3x3(jnp.maximum(x, 0.0), p["dw1"])
        h = conv1x1_bn(h, p["pw1"])
        h = dw3x3(jnp.maximum(h, 0.0), p["dw2"])
        h = conv1x1_bn(h, p["pw2"])
        return h

    s0 = conv1x1_bn(jnp.maximum(s0_nchw, 0.0), cell.w_pre0)
    s1 = conv1x1_bn(jnp.maximum(s1_nchw, 0.0), cell.w_pre1)
    states = [s0, s1]
    for i in range(cell._steps):
        s = 0.0
        for j in range(len(cell._indices_output)):
            if cell._indices_output[j] == i + 2:
                h = states[cell._indices_input[j]]
                if cell._op_names[j] == "sep_conv_3x3":
                    h = sep_conv(h, cell._params[j])
                s = s + h
        states.append(s)
    return jnp.concatenate([states[i] for i in cell._concat], axis=1)


# ---------------------------------- main ----------------------------------- #
if __name__ == "__main__":
    GENOTYPE = [
        ("sep_conv_3x3", 0, 2), ("skip_connect", 1, 2),
        ("sep_conv_3x3", 1, 3), ("skip_connect", 0, 3),
        ("sep_conv_3x3", 2, 4), ("skip_connect", 3, 4),
        ("sep_conv_3x3", 3, 5), ("skip_connect", 2, 5),
    ]
    N, C_prev_prev, C_prev, C, H, W = 2, 8, 8, 8, 8, 8

    root = jax.random.PRNGKey(0)
    k_cell, k0, k1 = jax.random.split(root, 3)

    cell = PallasCell(GENOTYPE, [2, 3, 4, 5], C_prev_prev, C_prev, C, k_cell)
    s0 = jax.random.normal(k0, (N, C_prev_prev, H, W), dtype=jnp.float32)
    s1 = jax.random.normal(k1, (N, C_prev, H, W), dtype=jnp.float32)

    fwd = jax.jit(lambda a, b: cell(a, b, drop_prob=0.0))
    out = jax.block_until_ready(fwd(s0, s1))

    assert out.shape == (N, cell.multiplier * C, H, W), out.shape
    assert bool(jnp.all(jnp.isfinite(out)))

    ref = _reference_cell(cell, s0, s1)
    max_err = float(jnp.max(jnp.abs(out - ref)))
    assert max_err < 1e-2, f"mismatch vs pure-JAX reference: {max_err}"

    print("KERNEL_OK")
</pallas_src>

<mosaic_0001>
module attributes {stable_mosaic.version = 11 : i64} {
  func.func @_pre_relu_conv_bn_kernel(%arg0: i32, %arg1: i32, %arg2: i32, %arg3: memref<1x128x8xf32, #tpu.memory_space<vmem>>, %arg4: memref<1x8x8xf32, #tpu.memory_space<vmem>>, %arg5: memref<1x128x8xf32, #tpu.memory_space<vmem>>, %arg6: memref<1x8xf32, #tpu.memory_space<vmem>>, %arg7: memref<1x8xf32, #tpu.memory_space<vmem>>) attributes {dimension_semantics = [#tpu.dimension_semantics<parallel>, #tpu.dimension_semantics<arbitrary>, #tpu.dimension_semantics<arbitrary>], iteration_bounds = array<i64: 2, 2, 1>, scalar_prefetch = 0 : i64, scratch_operands = 2 : i64, tpu.core_type = #tpu.core_type<tc>, window_params = [{transform_indices = @transform_0, window_bounds = array<i64: 1, 128, 8>}, {transform_indices = @transform_1, window_bounds = array<i64: 1, 8, 8>}, {transform_indices = @transform_2, window_bounds = array<i64: 1, 128, 8>}]} {
    %c0_i32 = arith.constant 0 : i32
    %0 = arith.cmpi eq, %arg1, %c0_i32 : i32
    %c0_i32_0 = arith.constant 0 : i32
    %1 = arith.cmpi eq, %arg2, %c0_i32_0 : i32
    %2 = arith.andi %0, %1 : i1
    %3 = arith.extui %2 : i1 to i32
    %c0_i32_1 = arith.constant 0 : i32
    %4 = arith.cmpi ne, %3, %c0_i32_1 : i32
    scf.if %4 {
      %cst_14 = arith.constant 0.000000e+00 : f32
      %23 = vector.broadcast %cst_14 : f32 to vector<1x8xf32>
      %c0_15 = arith.constant 0 : index
      %c0_16 = arith.constant 0 : index
      %24 = vector.load %arg6[%c0_15, %c0_16] : memref<1x8xf32, #tpu.memory_space<vmem>>, vector<1x8xf32>
      tpu.vector_store %arg6[%c0_15, %c0_16], %23 {strides = array<i32>} : memref<1x8xf32, #tpu.memory_space<vmem>>, vector<1x8xf32>,
      %cst_17 = arith.constant 0.000000e+00 : f32
      %25 = vector.broadcast %cst_17 : f32 to vector<1x8xf32>
      %c0_18 = arith.constant 0 : index
      %c0_19 = arith.constant 0 : index
      %26 = vector.load %arg7[%c0_18, %c0_19] : memref<1x8xf32, #tpu.memory_space<vmem>>, vector<1x8xf32>
      tpu.vector_store %arg7[%c0_18, %c0_19], %25 {strides = array<i32>} : memref<1x8xf32, #tpu.memory_space<vmem>>, vector<1x8xf32>,
    } else {
    }
    %c0 = arith.constant 0 : index
    %c0_2 = arith.constant 0 : index
    %c0_3 = arith.constant 0 : index
    %5 = vector.load %arg3[%c0, %c0_2, %c0_3] : memref<1x128x8xf32, #tpu.memory_space<vmem>>, vector<1x128x8xf32>
    %6 = vector.shape_cast %5 : vector<1x128x8xf32> to vector<128x8xf32>
    %cst = arith.constant 0.000000e+00 : f32
    %7 = vector.broadcast %cst : f32 to vector<128x8xf32>
    %8 = arith.maximumf %6, %7 : vector<128x8xf32>
    %c0_4 = arith.constant 0 : index
    %c0_5 = arith.constant 0 : index
    %c0_6 = arith.constant 0 : index
    %9 = vector.load %arg4[%c0_4, %c0_5, %c0_6] : memref<1x8x8xf32, #tpu.memory_space<vmem>>, vector<1x8x8xf32>
    %10 = vector.shape_cast %9 : vector<1x8x8xf32> to vector<8x8xf32>
    %cst_7 = arith.constant dense<0.000000e+00> : vector<128x8xf32>
    %11 = tpu.matmul %8, %10, %cst_7 {dimension_numbers = #tpu.dot_dimension_numbers<[1], [0], [0], [1], [0, 0, 1, 1], [], []>} : vector<128x8xf32>, vector<8x8xf32>, vector<128x8xf32> -> vector<128x8xf32>
    %c0_i32_8 = arith.constant 0 : i32
    %12 = arith.cmpi eq, %arg1, %c0_i32_8 : i32
    %13 = arith.extui %12 : i1 to i32
    %c0_i32_9 = arith.constant 0 : i32
    %14 = arith.cmpi ne, %13, %c0_i32_9 : i32
    scf.if %14 {
      %c0_14 = arith.constant 0 : index
      %c0_15 = arith.constant 0 : index
      %23 = vector.load %arg6[%c0_14, %c0_15] : memref<1x8xf32, #tpu.memory_space<vmem>>, vector<1x8xf32>
      %cst_16 = arith.constant dense<0.000000e+00> : vector<8xf32>
      %24 = vector.multi_reduction <add>, %11, %cst_16 [0] : vector<128x8xf32> to vector<8xf32>
      %25 = vector.shape_cast %24 : vector<8xf32> to vector<1x8xf32>
      %26 = arith.addf %23, %25 : vector<1x8xf32>
      %c0_17 = arith.constant 0 : index
      %c0_18 = arith.constant 0 : index
      %27 = vector.load %arg6[%c0_17, %c0_18] : memref<1x8xf32, #tpu.memory_space<vmem>>, vector<1x8xf32>
      tpu.vector_store %arg6[%c0_17, %c0_18], %26 {strides = array<i32>} : memref<1x8xf32, #tpu.memory_space<vmem>>, vector<1x8xf32>,
      %c0_19 = arith.constant 0 : index
      %c0_20 = arith.constant 0 : index
      %28 = vector.load %arg7[%c0_19, %c0_20] : memref<1x8xf32, #tpu.memory_space<vmem>>, vector<1x8xf32>
      %29 = arith.mulf %11, %11 : vector<128x8xf32>
      %cst_21 = arith.constant dense<0.000000e+00> : vector<8xf32>
      %30 = vector.multi_reduction <add>, %29, %cst_21 [0] : vector<128x8xf32> to vector<8xf32>
      %31 = vector.shape_cast %30 : vector<8xf32> to vector<1x8xf32>
      %32 = arith.addf %28, %31 : vector<1x8xf32>
      %c0_22 = arith.constant 0 : index
      %c0_23 = arith.constant 0 : index
      %33 = vector.load %arg7[%c0_22, %c0_23] : memref<1x8xf32, #tpu.memory_space<vmem>>, vector<1x8xf32>
      tpu.vector_store %arg7[%c0_22, %c0_23], %32 {strides = array<i32>} : memref<1x8xf32, #tpu.memory_space<vmem>>, vector<1x8xf32>,
    } else {
    }
    %c1_i32 = arith.constant 1 : i32
    %15 = arith.cmpi eq, %arg1, %c1_i32 : i32
    %c0_i32_10 = arith.constant 0 : i32
    %16 = arith.cmpi eq, %arg2, %c0_i32_10 : i32
    %17 = arith.andi %15, %16 : i1
    %18 = arith.extui %17 : i1 to i32
    %c0_i32_11 = arith.constant 0 : i32
    %19 = arith.cmpi ne, %18, %c0_i32_11 : i32
    scf.if %19 {
      %c0_14 = arith.constant 0 : index
      %c0_15 = arith.constant 0 : index
      %23 = vector.load %arg6[%c0_14, %c0_15] : memref<1x8xf32, #tpu.memory_space<vmem>>, vector<1x8xf32>
      %cst_16 = arith.constant 7.812500e-03 : f32
      %24 = vector.broadcast %cst_16 : f32 to vector<1x8xf32>
      %25 = arith.mulf %23, %24 : vector<1x8xf32>
      %c0_17 = arith.constant 0 : index
      %c0_18 = arith.constant 0 : index
      %26 = vector.load %arg7[%c0_17, %c0_18] : memref<1x8xf32, #tpu.memory_space<vmem>>, vector<1x8xf32>
      %cst_19 = arith.constant 7.812500e-03 : f32
      %27 = vector.broadcast %cst_19 : f32 to vector<1x8xf32>
      %28 = arith.mulf %26, %27 : vector<1x8xf32>
      %29 = arith.mulf %25, %25 : vector<1x8xf32>
      %30 = arith.subf %28, %29 : vector<1x8xf32>
      %cst_20 = arith.constant 0.000000e+00 : f32
      %31 = vector.broadcast %cst_20 : f32 to vector<1x8xf32>
      %32 = arith.maximumf %30, %31 : vector<1x8xf32>
      %c0_21 = arith.constant 0 : index
      %c0_22 = arith.constant 0 : index
      %33 = vector.load %arg6[%c0_21, %c0_22] : memref<1x8xf32, #tpu.memory_space<vmem>>, vector<1x8xf32>
      tpu.vector_store %arg6[%c0_21, %c0_22], %25 {strides = array<i32>} : memref<1x8xf32, #tpu.memory_space<vmem>>, vector<1x8xf32>,
      %cst_23 = arith.constant 9.99999974E-6 : f32
      %34 = vector.broadcast %cst_23 : f32 to vector<1x8xf32>
      %35 = arith.addf %32, %34 : vector<1x8xf32>
      %36 = math.rsqrt %35 : vector<1x8xf32>
      %c0_24 = arith.constant 0 : index
      %c0_25 = arith.constant 0 : index
      %37 = vector.load %arg7[%c0_24, %c0_25] : memref<1x8xf32, #tpu.memory_space<vmem>>, vector<1x8xf32>
      tpu.vector_store %arg7[%c0_24, %c0_25], %36 {strides = array<i32>} : memref<1x8xf32, #tpu.memory_space<vmem>>, vector<1x8xf32>,
    } else {
    }
    %c1_i32_12 = arith.constant 1 : i32
    %20 = arith.cmpi eq, %arg1, %c1_i32_12 : i32
    %21 = arith.extui %20 : i1 to i32
    %c0_i32_13 = arith.constant 0 : i32
    %22 = arith.cmpi ne, %21, %c0_i32_13 : i32
    scf.if %22 {
      %c0_14 = arith.constant 0 : index
      %c0_15 = arith.constant 0 : index
      %23 = vector.load %arg6[%c0_14, %c0_15] : memref<1x8xf32, #tpu.memory_space<vmem>>, vector<1x8xf32>
      %24 = vector.broadcast %23 : vector<1x8xf32> to vector<128x8xf32>
      %25 = arith.subf %11, %24 : vector<128x8xf32>
      %c0_16 = arith.constant 0 : index
      %c0_17 = arith.constant 0 : index
      %26 = vector.load %arg7[%c0_16, %c0_17] : memref<1x8xf32, #tpu.memory_space<vmem>>, vector<1x8xf32>
      %27 = vector.broadcast %26 : vector<1x8xf32> to vector<128x8xf32>
      %28 = arith.mulf %25, %27 : vector<128x8xf32>
      %c0_18 = arith.constant 0 : index
      %c0_19 = arith.constant 0 : index
      %c0_20 = arith.constant 0 : index
      %29 = vector.load %arg5[%c0_18, %c0_19, %c0_20] : memref<1x128x8xf32, #tpu.memory_space<vmem>>, vector<1x128x8xf32>
      %30 = vector.shape_cast %29 : vector<1x128x8xf32> to vector<128x8xf32>
      %31 = vector.shape_cast %28 : vector<128x8xf32> to vector<1x128x8xf32>
      tpu.vector_store %arg5[%c0_18, %c0_19, %c0_20], %31 {strides = array<i32>} : memref<1x128x8xf32, #tpu.memory_space<vmem>>, vector<1x128x8xf32>,
    } else {
    }
    return
  }
  func.func @transform_0(%arg0: i32, %arg1: i32, %arg2: i32) -> (i32, i32, i32) {
    %c0_i32 = arith.constant 0 : i32
    %c0_i32_0 = arith.constant 0 : i32
    return %arg0, %arg2, %c0_i32 : i32, i32, i32
  }
  func.func @transform_1(%arg0: i32, %arg1: i32, %arg2: i32) -> (i32, i32, i32) {
    %c0_i32 = arith.constant 0 : i32
    %c0_i32_0 = arith.constant 0 : i32
    %c0_i32_1 = arith.constant 0 : i32
    return %arg0, %c0_i32, %c0_i32_0 : i32, i32, i32
  }
  func.func @transform_2(%arg0: i32, %arg1: i32, %arg2: i32) -> (i32, i32, i32) {
    %c0_i32 = arith.constant 0 : i32
    %c0_i32_0 = arith.constant 0 : i32
    return %arg0, %arg2, %c0_i32 : i32, i32, i32
  }
}

module attributes {stable_mosaic.version = 11 : i64} {
  func.func @_sep_conv3x3_kernel(%arg0: i32, %arg1: memref<1x2x8x8x8xf32, #tpu.memory_space<vmem>>, %arg2: memref<1x3x3x8xf32, #tpu.memory_space<vmem>>, %arg3: memref<1x8x8xf32, #tpu.memory_space<vmem>>, %arg4: memref<1x3x3x8xf32, #tpu.memory_space<vmem>>, %arg5: memref<1x8x8xf32, #tpu.memory_space<vmem>>, %arg6: memref<1x2x8x8x8xf32, #tpu.memory_space<vmem>>, %arg7: memref<2x10x24x8xf32, #tpu.memory_space<vmem>>) attributes {dimension_semantics = [#tpu.dimension_semantics<parallel>], iteration_bounds = array<i64: 2>, scalar_prefetch = 0 : i64, scratch_operands = 1 : i64, tpu.core_type = #tpu.core_type<tc>, window_params = [{transform_indices = @transform_0, window_bounds = array<i64: 1, 2, 8, 8, 8>}, {transform_indices = @transform_1, window_bounds = array<i64: 1, 3, 3, 8>}, {transform_indices = @transform_2, window_bounds = array<i64: 1, 8, 8>}, {transform_indices = @transform_3, window_bounds = array<i64: 1, 3, 3, 8>}, {transform_indices = @transform_4, window_bounds = array<i64: 1, 8, 8>}, {transform_indices = @transform_5, window_bounds = array<i64: 1, 2, 8, 8, 8>}]} {
    %cst = arith.constant 0.000000e+00 : f32
    %0 = vector.broadcast %cst : f32 to vector<2x10x24x8xf32>
    %c0 = arith.constant 0 : index
    %c0_0 = arith.constant 0 : index
    %c0_1 = arith.constant 0 : index
    %c0_2 = arith.constant 0 : index
    %1 = vector.load %arg7[%c0, %c0_0, %c0_1, %c0_2] : memref<2x10x24x8xf32, #tpu.memory_space<vmem>>, vector<2x10x24x8xf32>
    tpu.vector_store %arg7[%c0, %c0_0, %c0_1, %c0_2], %0 {strides = array<i32>} : memref<2x10x24x8xf32, #tpu.memory_space<vmem>>, vector<2x10x24x8xf32>,
    %c0_3 = arith.constant 0 : index
    %c0_4 = arith.constant 0 : index
    %c0_5 = arith.constant 0 : index
    %c0_6 = arith.constant 0 : index
    %c0_7 = arith.constant 0 : index
    %2 = vector.load %arg1[%c0_3, %c0_4, %c0_5, %c0_6, %c0_7] : memref<1x2x8x8x8xf32, #tpu.memory_space<vmem>>, vector<1x2x8x8x8xf32>
    %3 = vector.shape_cast %2 : vector<1x2x8x8x8xf32> to vector<2x8x8x8xf32>
    %c0_8 = arith.constant 0 : index
    %c0_9 = arith.constant 0 : index
    %c0_10 = arith.constant 0 : index
    %c0_11 = arith.constant 0 : index
    %4 = vector.load %arg2[%c0_8, %c0_9, %c0_10, %c0_11] : memref<1x3x3x8xf32, #tpu.memory_space<vmem>>, vector<1x3x3x8xf32>
    %5 = vector.shape_cast %4 : vector<1x3x3x8xf32> to vector<3x3x8xf32>
    %cst_12 = arith.constant 0.000000e+00 : f32
    %6 = vector.broadcast %cst_12 : f32 to vector<2x8x8x8xf32>
    %7 = arith.maximumf %3, %6 : vector<2x8x8x8xf32>
    %c0_13 = arith.constant 0 : index
    %c1 = arith.constant 1 : index
    %c8 = arith.constant 8 : index
    %c0_14 = arith.constant 0 : index
    %8 = vector.load %arg7[%c0_13, %c1, %c8, %c0_14] : memref<2x10x24x8xf32, #tpu.memory_space<vmem>>, vector<2x8x8x8xf32>
    tpu.vector_store %arg7[%c0_13, %c1, %c8, %c0_14], %7 {strides = array<i32>} : memref<2x10x24x8xf32, #tpu.memory_space<vmem>>, vector<2x8x8x8xf32>,
    %cst_15 = arith.constant 0.000000e+00 : f32
    %9 = vector.broadcast %cst_15 : f32 to vector<2x8x8x8xf32>
    %c0_16 = arith.constant 0 : index
    %c0_17 = arith.constant 0 : index
    %c7 = arith.constant 7 : index
    %c0_18 = arith.constant 0 : index
    %10 = vector.load %arg7[%c0_16, %c0_17, %c7, %c0_18] : memref<2x10x24x8xf32, #tpu.memory_space<vmem>>, vector<2x8x8x8xf32>
    %11 = vector.extract_strided_slice %5 {offsets = [0, 0, 0], sizes = [1, 1, 8], strides = [1, 1, 1]} : vector<3x3x8xf32> to vector<1x1x8xf32>
    %12 = vector.shape_cast %11 : vector<1x1x8xf32> to vector<8xf32>
    %13 = vector.shape_cast %12 : vector<8xf32> to vector<1x1x1x8xf32>
    %14 = vector.broadcast %13 : vector<1x1x1x8xf32> to vector<2x8x8x8xf32>
    %15 = arith.mulf %10, %14 : vector<2x8x8x8xf32>
    %16 = arith.addf %9, %15 : vector<2x8x8x8xf32>
    %c0_19 = arith.constant 0 : index
    %c0_20 = arith.constant 0 : index
    %c8_21 = arith.constant 8 : index
    %c0_22 = arith.constant 0 : index
    %17 = vector.load %arg7[%c0_19, %c0_20, %c8_21, %c0_22] : memref<2x10x24x8xf32, #tpu.memory_space<vmem>>, vector<2x8x8x8xf32>
    %18 = vector.extract_strided_slice %5 {offsets = [0, 1, 0], sizes = [1, 1, 8], strides = [1, 1, 1]} : vector<3x3x8xf32> to vector<1x1x8xf32>
    %19 = vector.shape_cast %18 : vector<1x1x8xf32> to vector<8xf32>
    %20 = vector.shape_cast %19 : vector<8xf32> to vector<1x1x1x8xf32>
    %21 = vector.broadcast %20 : vector<1x1x1x8xf32> to vector<2x8x8x8xf32>
    %22 = arith.mulf %17, %21 : vector<2x8x8x8xf32>
    %23 = arith.addf %16, %22 : vector<2x8x8x8xf32>
    %c0_23 = arith.constant 0 : index
    %c0_24 = arith.constant 0 : index
    %c9 = arith.constant 9 : index
    %c0_25 = arith.constant 0 : index
    %24 = vector.load %arg7[%c0_23, %c0_24, %c9, %c0_25] : memref<2x10x24x8xf32, #tpu.memory_space<vmem>>, vector<2x8x8x8xf32>
    %25 = vector.extract_strided_slice %5 {offsets = [0, 2, 0], sizes = [1, 1, 8], strides = [1, 1, 1]} : vector<3x3x8xf32> to vector<1x1x8xf32>
    %26 = vector.shape_cast %25 : vector<1x1x8xf32> to vector<8xf32>
    %27 = vector.shape_cast %26 : vector<8xf32> to vector<1x1x1x8xf32>
    %28 = vector.broadcast %27 : vector<1x1x1x8xf32> to vector<2x8x8x8xf32>
    %29 = arith.mulf %24, %28 : vector<2x8x8x8xf32>
    %30 = arith.addf %23, %29 : vector<2x8x8x8xf32>
    %c0_26 = arith.constant 0 : index
    %c1_27 = arith.constant 1 : index
    %c7_28 = arith.constant 7 : index
    %c0_29 = arith.constant 0 : index
    %31 = vector.load %arg7[%c0_26, %c1_27, %c7_28, %c0_29] : memref<2x10x24x8xf32, #tpu.memory_space<vmem>>, vector<2x8x8x8xf32>
    %32 = vector.extract_strided_slice %5 {offsets = [1, 0, 0], sizes = [1, 1, 8], strides = [1, 1, 1]} : vector<3x3x8xf32> to vector<1x1x8xf32>
    %33 = vector.shape_cast %32 : vector<1x1x8xf32> to vector<8xf32>
    %34 = vector.shape_cast %33 : vector<8xf32> to vector<1x1x1x8xf32>
    %35 = vector.broadcast %34 : vector<1x1x1x8xf32> to vector<2x8x8x8xf32>
    %36 = arith.mulf %31, %35 : vector<2x8x8x8xf32>
    %37 = arith.addf %30, %36 : vector<2x8x8x8xf32>
    %c0_30 = arith.constant 0 : index
    %c1_31 = arith.constant 1 : index
    %c8_32 = arith.constant 8 : index
    %c0_33 = arith.constant 0 : index
    %38 = vector.load %arg7[%c0_30, %c1_31, %c8_32, %c0_33] : memref<2x10x24x8xf32, #tpu.memory_space<vmem>>, vector<2x8x8x8xf32>
    %39 = vector.extract_strided_slice %5 {offsets = [1, 1, 0], sizes = [1, 1, 8], strides = [1, 1, 1]} : vector<3x3x8xf32> to vector<1x1x8xf32>
    %40 = vector.shape_cast %39 : vector<1x1x8xf32> to vector<8xf32>
    %41 = vector.shape_cast %40 : vector<8xf32> to vector<1x1x1x8xf32>
    %42 = vector.broadcast %41 : vector<1x1x1x8xf32> to vector<2x8x8x8xf32>
    %43 = arith.mulf %38, %42 : vector<2x8x8x8xf32>
    %44 = arith.addf %37, %43 : vector<2x8x8x8xf32>
    %c0_34 = arith.constant 0 : index
    %c1_35 = arith.constant 1 : index
    %c9_36 = arith.constant 9 : index
    %c0_37 = arith.constant 0 : index
    %45 = vector.load %arg7[%c0_34, %c1_35, %c9_36, %c0_37] : memref<2x10x24x8xf32, #tpu.memory_space<vmem>>, vector<2x8x8x8xf32>
    %46 = vector.extract_strided_slice %5 {offsets = [1, 2, 0], sizes = [1, 1, 8], strides = [1, 1, 1]} : vector<3x3x8xf32> to vector<1x1x8xf32>
    %47 = vector.shape_cast %46 : vector<1x1x8xf32> to vector<8xf32>
    %48 = vector.shape_cast %47 : vector<8xf32> to vector<1x1x1x8xf32>
    %49 = vector.broadcast %48 : vector<1x1x1x8xf32> to vector<2x8x8x8xf32>
    %50 = arith.mulf %45, %49 : vector<2x8x8x8xf32>
    %51 = arith.addf %44, %50 : vector<2x8x8x8xf32>
    %c0_38 = arith.constant 0 : index
    %c2 = arith.constant 2 : index
    %c7_39 = arith.constant 7 : index
    %c0_40 = arith.constant 0 : index
    %52 = vector.load %arg7[%c0_38, %c2, %c7_39, %c0_40] : memref<2x10x24x8xf32, #tpu.memory_space<vmem>>, vector<2x8x8x8xf32>
    %53 = vector.extract_strided_slice %5 {offsets = [2, 0, 0], sizes = [1, 1, 8], strides = [1, 1, 1]} : vector<3x3x8xf32> to vector<1x1x8xf32>
    %54 = vector.shape_cast %53 : vector<1x1x8xf32> to vector<8xf32>
    %55 = vector.shape_cast %54 : vector<8xf32> to vector<1x1x1x8xf32>
    %56 = vector.broadcast %55 : vector<1x1x1x8xf32> to vector<2x8x8x8xf32>
    %57 = arith.mulf %52, %56 : vector<2x8x8x8xf32>
    %58 = arith.addf %51, %57 : vector<2x8x8x8xf32>
    %c0_41 = arith.constant 0 : index
    %c2_42 = arith.constant 2 : index
    %c8_43 = arith.constant 8 : index
    %c0_44 = arith.constant 0 : index
    %59 = vector.load %arg7[%c0_41, %c2_42, %c8_43, %c0_44] : memref<2x10x24x8xf32, #tpu.memory_space<vmem>>, vector<2x8x8x8xf32>
    %60 = vector.extract_strided_slice %5 {offsets = [2, 1, 0], sizes = [1, 1, 8], strides = [1, 1, 1]} : vector<3x3x8xf32> to vector<1x1x8xf32>
    %61 = vector.shape_cast %60 : vector<1x1x8xf32> to vector<8xf32>
    %62 = vector.shape_cast %61 : vector<8xf32> to vector<1x1x1x8xf32>
    %63 = vector.broadcast %62 : vector<1x1x1x8xf32> to vector<2x8x8x8xf32>
    %64 = arith.mulf %59, %63 : vector<2x8x8x8xf32>
    %65 = arith.addf %58, %64 : vector<2x8x8x8xf32>
    %c0_45 = arith.constant 0 : index
    %c2_46 = arith.constant 2 : index
    %c9_47 = arith.constant 9 : index
    %c0_48 = arith.constant 0 : index
    %66 = vector.load %arg7[%c0_45, %c2_46, %c9_47, %c0_48] : memref<2x10x24x8xf32, #tpu.memory_space<vmem>>, vector<2x8x8x8xf32>
    %67 = vector.extract_strided_slice %5 {offsets = [2, 2, 0], sizes = [1, 1, 8], strides = [1, 1, 1]} : vector<3x3x8xf32> to vector<1x1x8xf32>
    %68 = vector.shape_cast %67 : vector<1x1x8xf32> to vector<8xf32>
    %69 = vector.shape_cast %68 : vector<8xf32> to vector<1x1x1x8xf32>
    %70 = vector.broadcast %69 : vector<1x1x1x8xf32> to vector<2x8x8x8xf32>
    %71 = arith.mulf %66, %70 : vector<2x8x8x8xf32>
    %72 = arith.addf %65, %71 : vector<2x8x8x8xf32>
    %c0_49 = arith.constant 0 : index
    %c0_50 = arith.constant 0 : index
    %c0_51 = arith.constant 0 : index
    %73 = vector.load %arg3[%c0_49, %c0_50, %c0_51] : memref<1x8x8xf32, #tpu.memory_space<vmem>>, vector<1x8x8xf32>
    %74 = vector.shape_cast %73 : vector<1x8x8xf32> to vector<8x8xf32>
    %75 = vector.shape_cast %72 : vector<2x8x8x8xf32> to vector<128x8xf32>
    %cst_52 = arith.constant dense<0.000000e+00> : vector<128x8xf32>
    %76 = tpu.matmul %75, %74, %cst_52 {dimension_numbers = #tpu.dot_dimension_numbers<[1], [0], [0], [1], [0, 0, 1, 1], [], []>} : vector<128x8xf32>, vector<8x8xf32>, vector<128x8xf32> -> vector<128x8xf32>
    %cst_53 = arith.constant dense<0.000000e+00> : vector<8xf32>
    %77 = vector.multi_reduction <add>, %76, %cst_53 [0] : vector<128x8xf32> to vector<8xf32>
    %78 = vector.shape_cast %77 : vector<8xf32> to vector<1x8xf32>
    %cst_54 = arith.constant 1.280000e+02 : f32
    %79 = vector.broadcast %cst_54 : f32 to vector<1x8xf32>
    %80 = arith.divf %78, %79 : vector<1x8xf32>
    %81 = vector.broadcast %80 : vector<1x8xf32> to vector<128x8xf32>
    %82 = arith.subf %76, %81 : vector<128x8xf32>
    %83 = arith.mulf %82, %82 : vector<128x8xf32>
    %cst_55 = arith.constant dense<0.000000e+00> : vector<8xf32>
    %84 = vector.multi_reduction <add>, %83, %cst_55 [0] : vector<128x8xf32> to vector<8xf32>
    %85 = vector.shape_cast %84 : vector<8xf32> to vector<1x8xf32>
    %cst_56 = arith.constant 1.280000e+02 : f32
    %86 = vector.broadcast %cst_56 : f32 to vector<1x8xf32>
    %87 = arith.divf %85, %86 : vector<1x8xf32>
    %88 = vector.broadcast %80 : vector<1x8xf32> to vector<128x8xf32>
    %89 = arith.subf %76, %88 : vector<128x8xf32>
    %cst_57 = arith.constant 9.99999974E-6 : f32
    %90 = vector.broadcast %cst_57 : f32 to vector<1x8xf32>
    %91 = arith.addf %87, %90 : vector<1x8xf32>
    %92 = math.rsqrt %91 : vector<1x8xf32>
    %93 = vector.broadcast %92 : vector<1x8xf32> to vector<128x8xf32>
    %94 = arith.mulf %89, %93 : vector<128x8xf32>
    %95 = vector.shape_cast %94 : vector<128x8xf32> to vector<2x8x8x8xf32>
    %c0_58 = arith.constant 0 : index
    %c0_59 = arith.constant 0 : index
    %c0_60 = arith.constant 0 : index
    %c0_61 = arith.constant 0 : index
    %96 = vector.load %arg4[%c0_58, %c0_59, %c0_60, %c0_61] : memref<1x3x3x8xf32, #tpu.memory_space<vmem>>, vector<1x3x3x8xf32>
    %97 = vector.shape_cast %96 : vector<1x3x3x8xf32> to vector<3x3x8xf32>
    %cst_62 = arith.constant 0.000000e+00 : f32
    %98 = vector.broadcast %cst_62 : f32 to vector<2x8x8x8xf32>
    %99 = arith.maximumf %95, %98 : vector<2x8x8x8xf32>
    %c0_63 = arith.constant 0 : index
    %c1_64 = arith.constant 1 : index
    %c8_65 = arith.constant 8 : index
    %c0_66 = arith.constant 0 : index
    %100 = vector.load %arg7[%c0_63, %c1_64, %c8_65, %c0_66] : memref<2x10x24x8xf32, #tpu.memory_space<vmem>>, vector<2x8x8x8xf32>
    tpu.vector_store %arg7[%c0_63, %c1_64, %c8_65, %c0_66], %99 {strides = array<i32>} : memref<2x10x24x8xf32, #tpu.memory_space<vmem>>, vector<2x8x8x8xf32>,
    %cst_67 = arith.constant 0.000000e+00 : f32
    %101 = vector.broadcast %cst_67 : f32 to vector<2x8x8x8xf32>
    %c0_68 = arith.constant 0 : index
    %c0_69 = arith.constant 0 : index
    %c7_70 = arith.constant 7 : index
    %c0_71 = arith.constant 0 : index
    %102 = vector.load %arg7[%c0_68, %c0_69, %c7_70, %c0_71] : memref<2x10x24x8xf32, #tpu.memory_space<vmem>>, vector<2x8x8x8xf32>
    %103 = vector.extract_strided_slice %97 {offsets = [0, 0, 0], sizes = [1, 1, 8], strides = [1, 1, 1]} : vector<3x3x8xf32> to vector<1x1x8xf32>
    %104 = vector.shape_cast %103 : vector<1x1x8xf32> to vector<8xf32>
    %105 = vector.shape_cast %104 : vector<8xf32> to vector<1x1x1x8xf32>
    %106 = vector.broadcast %105 : vector<1x1x1x8xf32> to vector<2x8x8x8xf32>
    %107 = arith.mulf %102, %106 : vector<2x8x8x8xf32>
    %108 = arith.addf %101, %107 : vector<2x8x8x8xf32>
    %c0_72 = arith.constant 0 : index
    %c0_73 = arith.constant 0 : index
    %c8_74 = arith.constant 8 : index
    %c0_75 = arith.constant 0 : index
    %109 = vector.load %arg7[%c0_72, %c0_73, %c8_74, %c0_75] : memref<2x10x24x8xf32, #tpu.memory_space<vmem>>, vector<2x8x8x8xf32>
    %110 = vector.extract_strided_slice %97 {offsets = [0, 1, 0], sizes = [1, 1, 8], strides = [1, 1, 1]} : vector<3x3x8xf32> to vector<1x1x8xf32>
    %111 = vector.shape_cast %110 : vector<1x1x8xf32> to vector<8xf32>
    %112 = vector.shape_cast %111 : vector<8xf32> to vector<1x1x1x8xf32>
    %113 = vector.broadcast %112 : vector<1x1x1x8xf32> to vector<2x8x8x8xf32>
    %114 = arith.mulf %109, %113 : vector<2x8x8x8xf32>
    %115 = arith.addf %108, %114 : vector<2x8x8x8xf32>
    %c0_76 = arith.constant 0 : index
    %c0_77 = arith.constant 0 : index
    %c9_78 = arith.constant 9 : index
    %c0_79 = arith.constant 0 : index
    %116 = vector.load %arg7[%c0_76, %c0_77, %c9_78, %c0_79] : memref<2x10x24x8xf32, #tpu.memory_space<vmem>>, vector<2x8x8x8xf32>
    %117 = vector.extract_strided_slice %97 {offsets = [0, 2, 0], sizes = [1, 1, 8], strides = [1, 1, 1]} : vector<3x3x8xf32> to vector<1x1x8xf32>
    %118 = vector.shape_cast %117 : vector<1x1x8xf32> to vector<8xf32>
    %119 = vector.shape_cast %118 : vector<8xf32> to vector<1x1x1x8xf32>
    %120 = vector.broadcast %119 : vector<1x1x1x8xf32> to vector<2x8x8x8xf32>
    %121 = arith.mulf %116, %120 : vector<2x8x8x8xf32>
    %122 = arith.addf %115, %121 : vector<2x8x8x8xf32>
    %c0_80 = arith.constant 0 : index
    %c1_81 = arith.constant 1 : index
    %c7_82 = arith.constant 7 : index
    %c0_83 = arith.constant 0 : index
    %123 = vector.load %arg7[%c0_80, %c1_81, %c7_82, %c0_83] : memref<2x10x24x8xf32, #tpu.memory_space<vmem>>, vector<2x8x8x8xf32>
    %124 = vector.extract_strided_slice %97 {offsets = [1, 0, 0], sizes = [1, 1, 8], strides = [1, 1, 1]} : vector<3x3x8xf32> to vector<1x1x8xf32>
    %125 = vector.shape_cast %124 : vector<1x1x8xf32> to vector<8xf32>
    %126 = vector.shape_cast %125 : vector<8xf32> to vector<1x1x1x8xf32>
    %127 = vector.broadcast %126 : vector<1x1x1x8xf32> to vector<2x8x8x8xf32>
    %128 = arith.mulf %123, %127 : vector<2x8x8x8xf32>
    %129 = arith.addf %122, %128 : vector<2x8x8x8xf32>
    %c0_84 = arith.constant 0 : index
    %c1_85 = arith.constant 1 : index
    %c8_86 = arith.constant 8 : index
    %c0_87 = arith.constant 0 : index
    %130 = vector.load %arg7[%c0_84, %c1_85, %c8_86, %c0_87] : memref<2x10x24x8xf32, #tpu.memory_space<vmem>>, vector<2x8x8x8xf32>
    %131 = vector.extract_strided_slice %97 {offsets = [1, 1, 0], sizes = [1, 1, 8], strides = [1, 1, 1]} : vector<3x3x8xf32> to vector<1x1x8xf32>
    %132 = vector.shape_cast %131 : vector<1x1x8xf32> to vector<8xf32>
    %133 = vector.shape_cast %132 : vector<8xf32> to vector<1x1x1x8xf32>
    %134 = vector.broadcast %133 : vector<1x1x1x8xf32> to vector<2x8x8x8xf32>
    %135 = arith.mulf %130, %134 : vector<2x8x8x8xf32>
    %136 = arith.addf %129, %135 : vector<2x8x8x8xf32>
    %c0_88 = arith.constant 0 : index
    %c1_89 = arith.constant 1 : index
    %c9_90 = arith.constant 9 : index
    %c0_91 = arith.constant 0 : index
    %137 = vector.load %arg7[%c0_88, %c1_89, %c9_90, %c0_91] : memref<2x10x24x8xf32, #tpu.memory_space<vmem>>, vector<2x8x8x8xf32>
    %138 = vector.extract_strided_slice %97 {offsets = [1, 2, 0], sizes = [1, 1, 8], strides = [1, 1, 1]} : vector<3x3x8xf32> to vector<1x1x8xf32>
    %139 = vector.shape_cast %138 : vector<1x1x8xf32> to vector<8xf32>
    %140 = vector.shape_cast %139 : vector<8xf32> to vector<1x1x1x8xf32>
    %141 = vector.broadcast %140 : vector<1x1x1x8xf32> to vector<2x8x8x8xf32>
    %142 = arith.mulf %137, %141 : vector<2x8x8x8xf32>
    %143 = arith.addf %136, %142 : vector<2x8x8x8xf32>
    %c0_92 = arith.constant 0 : index
    %c2_93 = arith.constant 2 : index
    %c7_94 = arith.constant 7 : index
    %c0_95 = arith.constant 0 : index
    %144 = vector.load %arg7[%c0_92, %c2_93, %c7_94, %c0_95] : memref<2x10x24x8xf32, #tpu.memory_space<vmem>>, vector<2x8x8x8xf32>
    %145 = vector.extract_strided_slice %97 {offsets = [2, 0, 0], sizes = [1, 1, 8], strides = [1, 1, 1]} : vector<3x3x8xf32> to vector<1x1x8xf32>
    %146 = vector.shape_cast %145 : vector<1x1x8xf32> to vector<8xf32>
    %147 = vector.shape_cast %146 : vector<8xf32> to vector<1x1x1x8xf32>
    %148 = vector.broadcast %147 : vector<1x1x1x8xf32> to vector<2x8x8x8xf32>
    %149 = arith.mulf %144, %148 : vector<2x8x8x8xf32>
    %150 = arith.addf %143, %149 : vector<2x8x8x8xf32>
    %c0_96 = arith.constant 0 : index
    %c2_97 = arith.constant 2 : index
    %c8_98 = arith.constant 8 : index
    %c0_99 = arith.constant 0 : index
    %151 = vector.load %arg7[%c0_96, %c2_97, %c8_98, %c0_99] : memref<2x10x24x8xf32, #tpu.memory_space<vmem>>, vector<2x8x8x8xf32>
    %152 = vector.extract_strided_slice %97 {offsets = [2, 1, 0], sizes = [1, 1, 8], strides = [1, 1, 1]} : vector<3x3x8xf32> to vector<1x1x8xf32>
    %153 = vector.shape_cast %152 : vector<1x1x8xf32> to vector<8xf32>
    %154 = vector.shape_cast %153 : vector<8xf32> to vector<1x1x1x8xf32>
    %155 = vector.broadcast %154 : vector<1x1x1x8xf32> to vector<2x8x8x8xf32>
    %156 = arith.mulf %151, %155 : vector<2x8x8x8xf32>
    %157 = arith.addf %150, %156 : vector<2x8x8x8xf32>
    %c0_100 = arith.constant 0 : index
    %c2_101 = arith.constant 2 : index
    %c9_102 = arith.constant 9 : index
    %c0_103 = arith.constant 0 : index
    %158 = vector.load %arg7[%c0_100, %c2_101, %c9_102, %c0_103] : memref<2x10x24x8xf32, #tpu.memory_space<vmem>>, vector<2x8x8x8xf32>
    %159 = vector.extract_strided_slice %97 {offsets = [2, 2, 0], sizes = [1, 1, 8], strides = [1, 1, 1]} : vector<3x3x8xf32> to vector<1x1x8xf32>
    %160 = vector.shape_cast %159 : vector<1x1x8xf32> to vector<8xf32>
    %161 = vector.shape_cast %160 : vector<8xf32> to vector<1x1x1x8xf32>
    %162 = vector.broadcast %161 : vector<1x1x1x8xf32> to vector<2x8x8x8xf32>
    %163 = arith.mulf %158, %162 : vector<2x8x8x8xf32>
    %164 = arith.addf %157, %163 : vector<2x8x8x8xf32>
    %c0_104 = arith.constant 0 : index
    %c0_105 = arith.constant 0 : index
    %c0_106 = arith.constant 0 : index
    %165 = vector.load %arg5[%c0_104, %c0_105, %c0_106] : memref<1x8x8xf32, #tpu.memory_space<vmem>>, vector<1x8x8xf32>
    %166 = vector.shape_cast %165 : vector<1x8x8xf32> to vector<8x8xf32>
    %167 = vector.shape_cast %164 : vector<2x8x8x8xf32> to vector<128x8xf32>
    %cst_107 = arith.constant dense<0.000000e+00> : vector<128x8xf32>
    %168 = tpu.matmul %167, %166, %cst_107 {dimension_numbers = #tpu.dot_dimension_numbers<[1], [0], [0], [1], [0, 0, 1, 1], [], []>} : vector<128x8xf32>, vector<8x8xf32>, vector<128x8xf32> -> vector<128x8xf32>
    %cst_108 = arith.constant dense<0.000000e+00> : vector<8xf32>
    %169 = vector.multi_reduction <add>, %168, %cst_108 [0] : vector<128x8xf32> to vector<8xf32>
    %170 = vector.shape_cast %169 : vector<8xf32> to vector<1x8xf32>
    %cst_109 = arith.constant 1.280000e+02 : f32
    %171 = vector.broadcast %cst_109 : f32 to vector<1x8xf32>
    %172 = arith.divf %170, %171 : vector<1x8xf32>
    %173 = vector.broadcast %172 : vector<1x8xf32> to vector<128x8xf32>
    %174 = arith.subf %168, %173 : vector<128x8xf32>
    %175 = arith.mulf %174, %174 : vector<128x8xf32>
    %cst_110 = arith.constant dense<0.000000e+00> : vector<8xf32>
    %176 = vector.multi_reduction <add>, %175, %cst_110 [0] : vector<128x8xf32> to vector<8xf32>
    %177 = vector.shape_cast %176 : vector<8xf32> to vector<1x8xf32>
    %cst_111 = arith.constant 1.280000e+02 : f32
    %178 = vector.broadcast %cst_111 : f32 to vector<1x8xf32>
    %179 = arith.divf %177, %178 : vector<1x8xf32>
    %180 = vector.broadcast %172 : vector<1x8xf32> to vector<128x8xf32>
    %181 = arith.subf %168, %180 : vector<128x8xf32>
    %cst_112 = arith.constant 9.99999974E-6 : f32
    %182 = vector.broadcast %cst_112 : f32 to vector<1x8xf32>
    %183 = arith.addf %179, %182 : vector<1x8xf32>
    %184 = math.rsqrt %183 : vector<1x8xf32>
    %185 = vector.broadcast %184 : vector<1x8xf32> to vector<128x8xf32>
    %186 = arith.mulf %181, %185 : vector<128x8xf32>
    %187 = vector.shape_cast %186 : vector<128x8xf32> to vector<2x8x8x8xf32>
    %c0_113 = arith.constant 0 : index
    %c0_114 = arith.constant 0 : index
    %c0_115 = arith.constant 0 : index
    %c0_116 = arith.constant 0 : index
    %c0_117 = arith.constant 0 : index
    %188 = vector.load %arg6[%c0_113, %c0_114, %c0_115, %c0_116, %c0_117] : memref<1x2x8x8x8xf32, #tpu.memory_space<vmem>>, vector<1x2x8x8x8xf32>
    %189 = vector.shape_cast %188 : vector<1x2x8x8x8xf32> to vector<2x8x8x8xf32>
    %190 = vector.shape_cast %187 : vector<2x8x8x8xf32> to vector<1x2x8x8x8xf32>
    tpu.vector_store %arg6[%c0_113, %c0_114, %c0_115, %c0_116, %c0_117], %190 {strides = array<i32>} : memref<1x2x8x8x8xf32, #tpu.memory_space<vmem>>, vector<1x2x8x8x8xf32>,
    return
  }
  func.func @transform_0(%arg0: i32) -> (i32, i32, i32, i32, i32) {
    %c0_i32 = arith.constant 0 : i32
    %c0_i32_0 = arith.constant 0 : i32
    %c0_i32_1 = arith.constant 0 : i32
    %c0_i32_2 = arith.constant 0 : i32
    %c0_i32_3 = arith.constant 0 : i32
    return %arg0, %c0_i32, %c0_i32_0, %c0_i32_1, %c0_i32_2 : i32, i32, i32, i32, i32
  }
  func.func @transform_1(%arg0: i32) -> (i32, i32, i32, i32) {
    %c0_i32 = arith.constant 0 : i32
    %c0_i32_0 = arith.constant 0 : i32
    %c0_i32_1 = arith.constant 0 : i32
    %c0_i32_2 = arith.constant 0 : i32
    return %arg0, %c0_i32, %c0_i32_0, %c0_i32_1 : i32, i32, i32, i32
  }
  func.func @transform_2(%arg0: i32) -> (i32, i32, i32) {
    %c0_i32 = arith.constant 0 : i32
    %c0_i32_0 = arith.constant 0 : i32
    %c0_i32_1 = arith.constant 0 : i32
    return %arg0, %c0_i32, %c0_i32_0 : i32, i32, i32
  }
  func.func @transform_3(%arg0: i32) -> (i32, i32, i32, i32) {
    %c0_i32 = arith.constant 0 : i32
    %c0_i32_0 = arith.constant 0 : i32
    %c0_i32_1 = arith.constant 0 : i32
    %c0_i32_2 = arith.constant 0 : i32
    return %arg0, %c0_i32, %c0_i32_0, %c0_i32_1 : i32, i32, i32, i32
  }
  func.func @transform_4(%arg0: i32) -> (i32, i32, i32) {
    %c0_i32 = arith.constant 0 : i32
    %c0_i32_0 = arith.constant 0 : i32
    %c0_i32_1 = arith.constant 0 : i32
    return %arg0, %c0_i32, %c0_i32_0 : i32, i32, i32
  }
  func.func @transform_5(%arg0: i32) -> (i32, i32, i32, i32, i32) {
    %c0_i32 = arith.constant 0 : i32
    %c0_i32_0 = arith.constant 0 : i32
    %c0_i32_1 = arith.constant 0 : i32
    %c0_i32_2 = arith.constant 0 : i32
    %c0_i32_3 = arith.constant 0 : i32
    return %arg0, %c0_i32, %c0_i32_0, %c0_i32_1, %c0_i32_2 : i32, i32, i32, i32, i32
  }
}

</mosaic_0001>

<llo_original>
// kernel: _lambda_.3
$region0: #{_lambda_.3}
  #allocation0 [shape = 'u32[]', space=smem, size = 0x4, offset = 0x4, fixed_abs, tag = 'smem constant byte address 0x4 - core index']
  #allocation1 [shape = 'u32[144,128]{1,0:T(1,128)}', space=vmem, size = 0x12000, scoped, tag = 'internal scratch']
  #allocation2 [shape = 'f32[1,8]{1,0:T(1,128)}', space=vmem, size = 0x200, scoped, tag = 'scratch operand']
  #allocation3 [shape = 'f32[1,8]{1,0:T(1,128)}', space=vmem, size = 0x200, scoped, tag = 'scratch operand']
  %s0 = inlined_call_operand.vmem [shape: f32[2,128,8], index: 0, kind: input, shape index: {}]
  %s1 = inlined_call_operand.vmem [shape: f32[2,8,8], index: 1, kind: input, shape index: {}]
  %s2 = inlined_call_operand.vmem [shape: f32[2,128,8], index: 2, kind: output, shape index: {}]
  %s3 = sld [smem:[#allocation0]]
  $region57: #{_lambda_.3} parent=0
    _
  %s5 = ssub.s32 1, %s3
  %s6 = scalar_select 0, %s5, %s3
  loop: start=0, step=1, limit=6
  $region2: #{_lambda_.3} parent=0 // loop_pre_header
    _
  $region3: #{_lambda_.3} parent=0 // loop_header
    %s8 = sphi 0, %s12
    %p9 = scmp.ge.s32.totalorder %s8, 6
    %s15 = sphi 0, %s34
    %s16 = sphi 0, %s30
    %s17 = sphi 0, %s26
    %s18 = sphi 0, %s15
    %s19 = sphi 0, %s16
    %s20 = sphi 0, %s17
    %s21 = sphi 0, %s18
    %s22 = sphi 0, %s19
    %s23 = sphi 0, %s20
    %s39 = sphi 0, %s41
    %s42 = sphi 0, %s39
    %s43 = sphi 0, %s42
    %s59 = sphi 0, %s43
    %s65 = sphi 0, %s67
    %s68 = sphi 0, %s65
    %s69 = sphi 0, %s68
    %s85 = sphi 0, %s69
    %s93 = sphi 0, %s95
    %s96 = sphi 0, %s93
    %s97 = sphi 0, %s96
    %s113 = sphi 0, %s97
  $region4: #{_lambda_.3} parent=0 // loop_header_branch
    %11 = sbr.rel (%p9) target = $region8
  $region5: #{_lambda_.3} parent=0 // loop_body
    %s13 = ssub.s32 %s8, 1
    %s14 = ssub.s32 %s8, 2
    %s24 = sadd.s32 1, %s17
    %p25 = scmp.ge.s32.totalorder %s24, 1
    %s26 = scalar_select %p25, 0, %s24
    %s27 = sadd.s32 1, %s16
    %s28 = scalar_select %p25, %s27, %s16
    %p29 = scmp.ge.s32.totalorder %s28, 2
    %s30 = scalar_select %p29, 0, %s28
    %s31 = sadd.s32 1, %s15
    %s32 = scalar_select %p29, %s31, %s15
    %p33 = scmp.ge.s32.totalorder %s32, 2
    %s34 = scalar_select %p33, 0, %s32
    %s35 = ssub.s32 %s15, %s34
    %s36 = ssub.s32 %s17, %s26
    %s37 = sor.u32 %s35, %s36
    %p38 = scmp.eq.s32.totalorder %s37, 0
    %s40 = sadd.s32 %s39, 1
    %s41 = scalar_select %p38, %s39, %s40
    %p44 = pneg %p38
    %p45 = scmp.eq.s32.totalorder %s8, 3
    %p46 = por %p44, %p45
    %p47 = scmp.ne.s32.totalorder %s39, %s42
    %p48 = scmp.eq.s32.totalorder %s8, 0
    %p49 = por %p47, %p48
    %p50 = scmp.ne.s32.totalorder %s39, %s42
    %p51 = scmp.eq.s32.totalorder %s13, 3
    %p52 = por %p50, %p51
    %p53 = scmp.ne.s32.totalorder %s42, %s43
    %p54 = scmp.eq.s32.totalorder %s13, 0
    %p55 = por %p53, %p54
    %p56 = scmp.ne.s32.totalorder %s42, %s43
    %p57 = scmp.eq.s32.totalorder %s14, 3
    %p58 = por %p56, %p57
    %p60 = scmp.ne.s32.totalorder %s43, %s59
    %p61 = scmp.eq.s32.totalorder %s14, 0
    %p62 = por %p60, %p61
    %s63 = ssub.s32 %s15, %s34
    %p64 = scmp.eq.s32.totalorder %s63, 0
    %s66 = sadd.s32 %s65, 1
    %s67 = scalar_select %p64, %s65, %s66
    %p70 = pneg %p64
    %p71 = scmp.eq.s32.totalorder %s8, 3
    %p72 = por %p70, %p71
    %p73 = scmp.ne.s32.totalorder %s65, %s68
    %p74 = scmp.eq.s32.totalorder %s8, 0
    %p75 = por %p73, %p74
    %p76 = scmp.ne.s32.totalorder %s65, %s68
    %p77 = scmp.eq.s32.totalorder %s13, 3
    %p78 = por %p76, %p77
    %p79 = scmp.ne.s32.totalorder %s68, %s69
    %p80 = scmp.eq.s32.totalorder %s13, 0
    %p81 = por %p79, %p80
    %p82 = scmp.ne.s32.totalorder %s68, %s69
    %p83 = scmp.eq.s32.totalorder %s14, 3
    %p84 = por %p82, %p83
    %p86 = scmp.ne.s32.totalorder %s69, %s85
    %p87 = scmp.eq.s32.totalorder %s14, 0
    %p88 = por %p86, %p87
    %s89 = ssub.s32 %s15, %s34
    %s90 = ssub.s32 %s17, %s26
    %s91 = sor.u32 %s89, %s90
    %p92 = scmp.eq.s32.totalorder %s91, 0
    %s94 = sadd.s32 %s93, 1
    %s95 = scalar_select %p92, %s93, %s94
    %p98 = pneg %p92
    %p99 = scmp.eq.s32.totalorder %s8, 3
    %p100 = por %p98, %p99
    %p101 = scmp.ne.s32.totalorder %s93, %s96
    %p102 = scmp.eq.s32.totalorder %s8, 0
    %p103 = por %p101, %p102
    %p104 = scmp.ne.s32.totalorder %s93, %s96
    %p105 = scmp.eq.s32.totalorder %s13, 3
    %p106 = por %p104, %p105
    %p107 = scmp.ne.s32.totalorder %s96, %s97
    %p108 = scmp.eq.s32.totalorder %s13, 0
    %p109 = por %p107, %p108
    %p110 = scmp.ne.s32.totalorder %s96, %s97
    %p111 = scmp.eq.s32.totalorder %s14, 3
    %p112 = por %p110, %p111
    %p114 = scmp.ne.s32.totalorder %s97, %s113
    %p115 = scmp.eq.s32.totalorder %s14, 0
    %p116 = por %p114, %p115
    %p117 = scmp.le.s32.totalorder 1, %s8
    %p118 = scmp.lt.s32.totalorder %s8, 5
    %p119 = pnand %p117, %p118
    %p120 = pneg %p119
    // Predicated region
    $region9: #{_lambda_.3} parent=5 // pred_check
      _
    $region10: #{_lambda_.3} parent=5 // pred_check_branch
      %122 = sbr.rel (%p119) target = $region12
    $region11: #{_lambda_.3} parent=5 // pred_region
      %s123 = ssub.s32 %s8, 1
    $region12: #{_lambda_.3} parent=5 // pred_fallthru
      _
    %p124 = scmp.lt.s32.totalorder %s8, 4
    // Predicated region
    $region13: #{_lambda_.3} parent=5 // pred_check
      %p125 = pneg %p124
    $region14: #{_lambda_.3} parent=5 // pred_check_branch
      %127 = sbr.rel (%p125) target = $region16
    $region15: #{_lambda_.3} parent=5 // pred_region
      // Predicated region
      $region17: #{_lambda_.3} parent=15 // pred_check
        %p128 = pneg %p49
      $region18: #{_lambda_.3} parent=15 // pred_check_branch
        %130 = sbr.rel (%p128) target = $region20
      $region19: #{_lambda_.3} parent=15 // pred_region
        %s131 = smul.u32 16, %s17
        %p132 = scmp.lt.s32.totalorder %s15, 1
        %s133 = scalar_select %p132, %s15, 1
        %p134 = scmp.lt.s32.totalorder %s131, 15
        %s135 = scalar_select %p134, %s131, 15
        %s136 = smul.addr %s133, 16
        %s137 = sadd.s32 %s135, %s136
        %s138 = smul.addr %s137, 8
        %s139 = scalar_lea.vmem %s0, %s138
        %s140 = smul.u32 16, %s17
      $region20: #{_lambda_.3} parent=15 // pred_fallthru
        _
      // Predicated region
      $region21: #{_lambda_.3} parent=15 // pred_check
        %p141 = pneg %p75
      $region22: #{_lambda_.3} parent=15 // pred_check_branch
        %143 = sbr.rel (%p141) target = $region24
      $region23: #{_lambda_.3} parent=15 // pred_region
        %p144 = scmp.lt.s32.totalorder %s15, 1
        %s145 = scalar_select %p144, %s15, 1
        %s146 = smul.addr %s145, 8
        %s147 = scalar_lea.vmem %s1, %s146
      $region24: #{_lambda_.3} parent=15 // pred_fallthru
        _
    $region16: #{_lambda_.3} parent=5 // pred_fallthru
      _
    %p148 = scmp.le.s32.totalorder 1, %s8
    %p149 = scmp.lt.s32.totalorder %s8, 5
    %p150 = pnand %p148, %p149
    %p151 = pneg %p150
    // Predicated region
    $region25: #{_lambda_.3} parent=5 // pred_check
      _
    $region26: #{_lambda_.3} parent=5 // pred_check_branch
      %153 = sbr.rel (%p150) target = $region28
    $region27: #{_lambda_.3} parent=5 // pred_region
      %s154 = ssub.s32 %s8, 1
      %s155 = smul.u32 16, %s20
      %p156 = scmp.lt.s32.totalorder %s18, 1
      %s157 = scalar_select %p156, %s18, 1
      %p158 = scmp.lt.s32.totalorder %s155, 15
      %s159 = scalar_select %p158, %s155, 15
      %s160 = smul.addr %s157, 16
      %s161 = sadd.s32 %s159, %s160
      %s162 = smul.addr %s161, 8
      %s163 = scalar_lea.vmem %s0, %s162
      %p164 = pneg %p55
      %p165 = pneg %p52
      %p166 = scmp.lt.s32.totalorder %s18, 1
      %s167 = scalar_select %p166, %s18, 1
      %s168 = smul.addr %s167, 8
      %s169 = scalar_lea.vmem %s1, %s168
      %p170 = pneg %p81
      %p171 = pneg %p78
      %p172 = pneg %p109
      %p173 = pneg %p106
      %s174 = smul.u32 16, %s20
      %p175 = scmp.lt.s32.totalorder %s18, 1
      %s176 = scalar_select %p175, %s18, 1
      %p177 = scmp.lt.s32.totalorder %s174, 15
      %s178 = scalar_select %p177, %s174, 15
      %s179 = smul.addr %s176, 16
      %s180 = sadd.s32 %s178, %s179
      %s181 = smul.addr %s180, 8
      %s182 = scalar_lea.vmem %s2, %s181
      %s183 = smul.u32 16, %s20
      %p184 = scmp.lt.s32.totalorder %s18, 1
      %s185 = scalar_select %p184, %s18, 1
      %p186 = scmp.lt.s32.totalorder %s183, 15
      %s187 = scalar_select %p186, %s183, 15
      %s188 = smul.addr %s185, 16
      %s189 = sadd.s32 %s187, %s188
      %s190 = smul.addr %s189, 8
      %s191 = scalar_lea.vmem %s0, %s190
      %s192 = smul.u32 16, %s20
      %p193 = scmp.lt.s32.totalorder %s18, 1
      %s194 = scalar_select %p193, %s18, 1
      %s195 = smul.addr %s194, 8
      %s196 = scalar_lea.vmem %s1, %s195
      %s197 = smul.u32 16, %s20
      %p198 = scmp.lt.s32.totalorder %s18, 1
      %s199 = scalar_select %p198, %s18, 1
      %p200 = scmp.lt.s32.totalorder %s197, 15
      %s201 = scalar_select %p200, %s197, 15
      %s202 = smul.addr %s199, 16
      %s203 = sadd.s32 %s201, %s202
      %s204 = smul.addr %s203, 8
      %s205 = scalar_lea.vmem %s2, %s204
      %s206 = smul.u32 16, %s20
      %p207 = scmp.eq.s32.totalorder %s19, 0
      %p208 = scmp.eq.s32.totalorder %s20, 0
      %p209 = pnand %p207, %p208
      %p210 = pneg %p209
      // Predicated region
      $region29: #{_lambda_.3} parent=27 // pred_check
        _
      $region30: #{_lambda_.3} parent=27 // pred_check_branch
        %212 = sbr.rel (%p209) target = $region32
      $region31: #{_lambda_.3} parent=27 // pred_region
        %vm213 = vcmask 57344
        %214 = vst.msk [vmem:[#allocation2] sm:$0x1] %vm213, 0.0
        %215 = vst.msk [vmem:[#allocation3] sm:$0x1] %vm213, 0.0
      $region32: #{_lambda_.3} parent=27 // pred_fallthru
        _
      %v216 = vld [vmem:[%s191] sm:$0xff]
      %v217 = vld [vmem:[%s191 + $0x8] sm:$0xff]
      %v218 = vld [vmem:[%s191 + $0x10] sm:$0xff]
      %v219 = vld [vmem:[%s191 + $0x18] sm:$0xff]
      %v220 = vld [vmem:[%s191 + $0x20] sm:$0xff]
      %v221 = vld [vmem:[%s191 + $0x28] sm:$0xff]
      %v222 = vld [vmem:[%s191 + $0x30] sm:$0xff]
      %v223 = vld [vmem:[%s191 + $0x38] sm:$0xff]
      %v224 = vld [vmem:[%s191 + $0x40] sm:$0xff]
      %v225 = vld [vmem:[%s191 + $0x48] sm:$0xff]
      %v226 = vld [vmem:[%s191 + $0x50] sm:$0xff]
      %v227 = vld [vmem:[%s191 + $0x58] sm:$0xff]
      %v228 = vld [vmem:[%s191 + $0x60] sm:$0xff]
      %v229 = vld [vmem:[%s191 + $0x68] sm:$0xff]
      %v230 = vld [vmem:[%s191 + $0x70] sm:$0xff]
      %v231 = vld [vmem:[%s191 + $0x78] sm:$0xff]
      %v232 = vmax.f32 %v216, 0.0
      %v233 = vmax.f32 %v217, 0.0
      %v234 = vmax.f32 %v218, 0.0
      %v235 = vmax.f32 %v219, 0.0
      %v236 = vmax.f32 %v220, 0.0
      %v237 = vmax.f32 %v221, 0.0
      %v238 = vmax.f32 %v222, 0.0
      %v239 = vmax.f32 %v223, 0.0
      %v240 = vmax.f32 %v224, 0.0
      %v241 = vmax.f32 %v225, 0.0
      %v242 = vmax.f32 %v226, 0.0
      %v243 = vmax.f32 %v227, 0.0
      %v244 = vmax.f32 %v228, 0.0
      %v245 = vmax.f32 %v229, 0.0
      %v246 = vmax.f32 %v230, 0.0
      %v247 = vmax.f32 %v231, 0.0
      %v248 = vld [vmem:[%s196] sm:$0xff]
      %vm249 = vcmask 64512
      %v251 = vsel %vm249, %v232, 0
      %v254 = vsel %vm249, %v233, 0
      %v257 = vsel %vm249, %v234, 0
      %v260 = vsel %vm249, %v235, 0
      %v263 = vsel %vm249, %v236, 0
      %v266 = vsel %vm249, %v237, 0
      %v269 = vsel %vm249, %v238, 0
      %v272 = vsel %vm249, %v239, 0
      %v275 = vsel %vm249, %v240, 0
      %v278 = vsel %vm249, %v241, 0
      %v281 = vsel %vm249, %v242, 0
      %v284 = vsel %vm249, %v243, 0
      %v287 = vsel %vm249, %v244, 0
      %v290 = vsel %vm249, %v245, 0
      %v293 = vsel %vm249, %v246, 0
      %v296 = vsel %vm249, %v247, 0
      %298 = vmatprep.subr.mxu0 0.0
      %299 = vmatpush1.msra.mxu0 0.0
      %300 = vmatprep.subr.mxu0 0.0
      %301 = vmatpush1.msra.mxu0 0.0
      %302 = vmatprep.subr.mxu0 0.0
      %303 = vmatpush1.msra.mxu0 0.0
      %304 = vmatprep.subr.mxu0 0.0
      %305 = vmatpush1.msra.mxu0 0.0
      %306 = vmatprep.subr.mxu0 0.0
      %307 = vmatpush1.msra.mxu0 0.0
      %308 = vmatprep.subr.mxu0 0.0
      %309 = vmatpush1.msra.mxu0 0.0
      %310 = vmatprep.subr.mxu0 0.0
      %311 = vmatpush1.msra.mxu0 0.0
      %312 = vmatprep.subr.mxu0 0.0
      %313 = vmatpush1.msra.mxu0 0.0
      %314 = vmatprep.subr.mxu0 0.0
      %315 = vmatpush1.msra.mxu0 0.0
      %316 = vmatprep.subr.mxu0 0.0
      %317 = vmatpush1.msra.mxu0 0.0
      %318 = vmatprep.subr.mxu0 0.0
      %319 = vmatpush1.msra.mxu0 0.0
      %320 = vmatprep.subr.mxu0 0.0
      %321 = vmatpush1.msra.mxu0 0.0
      %322 = vmatprep.subr.mxu0 0.0
      %323 = vmatpush1.msra.mxu0 0.0
      %324 = vmatprep.subr.mxu0 0.0
      %325 = vmatpush1.msra.mxu0 0.0
      %326 = vmatprep.subr.mxu0 0.0
      %327 = vmatpush1.msra.mxu0 0.0
      %328 = vmatprep.subr.mxu0 0.0
      %329 = vmatpush1.msra.mxu0 %v248
      %330 = vmatprep.subr.mxu0 0.0
      %331 = vmatpush2.msra.mxu0 0.0
      %332 = vmatprep.subr.mxu0 0.0
      %333 = vmatpush2.msra.mxu0 0.0
      %334 = vmatprep.subr.mxu0 0.0
      %335 = vmatpush2.msra.mxu0 0.0
      %336 = vmatprep.subr.mxu0 0.0
      %337 = vmatpush2.msra.mxu0 0.0
      %338 = vmatprep.subr.mxu0 0.0
      %339 = vmatpush2.msra.mxu0 0.0
      %340 = vmatprep.subr.mxu0 0.0
      %341 = vmatpush2.msra.mxu0 0.0
      %342 = vmatprep.subr.mxu0 0.0
      %343 = vmatpush2.msra.mxu0 0.0
      %344 = vmatprep.subr.mxu0 0.0
      %345 = vmatpush2.msra.mxu0 0.0
      %346 = vmatprep.subr.mxu0 0.0
      %347 = vmatpush2.msra.mxu0 0.0
      %348 = vmatprep.subr.mxu0 0.0
      %349 = vmatpush2.msra.mxu0 0.0
      %350 = vmatprep.subr.mxu0 0.0
      %351 = vmatpush2.msra.mxu0 0.0
      %352 = vmatprep.subr.mxu0 0.0
      %353 = vmatpush2.msra.mxu0 0.0
      %354 = vmatprep.subr.mxu0 0.0
      %355 = vmatpush2.msra.mxu0 0.0
      %356 = vmatprep.subr.mxu0 0.0
      %357 = vmatpush2.msra.mxu0 0.0
      %358 = vmatprep.subr.mxu0 0.0
      %359 = vmatpush2.msra.mxu0 0.0
      %360 = vmatprep.subr.mxu0 0.0
      %361 = vmatpush2.msra.mxu0 0.0
      %362 = vmatprep.mubr.f32.mxu0 0.0
      %363 = vmatmul.mubr.f32.gmra.mxu0 %v251
      %v364 = vpop.f32.mrf.mxu0
      %v365 = vadd.f32 0.0, %v364
      %v366 = vpop.f32.mrf.mxu0
      %367 = vmatprep.mubr.f32.mxu0 0.0
      %368 = vmatmul.mubr.f32.gmra.mxu0 %v254
      %v369 = vpop.f32.mrf.mxu0
      %v370 = vadd.f32 0.0, %v369
      %v371 = vpop.f32.mrf.mxu0
      %372 = vmatprep.mubr.f32.mxu0 0.0
      %373 = vmatmul.mubr.f32.gmra.mxu0 %v257
      %v374 = vpop.f32.mrf.mxu0
      %v375 = vadd.f32 0.0, %v374
      %v376 = vpop.f32.mrf.mxu0
      %377 = vmatprep.mubr.f32.mxu0 0.0
      %378 = vmatmul.mubr.f32.gmra.mxu0 %v260
      %v379 = vpop.f32.mrf.mxu0
      %v380 = vadd.f32 0.0, %v379
      %v381 = vpop.f32.mrf.mxu0
      %382 = vmatprep.mubr.f32.mxu0 0.0
      %383 = vmatmul.mubr.f32.gmra.mxu0 %v263
      %v384 = vpop.f32.mrf.mxu0
      %v385 = vadd.f32 0.0, %v384
      %v386 = vpop.f32.mrf.mxu0
      %387 = vmatprep.mubr.f32.mxu0 0.0
      %388 = vmatmul.mubr.f32.gmra.mxu0 %v266
      %v389 = vpop.f32.mrf.mxu0
      %v390 = vadd.f32 0.0, %v389
      %v391 = vpop.f32.mrf.mxu0
      %392 = vmatprep.mubr.f32.mxu0 0.0
      %393 = vmatmul.mubr.f32.gmra.mxu0 %v269
      %v394 = vpop.f32.mrf.mxu0
      %v395 = vadd.f32 0.0, %v394
      %v396 = vpop.f32.mrf.mxu0
      %397 = vmatprep.mubr.f32.mxu0 0.0
      %398 = vmatmul.mubr.f32.gmra.mxu0 %v272
      %v399 = vpop.f32.mrf.mxu0
      %v400 = vadd.f32 0.0, %v399
      %v401 = vpop.f32.mrf.mxu0
      %402 = vmatprep.mubr.f32.mxu0 0.0
      %403 = vmatmul.mubr.f32.gmra.mxu0 %v275
      %v404 = vpop.f32.mrf.mxu0
      %v405 = vadd.f32 0.0, %v404
      %v406 = vpop.f32.mrf.mxu0
      %407 = vmatprep.mubr.f32.mxu0 0.0
      %408 = vmatmul.mubr.f32.gmra.mxu0 %v278
      %v409 = vpop.f32.mrf.mxu0
      %v410 = vadd.f32 0.0, %v409
      %v411 = vpop.f32.mrf.mxu0
      %412 = vmatprep.mubr.f32.mxu0 0.0
      %413 = vmatmul.mubr.f32.gmra.mxu0 %v281
      %v414 = vpop.f32.mrf.mxu0
      %v415 = vadd.f32 0.0, %v414
      %v416 = vpop.f32.mrf.mxu0
      %417 = vmatprep.mubr.f32.mxu0 0.0
      %418 = vmatmul.mubr.f32.gmra.mxu0 %v284
      %v419 = vpop.f32.mrf.mxu0
      %v420 = vadd.f32 0.0, %v419
      %v421 = vpop.f32.mrf.mxu0
      %422 = vmatprep.mubr.f32.mxu0 0.0
      %423 = vmatmul.mubr.f32.gmra.mxu0 %v287
      %v424 = vpop.f32.mrf.mxu0
      %v425 = vadd.f32 0.0, %v424
      %v426 = vpop.f32.mrf.mxu0
      %427 = vmatprep.mubr.f32.mxu0 0.0
      %428 = vmatmul.mubr.f32.gmra.mxu0 %v290
      %v429 = vpop.f32.mrf.mxu0
      %v430 = vadd.f32 0.0, %v429
      %v431 = vpop.f32.mrf.mxu0
      %432 = vmatprep.mubr.f32.mxu0 0.0
      %433 = vmatmul.mubr.f32.gmra.mxu0 %v293
      %v434 = vpop.f32.mrf.mxu0
      %v435 = vadd.f32 0.0, %v434
      %v436 = vpop.f32.mrf.mxu0
      %437 = vmatprep.mubr.f32.mxu0 0.0
      %438 = vmatmul.mubr.f32.gmra.mxu0 %v296
      %v439 = vpop.f32.mrf.mxu0
      %v440 = vadd.f32 0.0, %v439
      %v441 = vpop.f32.mrf.mxu0
      %442 = vdwg.mxu0
      // Predicated region
      $region33: #{_lambda_.3} parent=27 // pred_check
        %p443 = pneg %p207
      $region34: #{_lambda_.3} parent=27 // pred_check_branch
        %445 = sbr.rel (%p443) target = $region36
      $region35: #{_lambda_.3} parent=27 // pred_region
        %v446 = vld [vmem:[#allocation2] sm:$0x1]
        %v447 = vsel %vm249, %v365, 0.0
        %v448 = vsel %vm249, %v370, 0.0
        %v449 = vadd.f32 %v447, %v448
        %v450 = vsel %vm249, %v375, 0.0
        %v451 = vadd.f32 %v449, %v450
        %v452 = vsel %vm249, %v380, 0.0
        %v453 = vadd.f32 %v451, %v452
        %v454 = vsel %vm249, %v385, 0.0
        %v455 = vadd.f32 %v453, %v454
        %v456 = vsel %vm249, %v390, 0.0
        %v457 = vadd.f32 %v455, %v456
        %v458 = vsel %vm249, %v395, 0.0
        %v459 = vadd.f32 %v457, %v458
        %v460 = vsel %vm249, %v400, 0.0
        %v461 = vadd.f32 %v459, %v460
        %v462 = vsel %vm249, %v405, 0.0
        %v463 = vadd.f32 %v461, %v462
        %v464 = vsel %vm249, %v410, 0.0
        %v465 = vadd.f32 %v463, %v464
        %v466 = vsel %vm249, %v415, 0.0
        %v467 = vadd.f32 %v465, %v466
        %v468 = vsel %vm249, %v420, 0.0
        %v469 = vadd.f32 %v467, %v468
        %v470 = vsel %vm249, %v425, 0.0
        %v471 = vadd.f32 %v469, %v470
        %v472 = vsel %vm249, %v430, 0.0
        %v473 = vadd.f32 %v471, %v472
        %v474 = vsel %vm249, %v435, 0.0
        %v475 = vadd.f32 %v473, %v474
        %v476 = vsel %vm249, %v440, 0.0
        %v477 = vadd.f32 %v475, %v476
        %v478 = vrot.slane %v477, 4
        %v479 = vadd.f32 %v477, %v478
        %v480 = vrot.slane %v479, 2
        %v481 = vadd.f32 %v479, %v480
        %v482 = vrot.slane %v481, 1
        %v483 = vadd.f32 %v481, %v482
        %v484 = vadd.f32 %v446, %v483
        %vm485 = vcmask 57344
        %486 = vst.msk [vmem:[#allocation2] sm:$0x1] %vm485, %v484
        %v487 = vld [vmem:[#allocation3] sm:$0x1]
        %v488 = vmul.f32 %v365, %v365
        %v489 = vmul.f32 %v370, %v370
        %v490 = vmul.f32 %v375, %v375
        %v491 = vmul.f32 %v380, %v380
        %v492 = vmul.f32 %v385, %v385
        %v493 = vmul.f32 %v390, %v390
        %v494 = vmul.f32 %v395, %v395
        %v495 = vmul.f32 %v400, %v400
        %v496 = vmul.f32 %v405, %v405
        %v497 = vmul.f32 %v410, %v410
        %v498 = vmul.f32 %v415, %v415
        %v499 = vmul.f32 %v420, %v420
        %v500 = vmul.f32 %v425, %v425
        %v501 = vmul.f32 %v430, %v430
        %v502 = vmul.f32 %v435, %v435
        %v503 = vmul.f32 %v440, %v440
        %v504 = vsel %vm249, %v488, 0.0
        %v505 = vsel %vm249, %v489, 0.0
        %v506 = vadd.f32 %v504, %v505
        %v507 = vsel %vm249, %v490, 0.0
        %v508 = vadd.f32 %v506, %v507
        %v509 = vsel %vm249, %v491, 0.0
        %v510 = vadd.f32 %v508, %v509
        %v511 = vsel %vm249, %v492, 0.0
        %v512 = vadd.f32 %v510, %v511
        %v513 = vsel %vm249, %v493, 0.0
        %v514 = vadd.f32 %v512, %v513
        %v515 = vsel %vm249, %v494, 0.0
        %v516 = vadd.f32 %v514, %v515
        %v517 = vsel %vm249, %v495, 0.0
        %v518 = vadd.f32 %v516, %v517
        %v519 = vsel %vm249, %v496, 0.0
        %v520 = vadd.f32 %v518, %v519
        %v521 = vsel %vm249, %v497, 0.0
        %v522 = vadd.f32 %v520, %v521
        %v523 = vsel %vm249, %v498, 0.0
        %v524 = vadd.f32 %v522, %v523
        %v525 = vsel %vm249, %v499, 0.0
        %v526 = vadd.f32 %v524, %v525
        %v527 = vsel %vm249, %v500, 0.0
        %v528 = vadd.f32 %v526, %v527
        %v529 = vsel %vm249, %v501, 0.0
        %v530 = vadd.f32 %v528, %v529
        %v531 = vsel %vm249, %v502, 0.0
        %v532 = vadd.f32 %v530, %v531
        %v533 = vsel %vm249, %v503, 0.0
        %v534 = vadd.f32 %v532, %v533
        %v535 = vrot.slane %v534, 4
        %v536 = vadd.f32 %v534, %v535
        %v537 = vrot.slane %v536, 2
        %v538 = vadd.f32 %v536, %v537
        %v539 = vrot.slane %v538, 1
        %v540 = vadd.f32 %v538, %v539
        %v541 = vadd.f32 %v487, %v540
        %542 = vst.msk [vmem:[#allocation3] sm:$0x1] %vm485, %v541
      $region36: #{_lambda_.3} parent=27 // pred_fallthru
        _
      %p543 = scmp.eq.s32.totalorder %s19, 1
      %p544 = pnand %p543, %p208
      %p545 = pneg %p544
      // Predicated region
      $region37: #{_lambda_.3} parent=27 // pred_check
        _
      $region38: #{_lambda_.3} parent=27 // pred_check_branch
        %547 = sbr.rel (%p544) target = $region40
      $region39: #{_lambda_.3} parent=27 // pred_region
        %v548 = vld [vmem:[#allocation2] sm:$0x1]
        %v549 = vmul.f32 %v548, 0.0078125
        %v550 = vld [vmem:[#allocation3] sm:$0x1]
        %v551 = vmul.f32 %v550, 0.0078125
        %v552 = vmul.f32 %v549, %v549
        %v553 = vsub.f32 %v551, %v552
        %v554 = vmax.f32 %v553, 0.0
        %vm555 = vcmask 57344
        %556 = vst.msk [vmem:[#allocation2] sm:$0x1] %vm555, %v549
        %v557 = vadd.f32 %v554, 1e-05
        %v558 = vrsqrt.pop %v557
        %559 = vst.msk [vmem:[#allocation3] sm:$0x1] %vm555, %v558
      $region40: #{_lambda_.3} parent=27 // pred_fallthru
        _
      // Predicated region
      $region41: #{_lambda_.3} parent=27 // pred_check
        %p560 = pneg %p543
      $region42: #{_lambda_.3} parent=27 // pred_check_branch
        %562 = sbr.rel (%p560) target = $region44
      $region43: #{_lambda_.3} parent=27 // pred_region
        %v563 = vld [vmem:[#allocation2] sm:$0x1]
        %v565 = vlaneseq
        %v566 = vshrl.u32 %v565, 7
        %v567 = vsub.s32 0, %v566
        %v568 = vrot.slane %v563, %v567
        %v570 = vsub.f32 %v365, %v568
        %v571 = vsub.f32 %v370, %v568
        %v572 = vsub.f32 %v375, %v568
        %v573 = vsub.f32 %v380, %v568
        %v574 = vsub.f32 %v385, %v568
        %v575 = vsub.f32 %v390, %v568
        %v576 = vsub.f32 %v395, %v568
        %v577 = vsub.f32 %v400, %v568
        %v578 = vsub.f32 %v405, %v568
        %v579 = vsub.f32 %v410, %v568
        %v580 = vsub.f32 %v415, %v568
        %v581 = vsub.f32 %v420, %v568
        %v582 = vsub.f32 %v425, %v568
        %v583 = vsub.f32 %v430, %v568
        %v584 = vsub.f32 %v435, %v568
        %v585 = vsub.f32 %v440, %v568
        %v586 = vld [vmem:[#allocation3] sm:$0x1]
        %v588 = vlaneseq
        %v589 = vshrl.u32 %v588, 7
        %v590 = vsub.s32 0, %v589
        %v591 = vrot.slane %v586, %v590
        %v593 = vmul.f32 %v570, %v591
        %v594 = vmul.f32 %v571, %v591
        %v595 = vmul.f32 %v572, %v591
        %v596 = vmul.f32 %v573, %v591
        %v597 = vmul.f32 %v574, %v591
        %v598 = vmul.f32 %v575, %v591
        %v599 = vmul.f32 %v576, %v591
        %v600 = vmul.f32 %v577, %v591
        %v601 = vmul.f32 %v578, %v591
        %v602 = vmul.f32 %v579, %v591
        %v603 = vmul.f32 %v580, %v591
        %v604 = vmul.f32 %v581, %v591
        %v605 = vmul.f32 %v582, %v591
        %v606 = vmul.f32 %v583, %v591
        %v607 = vmul.f32 %v584, %v591
        %v608 = vmul.f32 %v585, %v591
        %609 = vst.msk [vmem:[%s205] sm:$0xff] %vm249, %v593
        %610 = vst.msk [vmem:[%s205 + $0x8] sm:$0xff] %vm249, %v594
        %611 = vst.msk [vmem:[%s205 + $0x10] sm:$0xff] %vm249, %v595
        %612 = vst.msk [vmem:[%s205 + $0x18] sm:$0xff] %vm249, %v596
        %613 = vst.msk [vmem:[%s205 + $0x20] sm:$0xff] %vm249, %v597
        %614 = vst.msk [vmem:[%s205 + $0x28] sm:$0xff] %vm249, %v598
        %615 = vst.msk [vmem:[%s205 + $0x30] sm:$0xff] %vm249, %v599
        %616 = vst.msk [vmem:[%s205 + $0x38] sm:$0xff] %vm249, %v600
        %617 = vst.msk [vmem:[%s205 + $0x40] sm:$0xff] %vm249, %v601
        %618 = vst.msk [vmem:[%s205 + $0x48] sm:$0xff] %vm249, %v602
        %619 = vst.msk [vmem:[%s205 + $0x50] sm:$0xff] %vm249, %v603
        %620 = vst.msk [vmem:[%s205 + $0x58] sm:$0xff] %vm249, %v604
        %621 = vst.msk [vmem:[%s205 + $0x60] sm:$0xff] %vm249, %v605
        %622 = vst.msk [vmem:[%s205 + $0x68] sm:$0xff] %vm249, %v606
        %623 = vst.msk [vmem:[%s205 + $0x70] sm:$0xff] %vm249, %v607
        %624 = vst.msk [vmem:[%s205 + $0x78] sm:$0xff] %vm249, %v608
      $region44: #{_lambda_.3} parent=27 // pred_fallthru
        _
      %s625 = smul.u32 16, %s20
      %p626 = scmp.lt.s32.totalorder %s18, 1
      %s627 = scalar_select %p626, %s18, 1
      %p628 = scmp.lt.s32.totalorder %s625, 15
      %s629 = scalar_select %p628, %s625, 15
      %s630 = smul.addr %s627, 16
      %s631 = sadd.s32 %s629, %s630
      %s632 = smul.addr %s631, 8
      %s633 = scalar_lea.vmem %s2, %s632
      // Predicated region
      $region45: #{_lambda_.3} parent=27 // pred_check
        %p634 = pneg %p106
      $region46: #{_lambda_.3} parent=27 // pred_check_branch
        %636 = sbr.rel (%p634) target = $region48
      $region47: #{_lambda_.3} parent=27 // pred_region
        %s637 = smul.u32 16, %s20
      $region48: #{_lambda_.3} parent=27 // pred_fallthru
        _
    $region28: #{_lambda_.3} parent=5 // pred_fallthru
      _
    %p638 = scmp.le.s32.totalorder 2, %s8
    // Predicated region
    $region49: #{_lambda_.3} parent=5 // pred_check
      %p639 = pneg %p638
    $region50: #{_lambda_.3} parent=5 // pred_check_branch
      %641 = sbr.rel (%p639) target = $region52
    $region51: #{_lambda_.3} parent=5 // pred_region
      %s642 = ssub.s32 %s8, 2
      // Predicated region
      $region53: #{_lambda_.3} parent=51 // pred_check
        %p643 = pneg %p112
      $region54: #{_lambda_.3} parent=51 // pred_check_branch
        %645 = sbr.rel (%p643) target = $region56
      $region55: #{_lambda_.3} parent=51 // pred_region
        %s646 = smul.u32 16, %s23
        %p647 = scmp.lt.s32.totalorder %s21, 1
        %s648 = scalar_select %p647, %s21, 1
        %p649 = scmp.lt.s32.totalorder %s646, 15
        %s650 = scalar_select %p649, %s646, 15
        %s651 = smul.addr %s648, 16
        %s652 = sadd.s32 %s650, %s651
        %s653 = smul.addr %s652, 8
        %s654 = scalar_lea.vmem %s2, %s653
      $region56: #{_lambda_.3} parent=51 // pred_fallthru
        _
    $region52: #{_lambda_.3} parent=5 // pred_fallthru
      _
  $region6: #{_lambda_.3} parent=0 // loop_footer
    %s12 = sadd.s32 1, %s8
  $region7: #{_lambda_.3} parent=0 // loop_footer_branch
    %7 = sbr.rel target = $region3
  $region8: #{_lambda_.3} parent=0 // loop_exit
    _

// kernel: _lambda_.4
$region0: #{_lambda_.4}
  #allocation0 [shape = 'u32[]', space=smem, size = 0x4, offset = 0x4, fixed_abs, tag = 'smem constant byte address 0x4 - core index']
  #allocation1 [shape = 'u32[144,128]{1,0:T(1,128)}', space=vmem, size = 0x12000, scoped, tag = 'internal scratch']
  #allocation2 [shape = 'f32[2,10,24,8]{3,2,1,0:T(8,128)}', space=vmem, size = 0x3c000, scoped, tag = 'scratch operand']
  %s0 = inlined_call_operand.vmem [shape: f32[2,2,8,8,8], index: 0, kind: input, shape index: {}]
  %s1 = inlined_call_operand.vmem [shape: f32[2,3,3,8], index: 1, kind: input, shape index: {}]
  %s2 = inlined_call_operand.vmem [shape: f32[2,8,8], index: 2, kind: input, shape index: {}]
  %s3 = inlined_call_operand.vmem [shape: f32[2,3,3,8], index: 3, kind: input, shape index: {}]
  %s4 = inlined_call_operand.vmem [shape: f32[2,8,8], index: 4, kind: input, shape index: {}]
  %s5 = inlined_call_operand.vmem [shape: f32[2,2,8,8,8], index: 5, kind: output, shape index: {}]
  %s6 = sld [smem:[#allocation0]]
  $region53: #{_lambda_.4} parent=0
    _
  %s8 = ssub.s32 1, %s6
  %s9 = scalar_select 0, %s8, %s6
  loop: start=0, step=1, limit=4
  $region2: #{_lambda_.4} parent=0 // loop_pre_header
    _
  $region3: #{_lambda_.4} parent=0 // loop_header
    %s11 = sphi 0, %s15
    %p12 = scmp.ge.s32.totalorder %s11, 4
    %s21 = sphi 0, %s23
    %s24 = sphi 0, %s21
    %s25 = sphi 0, %s24
    %s41 = sphi 0, %s25
    %s47 = sphi 0, %s49
    %s50 = sphi 0, %s47
    %s51 = sphi 0, %s50
    %s67 = sphi 0, %s51
    %s73 = sphi 0, %s75
    %s76 = sphi 0, %s73
    %s77 = sphi 0, %s76
    %s93 = sphi 0, %s77
    %s99 = sphi 0, %s101
    %s102 = sphi 0, %s99
    %s103 = sphi 0, %s102
    %s119 = sphi 0, %s103
    %s125 = sphi 0, %s127
    %s128 = sphi 0, %s125
    %s129 = sphi 0, %s128
    %s145 = sphi 0, %s129
    %s151 = sphi 0, %s153
    %s154 = sphi 0, %s151
    %s155 = sphi 0, %s154
    %s171 = sphi 0, %s155
  $region4: #{_lambda_.4} parent=0 // loop_header_branch
    %14 = sbr.rel (%p12) target = $region8
  $region5: #{_lambda_.4} parent=0 // loop_body
    %s16 = ssub.s32 %s11, 1
    %s17 = ssub.s32 %s11, 2
    %s18 = sadd.s32 %s11, 1
    %s19 = ssub.s32 %s11, %s18
    %p20 = scmp.eq.s32.totalorder %s19, 0
    %s22 = sadd.s32 %s21, 1
    %s23 = scalar_select %p20, %s21, %s22
    %p26 = pneg %p20
    %p27 = scmp.eq.s32.totalorder %s11, 1
    %p28 = por %p26, %p27
    %p29 = scmp.ne.s32.totalorder %s21, %s24
    %p30 = scmp.eq.s32.totalorder %s11, 0
    %p31 = por %p29, %p30
    %p32 = scmp.ne.s32.totalorder %s21, %s24
    %p33 = scmp.eq.s32.totalorder %s16, 1
    %p34 = por %p32, %p33
    %p35 = scmp.ne.s32.totalorder %s24, %s25
    %p36 = scmp.eq.s32.totalorder %s16, 0
    %p37 = por %p35, %p36
    %p38 = scmp.ne.s32.totalorder %s24, %s25
    %p39 = scmp.eq.s32.totalorder %s17, 1
    %p40 = por %p38, %p39
    %p42 = scmp.ne.s32.totalorder %s25, %s41
    %p43 = scmp.eq.s32.totalorder %s17, 0
    %p44 = por %p42, %p43
    %s45 = ssub.s32 %s11, %s18
    %p46 = scmp.eq.s32.totalorder %s45, 0
    %s48 = sadd.s32 %s47, 1
    %s49 = scalar_select %p46, %s47, %s48
    %p52 = pneg %p46
    %p53 = scmp.eq.s32.totalorder %s11, 1
    %p54 = por %p52, %p53
    %p55 = scmp.ne.s32.totalorder %s47, %s50
    %p56 = scmp.eq.s32.totalorder %s11, 0
    %p57 = por %p55, %p56
    %p58 = scmp.ne.s32.totalorder %s47, %s50
    %p59 = scmp.eq.s32.totalorder %s16, 1
    %p60 = por %p58, %p59
    %p61 = scmp.ne.s32.totalorder %s50, %s51
    %p62 = scmp.eq.s32.totalorder %s16, 0
    %p63 = por %p61, %p62
    %p64 = scmp.ne.s32.totalorder %s50, %s51
    %p65 = scmp.eq.s32.totalorder %s17, 1
    %p66 = por %p64, %p65
    %p68 = scmp.ne.s32.totalorder %s51, %s67
    %p69 = scmp.eq.s32.totalorder %s17, 0
    %p70 = por %p68, %p69
    %s71 = ssub.s32 %s11, %s18
    %p72 = scmp.eq.s32.totalorder %s71, 0
    %s74 = sadd.s32 %s73, 1
    %s75 = scalar_select %p72, %s73, %s74
    %p78 = pneg %p72
    %p79 = scmp.eq.s32.totalorder %s11, 1
    %p80 = por %p78, %p79
    %p81 = scmp.ne.s32.totalorder %s73, %s76
    %p82 = scmp.eq.s32.totalorder %s11, 0
    %p83 = por %p81, %p82
    %p84 = scmp.ne.s32.totalorder %s73, %s76
    %p85 = scmp.eq.s32.totalorder %s16, 1
    %p86 = por %p84, %p85
    %p87 = scmp.ne.s32.totalorder %s76, %s77
    %p88 = scmp.eq.s32.totalorder %s16, 0
    %p89 = por %p87, %p88
    %p90 = scmp.ne.s32.totalorder %s76, %s77
    %p91 = scmp.eq.s32.totalorder %s17, 1
    %p92 = por %p90, %p91
    %p94 = scmp.ne.s32.totalorder %s77, %s93
    %p95 = scmp.eq.s32.totalorder %s17, 0
    %p96 = por %p94, %p95
    %s97 = ssub.s32 %s11, %s18
    %p98 = scmp.eq.s32.totalorder %s97, 0
    %s100 = sadd.s32 %s99, 1
    %s101 = scalar_select %p98, %s99, %s100
    %p104 = pneg %p98
    %p105 = scmp.eq.s32.totalorder %s11, 1
    %p106 = por %p104, %p105
    %p107 = scmp.ne.s32.totalorder %s99, %s102
    %p108 = scmp.eq.s32.totalorder %s11, 0
    %p109 = por %p107, %p108
    %p110 = scmp.ne.s32.totalorder %s99, %s102
    %p111 = scmp.eq.s32.totalorder %s16, 1
    %p112 = por %p110, %p111
    %p113 = scmp.ne.s32.totalorder %s102, %s103
    %p114 = scmp.eq.s32.totalorder %s16, 0
    %p115 = por %p113, %p114
    %p116 = scmp.ne.s32.totalorder %s102, %s103
    %p117 = scmp.eq.s32.totalorder %s17, 1
    %p118 = por %p116, %p117
    %p120 = scmp.ne.s32.totalorder %s103, %s119
    %p121 = scmp.eq.s32.totalorder %s17, 0
    %p122 = por %p120, %p121
    %s123 = ssub.s32 %s11, %s18
    %p124 = scmp.eq.s32.totalorder %s123, 0
    %s126 = sadd.s32 %s125, 1
    %s127 = scalar_select %p124, %s125, %s126
    %p130 = pneg %p124
    %p131 = scmp.eq.s32.totalorder %s11, 1
    %p132 = por %p130, %p131
    %p133 = scmp.ne.s32.totalorder %s125, %s128
    %p134 = scmp.eq.s32.totalorder %s11, 0
    %p135 = por %p133, %p134
    %p136 = scmp.ne.s32.totalorder %s125, %s128
    %p137 = scmp.eq.s32.totalorder %s16, 1
    %p138 = por %p136, %p137
    %p139 = scmp.ne.s32.totalorder %s128, %s129
    %p140 = scmp.eq.s32.totalorder %s16, 0
    %p141 = por %p139, %p140
    %p142 = scmp.ne.s32.totalorder %s128, %s129
    %p143 = scmp.eq.s32.totalorder %s17, 1
    %p144 = por %p142, %p143
    %p146 = scmp.ne.s32.totalorder %s129, %s145
    %p147 = scmp.eq.s32.totalorder %s17, 0
    %p148 = por %p146, %p147
    %s149 = ssub.s32 %s11, %s18
    %p150 = scmp.eq.s32.totalorder %s149, 0
    %s152 = sadd.s32 %s151, 1
    %s153 = scalar_select %p150, %s151, %s152
    %p156 = pneg %p150
    %p157 = scmp.eq.s32.totalorder %s11, 1
    %p158 = por %p156, %p157
    %p159 = scmp.ne.s32.totalorder %s151, %s154
    %p160 = scmp.eq.s32.totalorder %s11, 0
    %p161 = por %p159, %p160
    %p162 = scmp.ne.s32.totalorder %s151, %s154
    %p163 = scmp.eq.s32.totalorder %s16, 1
    %p164 = por %p162, %p163
    %p165 = scmp.ne.s32.totalorder %s154, %s155
    %p166 = scmp.eq.s32.totalorder %s16, 0
    %p167 = por %p165, %p166
    %p168 = scmp.ne.s32.totalorder %s154, %s155
    %p169 = scmp.eq.s32.totalorder %s17, 1
    %p170 = por %p168, %p169
    %p172 = scmp.ne.s32.totalorder %s155, %s171
    %p173 = scmp.eq.s32.totalorder %s17, 0
    %p174 = por %p172, %p173
    %p175 = scmp.le.s32.totalorder 1, %s11
    %p176 = scmp.lt.s32.totalorder %s11, 3
    %p177 = pnand %p175, %p176
    %p178 = pneg %p177
    // Predicated region
    $region9: #{_lambda_.4} parent=5 // pred_check
      _
    $region10: #{_lambda_.4} parent=5 // pred_check_branch
      %180 = sbr.rel (%p177) target = $region12
    $region11: #{_lambda_.4} parent=5 // pred_region
      %s181 = ssub.s32 %s11, 1
    $region12: #{_lambda_.4} parent=5 // pred_fallthru
      _
    %p182 = scmp.lt.s32.totalorder %s11, 2
    // Predicated region
    $region13: #{_lambda_.4} parent=5 // pred_check
      %p183 = pneg %p182
    $region14: #{_lambda_.4} parent=5 // pred_check_branch
      %185 = sbr.rel (%p183) target = $region16
    $region15: #{_lambda_.4} parent=5 // pred_region
      // Predicated region
      $region17: #{_lambda_.4} parent=15 // pred_check
        %p186 = pneg %p31
      $region18: #{_lambda_.4} parent=15 // pred_check_branch
        %188 = sbr.rel (%p186) target = $region20
      $region19: #{_lambda_.4} parent=15 // pred_region
        %p189 = scmp.lt.s32.totalorder %s11, 1
        %s190 = scalar_select %p189, %s11, 1
        %s191 = smul.addr %s190, 16
        %s192 = smul.addr %s191, 8
        %s193 = scalar_lea.vmem %s0, %s192
      $region20: #{_lambda_.4} parent=15 // pred_fallthru
        _
      // Predicated region
      $region21: #{_lambda_.4} parent=15 // pred_check
        %p194 = pneg %p57
      $region22: #{_lambda_.4} parent=15 // pred_check_branch
        %196 = sbr.rel (%p194) target = $region24
      $region23: #{_lambda_.4} parent=15 // pred_region
        %p197 = scmp.lt.s32.totalorder %s11, 1
        %s198 = scalar_select %p197, %s11, 1
        %s199 = smul.addr %s198, 3
        %s200 = smul.addr %s199, 4
        %s201 = scalar_lea.vmem %s1, %s200
      $region24: #{_lambda_.4} parent=15 // pred_fallthru
        _
      // Predicated region
      $region25: #{_lambda_.4} parent=15 // pred_check
        %p202 = pneg %p83
      $region26: #{_lambda_.4} parent=15 // pred_check_branch
        %204 = sbr.rel (%p202) target = $region28
      $region27: #{_lambda_.4} parent=15 // pred_region
        %p205 = scmp.lt.s32.totalorder %s11, 1
        %s206 = scalar_select %p205, %s11, 1
        %s207 = smul.addr %s206, 8
        %s208 = scalar_lea.vmem %s2, %s207
      $region28: #{_lambda_.4} parent=15 // pred_fallthru
        _
      // Predicated region
      $region29: #{_lambda_.4} parent=15 // pred_check
        %p209 = pneg %p109
      $region30: #{_lambda_.4} parent=15 // pred_check_branch
        %211 = sbr.rel (%p209) target = $region32
      $region31: #{_lambda_.4} parent=15 // pred_region
        %p212 = scmp.lt.s32.totalorder %s11, 1
        %s213 = scalar_select %p212, %s11, 1
        %s214 = smul.addr %s213, 3
        %s215 = smul.addr %s214, 4
        %s216 = scalar_lea.vmem %s3, %s215
      $region32: #{_lambda_.4} parent=15 // pred_fallthru
        _
      // Predicated region
      $region33: #{_lambda_.4} parent=15 // pred_check
        %p217 = pneg %p135
      $region34: #{_lambda_.4} parent=15 // pred_check_branch
        %219 = sbr.rel (%p217) target = $region36
      $region35: #{_lambda_.4} parent=15 // pred_region
        %p220 = scmp.lt.s32.totalorder %s11, 1
        %s221 = scalar_select %p220, %s11, 1
        %s222 = smul.addr %s221, 8
        %s223 = scalar_lea.vmem %s4, %s222
      $region36: #{_lambda_.4} parent=15 // pred_fallthru
        _
    $region16: #{_lambda_.4} parent=5 // pred_fallthru
      _
    %p224 = scmp.le.s32.totalorder 1, %s11
    %p225 = scmp.lt.s32.totalorder %s11, 3
    %p226 = pnand %p224, %p225
    %p227 = pneg %p226
    // Predicated region
    $region37: #{_lambda_.4} parent=5 // pred_check
      _
    $region38: #{_lambda_.4} parent=5 // pred_check_branch
      %229 = sbr.rel (%p226) target = $region40
    $region39: #{_lambda_.4} parent=5 // pred_region
      %s230 = ssub.s32 %s11, 1
      %p231 = scmp.lt.s32.totalorder %s16, 1
      %s232 = scalar_select %p231, %s16, 1
      %s233 = smul.addr %s232, 16
      %s234 = smul.addr %s233, 8
      %s235 = scalar_lea.vmem %s0, %s234
      %p236 = pneg %p37
      %p237 = pneg %p34
      %p238 = scmp.lt.s32.totalorder %s16, 1
      %s239 = scalar_select %p238, %s16, 1
      %s240 = smul.addr %s239, 3
      %s241 = smul.addr %s240, 4
      %s242 = scalar_lea.vmem %s1, %s241
      %p243 = pneg %p63
      %p244 = pneg %p60
      %p245 = scmp.lt.s32.totalorder %s16, 1
      %s246 = scalar_select %p245, %s16, 1
      %s247 = smul.addr %s246, 8
      %s248 = scalar_lea.vmem %s2, %s247
      %p249 = pneg %p89
      %p250 = pneg %p86
      %p251 = scmp.lt.s32.totalorder %s16, 1
      %s252 = scalar_select %p251, %s16, 1
      %s253 = smul.addr %s252, 3
      %s254 = smul.addr %s253, 4
      %s255 = scalar_lea.vmem %s3, %s254
      %p256 = pneg %p115
      %p257 = pneg %p112
      %p258 = scmp.lt.s32.totalorder %s16, 1
      %s259 = scalar_select %p258, %s16, 1
      %s260 = smul.addr %s259, 8
      %s261 = scalar_lea.vmem %s4, %s260
      %p262 = pneg %p141
      %p263 = pneg %p138
      %p264 = pneg %p167
      %p265 = pneg %p164
      %p266 = scmp.lt.s32.totalorder %s16, 1
      %s267 = scalar_select %p266, %s16, 1
      %s268 = smul.addr %s267, 16
      %s269 = smul.addr %s268, 8
      %s270 = scalar_lea.vmem %s5, %s269
      %p271 = scmp.lt.s32.totalorder %s16, 1
      %s272 = scalar_select %p271, %s16, 1
      %s273 = smul.addr %s272, 16
      %s274 = smul.addr %s273, 8
      %s275 = scalar_lea.vmem %s0, %s274
      %p276 = scmp.lt.s32.totalorder %s16, 1
      %s277 = scalar_select %p276, %s16, 1
      %s278 = smul.addr %s277, 3
      %s279 = smul.addr %s278, 4
      %s280 = scalar_lea.vmem %s1, %s279
      %p281 = scmp.lt.s32.totalorder %s16, 1
      %s282 = scalar_select %p281, %s16, 1
      %s283 = smul.addr %s282, 8
      %s284 = scalar_lea.vmem %s2, %s283
      %p285 = scmp.lt.s32.totalorder %s16, 1
      %s286 = scalar_select %p285, %s16, 1
      %s287 = smul.addr %s286, 3
      %s288 = smul.addr %s287, 4
      %s289 = scalar_lea.vmem %s3, %s288
      %p290 = scmp.lt.s32.totalorder %s16, 1
      %s291 = scalar_select %p290, %s16, 1
      %s292 = smul.addr %s291, 8
      %s293 = scalar_lea.vmem %s4, %s292
      %p294 = scmp.lt.s32.totalorder %s16, 1
      %s295 = scalar_select %p294, %s16, 1
      %s296 = smul.addr %s295, 16
      %s297 = smul.addr %s296, 8
      %s298 = scalar_lea.vmem %s5, %s297
      %vm299 = vcmask 64512
      %300 = vst.msk [vmem:[#allocation2] sm:$0xff] %vm299, 0.0
      %301 = vst.msk [vmem:[#allocation2 + $0x8] sm:$0xff] %vm299, 0.0
      %302 = vst.msk [vmem:[#allocation2 + $0x10] sm:$0xff] %vm299, 0.0
      %303 = vst.msk [vmem:[#allocation2 + $0x18] sm:$0xff] %vm299, 0.0
      %304 = vst.msk [vmem:[#allocation2 + $0x20] sm:$0xff] %vm299, 0.0
      %305 = vst.msk [vmem:[#allocation2 + $0x28] sm:$0xff] %vm299, 0.0
      %306 = vst.msk [vmem:[#allocation2 + $0x30] sm:$0xff] %vm299, 0.0
      %307 = vst.msk [vmem:[#allocation2 + $0x38] sm:$0xff] %vm299, 0.0
      %308 = vst.msk [vmem:[#allocation2 + $0x40] sm:$0xff] %vm299, 0.0
      %309 = vst.msk [vmem:[#allocation2 + $0x48] sm:$0xff] %vm299, 0.0
      %310 = vst.msk [vmem:[#allocation2 + $0x50] sm:$0xff] %vm299, 0.0
      %311 = vst.msk [vmem:[#allocation2 + $0x58] sm:$0xff] %vm299, 0.0
      %312 = vst.msk [vmem:[#allocation2 + $0x60] sm:$0xff] %vm299, 0.0
      %313 = vst.msk [vmem:[#allocation2 + $0x68] sm:$0xff] %vm299, 0.0
      %314 = vst.msk [vmem:[#allocation2 + $0x70] sm:$0xff] %vm299, 0.0
      %315 = vst.msk [vmem:[#allocation2 + $0x78] sm:$0xff] %vm299, 0.0
      %316 = vst.msk [vmem:[#allocation2 + $0x80] sm:$0xff] %vm299, 0.0
      %317 = vst.msk [vmem:[#allocation2 + $0x88] sm:$0xff] %vm299, 0.0
      %318 = vst.msk [vmem:[#allocation2 + $0x90] sm:$0xff] %vm299, 0.0
      %319 = vst.msk [vmem:[#allocation2 + $0x98] sm:$0xff] %vm299, 0.0
      %320 = vst.msk [vmem:[#allocation2 + $0xa0] sm:$0xff] %vm299, 0.0
      %321 = vst.msk [vmem:[#allocation2 + $0xa8] sm:$0xff] %vm299, 0.0
      %322 = vst.msk [vmem:[#allocation2 + $0xb0] sm:$0xff] %vm299, 0.0
      %323 = vst.msk [vmem:[#allocation2 + $0xb8] sm:$0xff] %vm299, 0.0
      %324 = vst.msk [vmem:[#allocation2 + $0xc0] sm:$0xff] %vm299, 0.0
      %325 = vst.msk [vmem:[#allocation2 + $0xc8] sm:$0xff] %vm299, 0.0
      %326 = vst.msk [vmem:[#allocation2 + $0xd0] sm:$0xff] %vm299, 0.0
      %327 = vst.msk [vmem:[#allocation2 + $0xd8] sm:$0xff] %vm299, 0.0
      %328 = vst.msk [vmem:[#allocation2 + $0xe0] sm:$0xff] %vm299, 0.0
      %329 = vst.msk [vmem:[#allocation2 + $0xe8] sm:$0xff] %vm299, 0.0
      %330 = vst.msk [vmem:[#allocation2 + $0xf0] sm:$0xff] %vm299, 0.0
      %331 = vst.msk [vmem:[#allocation2 + $0xf8] sm:$0xff] %vm299, 0.0
      %332 = vst.msk [vmem:[#allocation2 + $0x100] sm:$0xff] %vm299, 0.0
      %333 = vst.msk [vmem:[#allocation2 + $0x108] sm:$0xff] %vm299, 0.0
      %334 = vst.msk [vmem:[#allocation2 + $0x110] sm:$0xff] %vm299, 0.0
      %335 = vst.msk [vmem:[#allocation2 + $0x118] sm:$0xff] %vm299, 0.0
      %336 = vst.msk [vmem:[#allocation2 + $0x120] sm:$0xff] %vm299, 0.0
      %337 = vst.msk [vmem:[#allocation2 + $0x128] sm:$0xff] %vm299, 0.0
      %338 = vst.msk [vmem:[#allocation2 + $0x130] sm:$0xff] %vm299, 0.0
      %339 = vst.msk [vmem:[#allocation2 + $0x138] sm:$0xff] %vm299, 0.0
      %340 = vst.msk [vmem:[#allocation2 + $0x140] sm:$0xff] %vm299, 0.0
      %341 = vst.msk [vmem:[#allocation2 + $0x148] sm:$0xff] %vm299, 0.0
      %342 = vst.msk [vmem:[#allocation2 + $0x150] sm:$0xff] %vm299, 0.0
      %343 = vst.msk [vmem:[#allocation2 + $0x158] sm:$0xff] %vm299, 0.0
      %344 = vst.msk [vmem:[#allocation2 + $0x160] sm:$0xff] %vm299, 0.0
      %345 = vst.msk [vmem:[#allocation2 + $0x168] sm:$0xff] %vm299, 0.0
      %346 = vst.msk [vmem:[#allocation2 + $0x170] sm:$0xff] %vm299, 0.0
      %347 = vst.msk [vmem:[#allocation2 + $0x178] sm:$0xff] %vm299, 0.0
      %348 = vst.msk [vmem:[#allocation2 + $0x180] sm:$0xff] %vm299, 0.0
      %349 = vst.msk [vmem:[#allocation2 + $0x188] sm:$0xff] %vm299, 0.0
      %350 = vst.msk [vmem:[#allocation2 + $0x190] sm:$0xff] %vm299, 0.0
      %351 = vst.msk [vmem:[#allocation2 + $0x198] sm:$0xff] %vm299, 0.0
      %352 = vst.msk [vmem:[#allocation2 + $0x1a0] sm:$0xff] %vm299, 0.0
      %353 = vst.msk [vmem:[#allocation2 + $0x1a8] sm:$0xff] %vm299, 0.0
      %354 = vst.msk [vmem:[#allocation2 + $0x1b0] sm:$0xff] %vm299, 0.0
      %355 = vst.msk [vmem:[#allocation2 + $0x1b8] sm:$0xff] %vm299, 0.0
      %356 = vst.msk [vmem:[#allocation2 + $0x1c0] sm:$0xff] %vm299, 0.0
      %357 = vst.msk [vmem:[#allocation2 + $0x1c8] sm:$0xff] %vm299, 0.0
      %358 = vst.msk [vmem:[#allocation2 + $0x1d0] sm:$0xff] %vm299, 0.0
      %359 = vst.msk [vmem:[#allocation2 + $0x1d8] sm:$0xff] %vm299, 0.0
      %v360 = vld [vmem:[%s275] sm:$0xff]
      %v361 = vld [vmem:[%s275 + $0x8] sm:$0xff]
      %v362 = vld [vmem:[%s275 + $0x10] sm:$0xff]
      %v363 = vld [vmem:[%s275 + $0x18] sm:$0xff]
      %v364 = vld [vmem:[%s275 + $0x20] sm:$0xff]
      %v365 = vld [vmem:[%s275 + $0x28] sm:$0xff]
      %v366 = vld [vmem:[%s275 + $0x30] sm:$0xff]
      %v367 = vld [vmem:[%s275 + $0x38] sm:$0xff]
      %v368 = vld [vmem:[%s275 + $0x40] sm:$0xff]
      %v369 = vld [vmem:[%s275 + $0x48] sm:$0xff]
      %v370 = vld [vmem:[%s275 + $0x50] sm:$0xff]
      %v371 = vld [vmem:[%s275 + $0x58] sm:$0xff]
      %v372 = vld [vmem:[%s275 + $0x60] sm:$0xff]
      %v373 = vld [vmem:[%s275 + $0x68] sm:$0xff]
      %v374 = vld [vmem:[%s275 + $0x70] sm:$0xff]
      %v375 = vld [vmem:[%s275 + $0x78] sm:$0xff]
      %v376 = vld [vmem:[%s280] sm:$0x7]
      %v377 = vld [vmem:[%s280 + $0x4] sm:$0x7]
      %v378 = vld [vmem:[%s280 + $0x8] sm:$0x7]
      %v379 = vmax.f32 %v360, 0.0
      %v380 = vmax.f32 %v361, 0.0
      %v381 = vmax.f32 %v362, 0.0
      %v382 = vmax.f32 %v363, 0.0
      %v383 = vmax.f32 %v364, 0.0
      %v384 = vmax.f32 %v365, 0.0
      %v385 = vmax.f32 %v366, 0.0
      %v386 = vmax.f32 %v367, 0.0
      %v387 = vmax.f32 %v368, 0.0
      %v388 = vmax.f32 %v369, 0.0
      %v389 = vmax.f32 %v370, 0.0
      %v390 = vmax.f32 %v371, 0.0
      %v391 = vmax.f32 %v372, 0.0
      %v392 = vmax.f32 %v373, 0.0
      %v393 = vmax.f32 %v374, 0.0
      %v394 = vmax.f32 %v375, 0.0
      %s395 = scalar_lea.vmem [#allocation2], 24
      %396 = vst.msk [vmem:[%s395 + $0x8] sm:$0xff] %vm299, %v379
      %397 = vst.msk [vmem:[%s395 + $0x20] sm:$0xff] %vm299, %v380
      %398 = vst.msk [vmem:[%s395 + $0x38] sm:$0xff] %vm299, %v381
      %399 = vst.msk [vmem:[%s395 + $0x50] sm:$0xff] %vm299, %v382
      %400 = vst.msk [vmem:[%s395 + $0x68] sm:$0xff] %vm299, %v383
      %401 = vst.msk [vmem:[%s395 + $0x80] sm:$0xff] %vm299, %v384
      %402 = vst.msk [vmem:[%s395 + $0x98] sm:$0xff] %vm299, %v385
      %403 = vst.msk [vmem:[%s395 + $0xb0] sm:$0xff] %vm299, %v386
      %404 = vst.msk [vmem:[%s395 + $0xf8] sm:$0xff] %vm299, %v387
      %405 = vst.msk [vmem:[%s395 + $0x110] sm:$0xff] %vm299, %v388
      %406 = vst.msk [vmem:[%s395 + $0x128] sm:$0xff] %vm299, %v389
      %407 = vst.msk [vmem:[%s395 + $0x140] sm:$0xff] %vm299, %v390
      %408 = vst.msk [vmem:[%s395 + $0x158] sm:$0xff] %vm299, %v391
      %409 = vst.msk [vmem:[%s395 + $0x170] sm:$0xff] %vm299, %v392
      %410 = vst.msk [vmem:[%s395 + $0x188] sm:$0xff] %vm299, %v393
      %411 = vst.msk [vmem:[%s395 + $0x1a0] sm:$0xff] %vm299, %v394
      %v412 = vld [vmem:[#allocation2 + $0x7] sm:$0xff]
      %v413 = vld [vmem:[#allocation2 + $0x1f] sm:$0xff]
      %v414 = vld [vmem:[#allocation2 + $0x37] sm:$0xff]
      %v415 = vld [vmem:[#allocation2 + $0x4f] sm:$0xff]
      %v416 = vld [vmem:[#allocation2 + $0x67] sm:$0xff]
      %v417 = vld [vmem:[#allocation2 + $0x7f] sm:$0xff]
      %v418 = vld [vmem:[#allocation2 + $0x97] sm:$0xff]
      %v419 = vld [vmem:[#allocation2 + $0xaf] sm:$0xff]
      %v420 = vld [vmem:[#allocation2 + $0xf7] sm:$0xff]
      %v421 = vld [vmem:[#allocation2 + $0x10f] sm:$0xff]
      %v422 = vld [vmem:[#allocation2 + $0x127] sm:$0xff]
      %v423 = vld [vmem:[#allocation2 + $0x13f] sm:$0xff]
      %v424 = vld [vmem:[#allocation2 + $0x157] sm:$0xff]
      %v425 = vld [vmem:[#allocation2 + $0x16f] sm:$0xff]
      %v426 = vld [vmem:[#allocation2 + $0x187] sm:$0xff]
      %v427 = vld [vmem:[#allocation2 + $0x19f] sm:$0xff]
      %v428 = vlaneseq
      %v429 = vshrl.u32 %v428, 7
      %v430 = vsub.s32 0, %v429
      %v431 = vrot.slane %v376, %v430
      %v432 = vmul.f32 %v412, %v431
      %v433 = vmul.f32 %v413, %v431
      %v434 = vmul.f32 %v414, %v431
      %v435 = vmul.f32 %v415, %v431
      %v436 = vmul.f32 %v416, %v431
      %v437 = vmul.f32 %v417, %v431
      %v438 = vmul.f32 %v418, %v431
      %v439 = vmul.f32 %v419, %v431
      %v440 = vmul.f32 %v420, %v431
      %v441 = vmul.f32 %v421, %v431
      %v442 = vmul.f32 %v422, %v431
      %v443 = vmul.f32 %v423, %v431
      %v444 = vmul.f32 %v424, %v431
      %v445 = vmul.f32 %v425, %v431
      %v446 = vmul.f32 %v426, %v431
      %v447 = vmul.f32 %v427, %v431
      %v448 = vadd.f32 %v432, 0.0
      %v449 = vadd.f32 %v433, 0.0
      %v450 = vadd.f32 %v434, 0.0
      %v451 = vadd.f32 %v435, 0.0
      %v452 = vadd.f32 %v436, 0.0
      %v453 = vadd.f32 %v437, 0.0
      %v454 = vadd.f32 %v438, 0.0
      %v455 = vadd.f32 %v439, 0.0
      %v456 = vadd.f32 %v440, 0.0
      %v457 = vadd.f32 %v441, 0.0
      %v458 = vadd.f32 %v442, 0.0
      %v459 = vadd.f32 %v443, 0.0
      %v460 = vadd.f32 %v444, 0.0
      %v461 = vadd.f32 %v445, 0.0
      %v462 = vadd.f32 %v446, 0.0
      %v463 = vadd.f32 %v447, 0.0
      %v464 = vld [vmem:[#allocation2 + $0x8] sm:$0xff]
      %v465 = vld [vmem:[#allocation2 + $0x20] sm:$0xff]
      %v466 = vld [vmem:[#allocation2 + $0x38] sm:$0xff]
      %v467 = vld [vmem:[#allocation2 + $0x50] sm:$0xff]
      %v468 = vld [vmem:[#allocation2 + $0x68] sm:$0xff]
      %v469 = vld [vmem:[#allocation2 + $0x80] sm:$0xff]
      %v470 = vld [vmem:[#allocation2 + $0x98] sm:$0xff]
      %v471 = vld [vmem:[#allocation2 + $0xb0] sm:$0xff]
      %v472 = vld [vmem:[#allocation2 + $0xf8] sm:$0xff]
      %v473 = vld [vmem:[#allocation2 + $0x110] sm:$0xff]
      %v474 = vld [vmem:[#allocation2 + $0x128] sm:$0xff]
      %v475 = vld [vmem:[#allocation2 + $0x140] sm:$0xff]
      %v476 = vld [vmem:[#allocation2 + $0x158] sm:$0xff]
      %v477 = vld [vmem:[#allocation2 + $0x170] sm:$0xff]
      %v478 = vld [vmem:[#allocation2 + $0x188] sm:$0xff]
      %v479 = vld [vmem:[#allocation2 + $0x1a0] sm:$0xff]
      %v480 = vlaneseq
      %v481 = vshrl.u32 %v480, 7
      %v482 = vsub.s32 1, %v481
      %v483 = vrot.slane %v376, %v482
      %v484 = vmul.f32 %v464, %v483
      %v485 = vmul.f32 %v465, %v483
      %v486 = vmul.f32 %v466, %v483
      %v487 = vmul.f32 %v467, %v483
      %v488 = vmul.f32 %v468, %v483
      %v489 = vmul.f32 %v469, %v483
      %v490 = vmul.f32 %v470, %v483
      %v491 = vmul.f32 %v471, %v483
      %v492 = vmul.f32 %v472, %v483
      %v493 = vmul.f32 %v473, %v483
      %v494 = vmul.f32 %v474, %v483
      %v495 = vmul.f32 %v475, %v483
      %v496 = vmul.f32 %v476, %v483
      %v497 = vmul.f32 %v477, %v483
      %v498 = vmul.f32 %v478, %v483
      %v499 = vmul.f32 %v479, %v483
      %v500 = vadd.f32 %v448, %v484
      %v501 = vadd.f32 %v449, %v485
      %v502 = vadd.f32 %v450, %v486
      %v503 = vadd.f32 %v451, %v487
      %v504 = vadd.f32 %v452, %v488
      %v505 = vadd.f32 %v453, %v489
      %v506 = vadd.f32 %v454, %v490
      %v507 = vadd.f32 %v455, %v491
      %v508 = vadd.f32 %v456, %v492
      %v509 = vadd.f32 %v457, %v493
      %v510 = vadd.f32 %v458, %v494
      %v511 = vadd.f32 %v459, %v495
      %v512 = vadd.f32 %v460, %v496
      %v513 = vadd.f32 %v461, %v497
      %v514 = vadd.f32 %v462, %v498
      %v515 = vadd.f32 %v463, %v499
      %v516 = vld [vmem:[#allocation2 + $0x9] sm:$0xff]
      %v517 = vld [vmem:[#allocation2 + $0x21] sm:$0xff]
      %v518 = vld [vmem:[#allocation2 + $0x39] sm:$0xff]
      %v519 = vld [vmem:[#allocation2 + $0x51] sm:$0xff]
      %v520 = vld [vmem:[#allocation2 + $0x69] sm:$0xff]
      %v521 = vld [vmem:[#allocation2 + $0x81] sm:$0xff]
      %v522 = vld [vmem:[#allocation2 + $0x99] sm:$0xff]
      %v523 = vld [vmem:[#allocation2 + $0xb1] sm:$0xff]
      %v524 = vld [vmem:[#allocation2 + $0xf9] sm:$0xff]
      %v525 = vld [vmem:[#allocation2 + $0x111] sm:$0xff]
      %v526 = vld [vmem:[#allocation2 + $0x129] sm:$0xff]
      %v527 = vld [vmem:[#allocation2 + $0x141] sm:$0xff]
      %v528 = vld [vmem:[#allocation2 + $0x159] sm:$0xff]
      %v529 = vld [vmem:[#allocation2 + $0x171] sm:$0xff]
      %v530 = vld [vmem:[#allocation2 + $0x189] sm:$0xff]
      %v531 = vld [vmem:[#allocation2 + $0x1a1] sm:$0xff]
      %v532 = vlaneseq
      %v533 = vshrl.u32 %v532, 7
      %v534 = vsub.s32 2, %v533
      %v535 = vrot.slane %v376, %v534
      %v536 = vmul.f32 %v516, %v535
      %v537 = vmul.f32 %v517, %v535
      %v538 = vmul.f32 %v518, %v535
      %v539 = vmul.f32 %v519, %v535
      %v540 = vmul.f32 %v520, %v535
      %v541 = vmul.f32 %v521, %v535
      %v542 = vmul.f32 %v522, %v535
      %v543 = vmul.f32 %v523, %v535
      %v544 = vmul.f32 %v524, %v535
      %v545 = vmul.f32 %v525, %v535
      %v546 = vmul.f32 %v526, %v535
      %v547 = vmul.f32 %v527, %v535
      %v548 = vmul.f32 %v528, %v535
      %v549 = vmul.f32 %v529, %v535
      %v550 = vmul.f32 %v530, %v535
      %v551 = vmul.f32 %v531, %v535
      %v552 = vadd.f32 %v500, %v536
      %v553 = vadd.f32 %v501, %v537
      %v554 = vadd.f32 %v502, %v538
      %v555 = vadd.f32 %v503, %v539
      %v556 = vadd.f32 %v504, %v540
      %v557 = vadd.f32 %v505, %v541
      %v558 = vadd.f32 %v506, %v542
      %v559 = vadd.f32 %v507, %v543
      %v560 = vadd.f32 %v508, %v544
      %v561 = vadd.f32 %v509, %v545
      %v562 = vadd.f32 %v510, %v546
      %v563 = vadd.f32 %v511, %v547
      %v564 = vadd.f32 %v512, %v548
      %v565 = vadd.f32 %v513, %v549
      %v566 = vadd.f32 %v514, %v550
      %v567 = vadd.f32 %v515, %v551
      %v568 = vld [vmem:[%s395 + $0x7] sm:$0xff]
      %v569 = vld [vmem:[%s395 + $0x1f] sm:$0xff]
      %v570 = vld [vmem:[%s395 + $0x37] sm:$0xff]
      %v571 = vld [vmem:[%s395 + $0x4f] sm:$0xff]
      %v572 = vld [vmem:[%s395 + $0x67] sm:$0xff]
      %v573 = vld [vmem:[%s395 + $0x7f] sm:$0xff]
      %v574 = vld [vmem:[%s395 + $0x97] sm:$0xff]
      %v575 = vld [vmem:[%s395 + $0xaf] sm:$0xff]
      %v576 = vld [vmem:[%s395 + $0xf7] sm:$0xff]
      %v577 = vld [vmem:[%s395 + $0x10f] sm:$0xff]
      %v578 = vld [vmem:[%s395 + $0x127] sm:$0xff]
      %v579 = vld [vmem:[%s395 + $0x13f] sm:$0xff]
      %v580 = vld [vmem:[%s395 + $0x157] sm:$0xff]
      %v581 = vld [vmem:[%s395 + $0x16f] sm:$0xff]
      %v582 = vld [vmem:[%s395 + $0x187] sm:$0xff]
      %v583 = vld [vmem:[%s395 + $0x19f] sm:$0xff]
      %v584 = vlaneseq
      %v585 = vshrl.u32 %v584, 7
      %v586 = vsub.s32 0, %v585
      %v587 = vrot.slane %v377, %v586
      %v588 = vmul.f32 %v568, %v587
      %v589 = vmul.f32 %v569, %v587
      %v590 = vmul.f32 %v570, %v587
      %v591 = vmul.f32 %v571, %v587
      %v592 = vmul.f32 %v572, %v587
      %v593 = vmul.f32 %v573, %v587
      %v594 = vmul.f32 %v574, %v587
      %v595 = vmul.f32 %v575, %v587
      %v596 = vmul.f32 %v576, %v587
      %v597 = vmul.f32 %v577, %v587
      %v598 = vmul.f32 %v578, %v587
      %v599 = vmul.f32 %v579, %v587
      %v600 = vmul.f32 %v580, %v587
      %v601 = vmul.f32 %v581, %v587
      %v602 = vmul.f32 %v582, %v587
      %v603 = vmul.f32 %v583, %v587
      %v604 = vadd.f32 %v552, %v588
      %v605 = vadd.f32 %v553, %v589
      %v606 = vadd.f32 %v554, %v590
      %v607 = vadd.f32 %v555, %v591
      %v608 = vadd.f32 %v556, %v592
      %v609 = vadd.f32 %v557, %v593
      %v610 = vadd.f32 %v558, %v594
      %v611 = vadd.f32 %v559, %v595
      %v612 = vadd.f32 %v560, %v596
      %v613 = vadd.f32 %v561, %v597
      %v614 = vadd.f32 %v562, %v598
      %v615 = vadd.f32 %v563, %v599
      %v616 = vadd.f32 %v564, %v600
      %v617 = vadd.f32 %v565, %v601
      %v618 = vadd.f32 %v566, %v602
      %v619 = vadd.f32 %v567, %v603
      %v620 = vld [vmem:[%s395 + $0x8] sm:$0xff]
      %v621 = vld [vmem:[%s395 + $0x20] sm:$0xff]
      %v622 = vld [vmem:[%s395 + $0x38] sm:$0xff]
      %v623 = vld [vmem:[%s395 + $0x50] sm:$0xff]
      %v624 = vld [vmem:[%s395 + $0x68] sm:$0xff]
      %v625 = vld [vmem:[%s395 + $0x80] sm:$0xff]
      %v626 = vld [vmem:[%s395 + $0x98] sm:$0xff]
      %v627 = vld [vmem:[%s395 + $0xb0] sm:$0xff]
      %v628 = vld [vmem:[%s395 + $0xf8] sm:$0xff]
      %v629 = vld [vmem:[%s395 + $0x110] sm:$0xff]
      %v630 = vld [vmem:[%s395 + $0x128] sm:$0xff]
      %v631 = vld [vmem:[%s395 + $0x140] sm:$0xff]
      %v632 = vld [vmem:[%s395 + $0x158] sm:$0xff]
      %v633 = vld [vmem:[%s395 + $0x170] sm:$0xff]
      %v634 = vld [vmem:[%s395 + $0x188] sm:$0xff]
      %v635 = vld [vmem:[%s395 + $0x1a0] sm:$0xff]
      %v636 = vlaneseq
      %v637 = vshrl.u32 %v636, 7
      %v638 = vsub.s32 1, %v637
      %v639 = vrot.slane %v377, %v638
      %v640 = vmul.f32 %v620, %v639
      %v641 = vmul.f32 %v621, %v639
      %v642 = vmul.f32 %v622, %v639
      %v643 = vmul.f32 %v623, %v639
      %v644 = vmul.f32 %v624, %v639
      %v645 = vmul.f32 %v625, %v639
      %v646 = vmul.f32 %v626, %v639
      %v647 = vmul.f32 %v627, %v639
      %v648 = vmul.f32 %v628, %v639
      %v649 = vmul.f32 %v629, %v639
      %v650 = vmul.f32 %v630, %v639
      %v651 = vmul.f32 %v631, %v639
      %v652 = vmul.f32 %v632, %v639
      %v653 = vmul.f32 %v633, %v639
      %v654 = vmul.f32 %v634, %v639
      %v655 = vmul.f32 %v635, %v639
      %v656 = vadd.f32 %v604, %v640
      %v657 = vadd.f32 %v605, %v641
      %v658 = vadd.f32 %v606, %v642
      %v659 = vadd.f32 %v607, %v643
      %v660 = vadd.f32 %v608, %v644
      %v661 = vadd.f32 %v609, %v645
      %v662 = vadd.f32 %v610, %v646
      %v663 = vadd.f32 %v611, %v647
      %v664 = vadd.f32 %v612, %v648
      %v665 = vadd.f32 %v613, %v649
      %v666 = vadd.f32 %v614, %v650
      %v667 = vadd.f32 %v615, %v651
      %v668 = vadd.f32 %v616, %v652
      %v669 = vadd.f32 %v617, %v653
      %v670 = vadd.f32 %v618, %v654
      %v671 = vadd.f32 %v619, %v655
      %v672 = vld [vmem:[%s395 + $0x9] sm:$0xff]
      %v673 = vld [vmem:[%s395 + $0x21] sm:$0xff]
      %v674 = vld [vmem:[%s395 + $0x39] sm:$0xff]
      %v675 = vld [vmem:[%s395 + $0x51] sm:$0xff]
      %v676 = vld [vmem:[%s395 + $0x69] sm:$0xff]
      %v677 = vld [vmem:[%s395 + $0x81] sm:$0xff]
      %v678 = vld [vmem:[%s395 + $0x99] sm:$0xff]
      %v679 = vld [vmem:[%s395 + $0xb1] sm:$0xff]
      %v680 = vld [vmem:[%s395 + $0xf9] sm:$0xff]
      %v681 = vld [vmem:[%s395 + $0x111] sm:$0xff]
      %v682 = vld [vmem:[%s395 + $0x129] sm:$0xff]
      %v683 = vld [vmem:[%s395 + $0x141] sm:$0xff]
      %v684 = vld [vmem:[%s395 + $0x159] sm:$0xff]
      %v685 = vld [vmem:[%s395 + $0x171] sm:$0xff]
      %v686 = vld [vmem:[%s395 + $0x189] sm:$0xff]
      %v687 = vld [vmem:[%s395 + $0x1a1] sm:$0xff]
      %v688 = vlaneseq
      %v689 = vshrl.u32 %v688, 7
      %v690 = vsub.s32 2, %v689
      %v691 = vrot.slane %v377, %v690
      %v692 = vmul.f32 %v672, %v691
      %v693 = vmul.f32 %v673, %v691
      %v694 = vmul.f32 %v674, %v691
      %v695 = vmul.f32 %v675, %v691
      %v696 = vmul.f32 %v676, %v691
      %v697 = vmul.f32 %v677, %v691
      %v698 = vmul.f32 %v678, %v691
      %v699 = vmul.f32 %v679, %v691
      %v700 = vmul.f32 %v680, %v691
      %v701 = vmul.f32 %v681, %v691
      %v702 = vmul.f32 %v682, %v691
      %v703 = vmul.f32 %v683, %v691
      %v704 = vmul.f32 %v684, %v691
      %v705 = vmul.f32 %v685, %v691
      %v706 = vmul.f32 %v686, %v691
      %v707 = vmul.f32 %v687, %v691
      %v708 = vadd.f32 %v656, %v692
      %v709 = vadd.f32 %v657, %v693
      %v710 = vadd.f32 %v658, %v694
      %v711 = vadd.f32 %v659, %v695
      %v712 = vadd.f32 %v660, %v696
      %v713 = vadd.f32 %v661, %v697
      %v714 = vadd.f32 %v662, %v698
      %v715 = vadd.f32 %v663, %v699
      %v716 = vadd.f32 %v664, %v700
      %v717 = vadd.f32 %v665, %v701
      %v718 = vadd.f32 %v666, %v702
      %v719 = vadd.f32 %v667, %v703
      %v720 = vadd.f32 %v668, %v704
      %v721 = vadd.f32 %v669, %v705
      %v722 = vadd.f32 %v670, %v706
      %v723 = vadd.f32 %v671, %v707
      %s724 = scalar_lea.vmem [#allocation2], 48
      %v725 = vld [vmem:[%s724 + $0x7] sm:$0xff]
      %v726 = vld [vmem:[%s724 + $0x1f] sm:$0xff]
      %v727 = vld [vmem:[%s724 + $0x37] sm:$0xff]
      %v728 = vld [vmem:[%s724 + $0x4f] sm:$0xff]
      %v729 = vld [vmem:[%s724 + $0x67] sm:$0xff]
      %v730 = vld [vmem:[%s724 + $0x7f] sm:$0xff]
      %v731 = vld [vmem:[%s724 + $0x97] sm:$0xff]
      %v732 = vld [vmem:[%s724 + $0xaf] sm:$0xff]
      %v733 = vld [vmem:[%s724 + $0xf7] sm:$0xff]
      %v734 = vld [vmem:[%s724 + $0x10f] sm:$0xff]
      %v735 = vld [vmem:[%s724 + $0x127] sm:$0xff]
      %v736 = vld [vmem:[%s724 + $0x13f] sm:$0xff]
      %v737 = vld [vmem:[%s724 + $0x157] sm:$0xff]
      %v738 = vld [vmem:[%s724 + $0x16f] sm:$0xff]
      %v739 = vld [vmem:[%s724 + $0x187] sm:$0xff]
      %v740 = vld [vmem:[%s724 + $0x19f] sm:$0xff]
      %v741 = vlaneseq
      %v742 = vshrl.u32 %v741, 7
      %v743 = vsub.s32 0, %v742
      %v744 = vrot.slane %v378, %v743
      %v745 = vmul.f32 %v725, %v744
      %v746 = vmul.f32 %v726, %v744
      %v747 = vmul.f32 %v727, %v744
      %v748 = vmul.f32 %v728, %v744
      %v749 = vmul.f32 %v729, %v744
      %v750 = vmul.f32 %v730, %v744
      %v751 = vmul.f32 %v731, %v744
      %v752 = vmul.f32 %v732, %v744
      %v753 = vmul.f32 %v733, %v744
      %v754 = vmul.f32 %v734, %v744
      %v755 = vmul.f32 %v735, %v744
      %v756 = vmul.f32 %v736, %v744
      %v757 = vmul.f32 %v737, %v744
      %v758 = vmul.f32 %v738, %v744
      %v759 = vmul.f32 %v739, %v744
      %v760 = vmul.f32 %v740, %v744
      %v761 = vadd.f32 %v708, %v745
      %v762 = vadd.f32 %v709, %v746
      %v763 = vadd.f32 %v710, %v747
      %v764 = vadd.f32 %v711, %v748
      %v765 = vadd.f32 %v712, %v749
      %v766 = vadd.f32 %v713, %v750
      %v767 = vadd.f32 %v714, %v751
      %v768 = vadd.f32 %v715, %v752
      %v769 = vadd.f32 %v716, %v753
      %v770 = vadd.f32 %v717, %v754
      %v771 = vadd.f32 %v718, %v755
      %v772 = vadd.f32 %v719, %v756
      %v773 = vadd.f32 %v720, %v757
      %v774 = vadd.f32 %v721, %v758
      %v775 = vadd.f32 %v722, %v759
      %v776 = vadd.f32 %v723, %v760
      %v777 = vld [vmem:[%s724 + $0x8] sm:$0xff]
      %v778 = vld [vmem:[%s724 + $0x20] sm:$0xff]
      %v779 = vld [vmem:[%s724 + $0x38] sm:$0xff]
      %v780 = vld [vmem:[%s724 + $0x50] sm:$0xff]
      %v781 = vld [vmem:[%s724 + $0x68] sm:$0xff]
      %v782 = vld [vmem:[%s724 + $0x80] sm:$0xff]
      %v783 = vld [vmem:[%s724 + $0x98] sm:$0xff]
      %v784 = vld [vmem:[%s724 + $0xb0] sm:$0xff]
      %v785 = vld [vmem:[%s724 + $0xf8] sm:$0xff]
      %v786 = vld [vmem:[%s724 + $0x110] sm:$0xff]
      %v787 = vld [vmem:[%s724 + $0x128] sm:$0xff]
      %v788 = vld [vmem:[%s724 + $0x140] sm:$0xff]
      %v789 = vld [vmem:[%s724 + $0x158] sm:$0xff]
      %v790 = vld [vmem:[%s724 + $0x170] sm:$0xff]
      %v791 = vld [vmem:[%s724 + $0x188] sm:$0xff]
      %v792 = vld [vmem:[%s724 + $0x1a0] sm:$0xff]
      %v793 = vlaneseq
      %v794 = vshrl.u32 %v793, 7
      %v795 = vsub.s32 1, %v794
      %v796 = vrot.slane %v378, %v795
      %v797 = vmul.f32 %v777, %v796
      %v798 = vmul.f32 %v778, %v796
      %v799 = vmul.f32 %v779, %v796
      %v800 = vmul.f32 %v780, %v796
      %v801 = vmul.f32 %v781, %v796
      %v802 = vmul.f32 %v782, %v796
      %v803 = vmul.f32 %v783, %v796
      %v804 = vmul.f32 %v784, %v796
      %v805 = vmul.f32 %v785, %v796
      %v806 = vmul.f32 %v786, %v796
      %v807 = vmul.f32 %v787, %v796
      %v808 = vmul.f32 %v788, %v796
      %v809 = vmul.f32 %v789, %v796
      %v810 = vmul.f32 %v790, %v796
      %v811 = vmul.f32 %v791, %v796
      %v812 = vmul.f32 %v792, %v796
      %v813 = vadd.f32 %v761, %v797
      %v814 = vadd.f32 %v762, %v798
      %v815 = vadd.f32 %v763, %v799
      %v816 = vadd.f32 %v764, %v800
      %v817 = vadd.f32 %v765, %v801
      %v818 = vadd.f32 %v766, %v802
      %v819 = vadd.f32 %v767, %v803
      %v820 = vadd.f32 %v768, %v804
      %v821 = vadd.f32 %v769, %v805
      %v822 = vadd.f32 %v770, %v806
      %v823 = vadd.f32 %v771, %v807
      %v824 = vadd.f32 %v772, %v808
      %v825 = vadd.f32 %v773, %v809
      %v826 = vadd.f32 %v774, %v810
      %v827 = vadd.f32 %v775, %v811
      %v828 = vadd.f32 %v776, %v812
      %v829 = vld [vmem:[%s724 + $0x9] sm:$0xff]
      %v830 = vld [vmem:[%s724 + $0x21] sm:$0xff]
      %v831 = vld [vmem:[%s724 + $0x39] sm:$0xff]
      %v832 = vld [vmem:[%s724 + $0x51] sm:$0xff]
      %v833 = vld [vmem:[%s724 + $0x69] sm:$0xff]
      %v834 = vld [vmem:[%s724 + $0x81] sm:$0xff]
      %v835 = vld [vmem:[%s724 + $0x99] sm:$0xff]
      %v836 = vld [vmem:[%s724 + $0xb1] sm:$0xff]
      %v837 = vld [vmem:[%s724 + $0xf9] sm:$0xff]
      %v838 = vld [vmem:[%s724 + $0x111] sm:$0xff]
      %v839 = vld [vmem:[%s724 + $0x129] sm:$0xff]
      %v840 = vld [vmem:[%s724 + $0x141] sm:$0xff]
      %v841 = vld [vmem:[%s724 + $0x159] sm:$0xff]
      %v842 = vld [vmem:[%s724 + $0x171] sm:$0xff]
      %v843 = vld [vmem:[%s724 + $0x189] sm:$0xff]
      %v844 = vld [vmem:[%s724 + $0x1a1] sm:$0xff]
      %v845 = vlaneseq
      %v846 = vshrl.u32 %v845, 7
      %v847 = vsub.s32 2, %v846
      %v848 = vrot.slane %v378, %v847
      %v849 = vmul.f32 %v829, %v848
      %v850 = vmul.f32 %v830, %v848
      %v851 = vmul.f32 %v831, %v848
      %v852 = vmul.f32 %v832, %v848
      %v853 = vmul.f32 %v833, %v848
      %v854 = vmul.f32 %v834, %v848
      %v855 = vmul.f32 %v835, %v848
      %v856 = vmul.f32 %v836, %v848
      %v857 = vmul.f32 %v837, %v848
      %v858 = vmul.f32 %v838, %v848
      %v859 = vmul.f32 %v839, %v848
      %v860 = vmul.f32 %v840, %v848
      %v861 = vmul.f32 %v841, %v848
      %v862 = vmul.f32 %v842, %v848
      %v863 = vmul.f32 %v843, %v848
      %v864 = vmul.f32 %v844, %v848
      %v865 = vadd.f32 %v813, %v849
      %v866 = vadd.f32 %v814, %v850
      %v867 = vadd.f32 %v815, %v851
      %v868 = vadd.f32 %v816, %v852
      %v869 = vadd.f32 %v817, %v853
      %v870 = vadd.f32 %v818, %v854
      %v871 = vadd.f32 %v819, %v855
      %v872 = vadd.f32 %v820, %v856
      %v873 = vadd.f32 %v821, %v857
      %v874 = vadd.f32 %v822, %v858
      %v875 = vadd.f32 %v823, %v859
      %v876 = vadd.f32 %v824, %v860
      %v877 = vadd.f32 %v825, %v861
      %v878 = vadd.f32 %v826, %v862
      %v879 = vadd.f32 %v827, %v863
      %v880 = vadd.f32 %v828, %v864
      %v881 = vld [vmem:[%s284] sm:$0xff]
      %v883 = vsel %vm299, %v865, 0
      %v886 = vsel %vm299, %v866, 0
      %v889 = vsel %vm299, %v867, 0
      %v892 = vsel %vm299, %v868, 0
      %v895 = vsel %vm299, %v869, 0
      %v898 = vsel %vm299, %v870, 0
      %v901 = vsel %vm299, %v871, 0
      %v904 = vsel %vm299, %v872, 0
      %v907 = vsel %vm299, %v873, 0
      %v910 = vsel %vm299, %v874, 0
      %v913 = vsel %vm299, %v875, 0
      %v916 = vsel %vm299, %v876, 0
      %v919 = vsel %vm299, %v877, 0
      %v922 = vsel %vm299, %v878, 0
      %v925 = vsel %vm299, %v879, 0
      %v928 = vsel %vm299, %v880, 0
      %930 = vmatprep.subr.mxu0 0.0
      %931 = vmatpush1.msra.mxu0 0.0
      %932 = vmatprep.subr.mxu0 0.0
      %933 = vmatpush1.msra.mxu0 0.0
      %934 = vmatprep.subr.mxu0 0.0
      %935 = vmatpush1.msra.mxu0 0.0
      %936 = vmatprep.subr.mxu0 0.0
      %937 = vmatpush1.msra.mxu0 0.0
      %938 = vmatprep.subr.mxu0 0.0
      %939 = vmatpush1.msra.mxu0 0.0
      %940 = vmatprep.subr.mxu0 0.0
      %941 = vmatpush1.msra.mxu0 0.0
      %942 = vmatprep.subr.mxu0 0.0
      %943 = vmatpush1.msra.mxu0 0.0
      %944 = vmatprep.subr.mxu0 0.0
      %945 = vmatpush1.msra.mxu0 0.0
      %946 = vmatprep.subr.mxu0 0.0
      %947 = vmatpush1.msra.mxu0 0.0
      %948 = vmatprep.subr.mxu0 0.0
      %949 = vmatpush1.msra.mxu0 0.0
      %950 = vmatprep.subr.mxu0 0.0
      %951 = vmatpush1.msra.mxu0 0.0
      %952 = vmatprep.subr.mxu0 0.0
      %953 = vmatpush1.msra.mxu0 0.0
      %954 = vmatprep.subr.mxu0 0.0
      %955 = vmatpush1.msra.mxu0 0.0
      %956 = vmatprep.subr.mxu0 0.0
      %957 = vmatpush1.msra.mxu0 0.0
      %958 = vmatprep.subr.mxu0 0.0
      %959 = vmatpush1.msra.mxu0 0.0
      %960 = vmatprep.subr.mxu0 0.0
      %961 = vmatpush1.msra.mxu0 %v881
      %962 = vmatprep.subr.mxu0 0.0
      %963 = vmatpush2.msra.mxu0 0.0
      %964 = vmatprep.subr.mxu0 0.0
      %965 = vmatpush2.msra.mxu0 0.0
      %966 = vmatprep.subr.mxu0 0.0
      %967 = vmatpush2.msra.mxu0 0.0
      %968 = vmatprep.subr.mxu0 0.0
      %969 = vmatpush2.msra.mxu0 0.0
      %970 = vmatprep.subr.mxu0 0.0
      %971 = vmatpush2.msra.mxu0 0.0
      %972 = vmatprep.subr.mxu0 0.0
      %973 = vmatpush2.msra.mxu0 0.0
      %974 = vmatprep.subr.mxu0 0.0
      %975 = vmatpush2.msra.mxu0 0.0
      %976 = vmatprep.subr.mxu0 0.0
      %977 = vmatpush2.msra.mxu0 0.0
      %978 = vmatprep.subr.mxu0 0.0
      %979 = vmatpush2.msra.mxu0 0.0
      %980 = vmatprep.subr.mxu0 0.0
      %981 = vmatpush2.msra.mxu0 0.0
      %982 = vmatprep.subr.mxu0 0.0
      %983 = vmatpush2.msra.mxu0 0.0
      %984 = vmatprep.subr.mxu0 0.0
      %985 = vmatpush2.msra.mxu0 0.0
      %986 = vmatprep.subr.mxu0 0.0
      %987 = vmatpush2.msra.mxu0 0.0
      %988 = vmatprep.subr.mxu0 0.0
      %989 = vmatpush2.msra.mxu0 0.0
      %990 = vmatprep.subr.mxu0 0.0
      %991 = vmatpush2.msra.mxu0 0.0
      %992 = vmatprep.subr.mxu0 0.0
      %993 = vmatpush2.msra.mxu0 0.0
      %994 = vmatprep.mubr.f32.mxu0 0.0
      %995 = vmatmul.mubr.f32.gmra.mxu0 %v883
      %v996 = vpop.f32.mrf.mxu0
      %v997 = vadd.f32 0.0, %v996
      %v998 = vpop.f32.mrf.mxu0
      %999 = vmatprep.mubr.f32.mxu0 0.0
      %1000 = vmatmul.mubr.f32.gmra.mxu0 %v886
      %v1001 = vpop.f32.mrf.mxu0
      %v1002 = vadd.f32 0.0, %v1001
      %v1003 = vpop.f32.mrf.mxu0
      %1004 = vmatprep.mubr.f32.mxu0 0.0
      %1005 = vmatmul.mubr.f32.gmra.mxu0 %v889
      %v1006 = vpop.f32.mrf.mxu0
      %v1007 = vadd.f32 0.0, %v1006
      %v1008 = vpop.f32.mrf.mxu0
      %1009 = vmatprep.mubr.f32.mxu0 0.0
      %1010 = vmatmul.mubr.f32.gmra.mxu0 %v892
      %v1011 = vpop.f32.mrf.mxu0
      %v1012 = vadd.f32 0.0, %v1011
      %v1013 = vpop.f32.mrf.mxu0
      %1014 = vmatprep.mubr.f32.mxu0 0.0
      %1015 = vmatmul.mubr.f32.gmra.mxu0 %v895
      %v1016 = vpop.f32.mrf.mxu0
      %v1017 = vadd.f32 0.0, %v1016
      %v1018 = vpop.f32.mrf.mxu0
      %1019 = vmatprep.mubr.f32.mxu0 0.0
      %1020 = vmatmul.mubr.f32.gmra.mxu0 %v898
      %v1021 = vpop.f32.mrf.mxu0
      %v1022 = vadd.f32 0.0, %v1021
      %v1023 = vpop.f32.mrf.mxu0
      %1024 = vmatprep.mubr.f32.mxu0 0.0
      %1025 = vmatmul.mubr.f32.gmra.mxu0 %v901
      %v1026 = vpop.f32.mrf.mxu0
      %v1027 = vadd.f32 0.0, %v1026
      %v1028 = vpop.f32.mrf.mxu0
      %1029 = vmatprep.mubr.f32.mxu0 0.0
      %1030 = vmatmul.mubr.f32.gmra.mxu0 %v904
      %v1031 = vpop.f32.mrf.mxu0
      %v1032 = vadd.f32 0.0, %v1031
      %v1033 = vpop.f32.mrf.mxu0
      %1034 = vmatprep.mubr.f32.mxu0 0.0
      %1035 = vmatmul.mubr.f32.gmra.mxu0 %v907
      %v1036 = vpop.f32.mrf.mxu0
      %v1037 = vadd.f32 0.0, %v1036
      %v1038 = vpop.f32.mrf.mxu0
      %1039 = vmatprep.mubr.f32.mxu0 0.0
      %1040 = vmatmul.mubr.f32.gmra.mxu0 %v910
      %v1041 = vpop.f32.mrf.mxu0
      %v1042 = vadd.f32 0.0, %v1041
      %v1043 = vpop.f32.mrf.mxu0
      %1044 = vmatprep.mubr.f32.mxu0 0.0
      %1045 = vmatmul.mubr.f32.gmra.mxu0 %v913
      %v1046 = vpop.f32.mrf.mxu0
      %v1047 = vadd.f32 0.0, %v1046
      %v1048 = vpop.f32.mrf.mxu0
      %1049 = vmatprep.mubr.f32.mxu0 0.0
      %1050 = vmatmul.mubr.f32.gmra.mxu0 %v916
      %v1051 = vpop.f32.mrf.mxu0
      %v1052 = vadd.f32 0.0, %v1051
      %v1053 = vpop.f32.mrf.mxu0
      %1054 = vmatprep.mubr.f32.mxu0 0.0
      %1055 = vmatmul.mubr.f32.gmra.mxu0 %v919
      %v1056 = vpop.f32.mrf.mxu0
      %v1057 = vadd.f32 0.0, %v1056
      %v1058 = vpop.f32.mrf.mxu0
      %1059 = vmatprep.mubr.f32.mxu0 0.0
      %1060 = vmatmul.mubr.f32.gmra.mxu0 %v922
      %v1061 = vpop.f32.mrf.mxu0
      %v1062 = vadd.f32 0.0, %v1061
      %v1063 = vpop.f32.mrf.mxu0
      %1064 = vmatprep.mubr.f32.mxu0 0.0
      %1065 = vmatmul.mubr.f32.gmra.mxu0 %v925
      %v1066 = vpop.f32.mrf.mxu0
      %v1067 = vadd.f32 0.0, %v1066
      %v1068 = vpop.f32.mrf.mxu0
      %1069 = vmatprep.mubr.f32.mxu0 0.0
      %1070 = vmatmul.mubr.f32.gmra.mxu0 %v928
      %v1071 = vpop.f32.mrf.mxu0
      %v1072 = vadd.f32 0.0, %v1071
      %v1073 = vpop.f32.mrf.mxu0
      %1074 = vdwg.mxu0
      %v1075 = vsel %vm299, %v997, 0.0
      %v1076 = vsel %vm299, %v1002, 0.0
      %v1077 = vadd.f32 %v1075, %v1076
      %v1078 = vsel %vm299, %v1007, 0.0
      %v1079 = vadd.f32 %v1077, %v1078
      %v1080 = vsel %vm299, %v1012, 0.0
      %v1081 = vadd.f32 %v1079, %v1080
      %v1082 = vsel %vm299, %v1017, 0.0
      %v1083 = vadd.f32 %v1081, %v1082
      %v1084 = vsel %vm299, %v1022, 0.0
      %v1085 = vadd.f32 %v1083, %v1084
      %v1086 = vsel %vm299, %v1027, 0.0
      %v1087 = vadd.f32 %v1085, %v1086
      %v1088 = vsel %vm299, %v1032, 0.0
      %v1089 = vadd.f32 %v1087, %v1088
      %v1090 = vsel %vm299, %v1037, 0.0
      %v1091 = vadd.f32 %v1089, %v1090
      %v1092 = vsel %vm299, %v1042, 0.0
      %v1093 = vadd.f32 %v1091, %v1092
      %v1094 = vsel %vm299, %v1047, 0.0
      %v1095 = vadd.f32 %v1093, %v1094
      %v1096 = vsel %vm299, %v1052, 0.0
      %v1097 = vadd.f32 %v1095, %v1096
      %v1098 = vsel %vm299, %v1057, 0.0
      %v1099 = vadd.f32 %v1097, %v1098
      %v1100 = vsel %vm299, %v1062, 0.0
      %v1101 = vadd.f32 %v1099, %v1100
      %v1102 = vsel %vm299, %v1067, 0.0
      %v1103 = vadd.f32 %v1101, %v1102
      %v1104 = vsel %vm299, %v1072, 0.0
      %v1105 = vadd.f32 %v1103, %v1104
      %v1106 = vrot.slane %v1105, 4
      %v1107 = vadd.f32 %v1105, %v1106
      %v1108 = vrot.slane %v1107, 2
      %v1109 = vadd.f32 %v1107, %v1108
      %v1110 = vrot.slane %v1109, 1
      %v1111 = vadd.f32 %v1109, %v1110
      %v1112 = vrcp.pop 128.0
      %v1113 = vmul.f32 %v1111, %v1112
      %v1114 = vsub.f32 %v997, %v1113
      %v1115 = vsub.f32 %v1002, %v1113
      %v1116 = vsub.f32 %v1007, %v1113
      %v1117 = vsub.f32 %v1012, %v1113
      %v1118 = vsub.f32 %v1017, %v1113
      %v1119 = vsub.f32 %v1022, %v1113
      %v1120 = vsub.f32 %v1027, %v1113
      %v1121 = vsub.f32 %v1032, %v1113
      %v1122 = vsub.f32 %v1037, %v1113
      %v1123 = vsub.f32 %v1042, %v1113
      %v1124 = vsub.f32 %v1047, %v1113
      %v1125 = vsub.f32 %v1052, %v1113
      %v1126 = vsub.f32 %v1057, %v1113
      %v1127 = vsub.f32 %v1062, %v1113
      %v1128 = vsub.f32 %v1067, %v1113
      %v1129 = vsub.f32 %v1072, %v1113
      %v1130 = vmul.f32 %v1114, %v1114
      %v1131 = vmul.f32 %v1115, %v1115
      %v1132 = vmul.f32 %v1116, %v1116
      %v1133 = vmul.f32 %v1117, %v1117
      %v1134 = vmul.f32 %v1118, %v1118
      %v1135 = vmul.f32 %v1119, %v1119
      %v1136 = vmul.f32 %v1120, %v1120
      %v1137 = vmul.f32 %v1121, %v1121
      %v1138 = vmul.f32 %v1122, %v1122
      %v1139 = vmul.f32 %v1123, %v1123
      %v1140 = vmul.f32 %v1124, %v1124
      %v1141 = vmul.f32 %v1125, %v1125
      %v1142 = vmul.f32 %v1126, %v1126
      %v1143 = vmul.f32 %v1127, %v1127
      %v1144 = vmul.f32 %v1128, %v1128
      %v1145 = vmul.f32 %v1129, %v1129
      %v1146 = vsel %vm299, %v1130, 0.0
      %v1147 = vsel %vm299, %v1131, 0.0
      %v1148 = vadd.f32 %v1146, %v1147
      %v1149 = vsel %vm299, %v1132, 0.0
      %v1150 = vadd.f32 %v1148, %v1149
      %v1151 = vsel %vm299, %v1133, 0.0
      %v1152 = vadd.f32 %v1150, %v1151
      %v1153 = vsel %vm299, %v1134, 0.0
      %v1154 = vadd.f32 %v1152, %v1153
      %v1155 = vsel %vm299, %v1135, 0.0
      %v1156 = vadd.f32 %v1154, %v1155
      %v1157 = vsel %vm299, %v1136, 0.0
      %v1158 = vadd.f32 %v1156, %v1157
      %v1159 = vsel %vm299, %v1137, 0.0
      %v1160 = vadd.f32 %v1158, %v1159
      %v1161 = vsel %vm299, %v1138, 0.0
      %v1162 = vadd.f32 %v1160, %v1161
      %v1163 = vsel %vm299, %v1139, 0.0
      %v1164 = vadd.f32 %v1162, %v1163
      %v1165 = vsel %vm299, %v1140, 0.0
      %v1166 = vadd.f32 %v1164, %v1165
      %v1167 = vsel %vm299, %v1141, 0.0
      %v1168 = vadd.f32 %v1166, %v1167
      %v1169 = vsel %vm299, %v1142, 0.0
      %v1170 = vadd.f32 %v1168, %v1169
      %v1171 = vsel %vm299, %v1143, 0.0
      %v1172 = vadd.f32 %v1170, %v1171
      %v1173 = vsel %vm299, %v1144, 0.0
      %v1174 = vadd.f32 %v1172, %v1173
      %v1175 = vsel %vm299, %v1145, 0.0
      %v1176 = vadd.f32 %v1174, %v1175
      %v1177 = vrot.slane %v1176, 4
      %v1178 = vadd.f32 %v1176, %v1177
      %v1179 = vrot.slane %v1178, 2
      %v1180 = vadd.f32 %v1178, %v1179
      %v1181 = vrot.slane %v1180, 1
      %v1182 = vadd.f32 %v1180, %v1181
      %v1183 = vmul.f32 %v1182, %v1112
      %v1184 = vadd.f32 %v1183, 1e-05
      %v1185 = vrsqrt.pop %v1184
      %v1186 = vmul.f32 %v1114, %v1185
      %v1187 = vmul.f32 %v1115, %v1185
      %v1188 = vmul.f32 %v1116, %v1185
      %v1189 = vmul.f32 %v1117, %v1185
      %v1190 = vmul.f32 %v1118, %v1185
      %v1191 = vmul.f32 %v1119, %v1185
      %v1192 = vmul.f32 %v1120, %v1185
      %v1193 = vmul.f32 %v1121, %v1185
      %v1194 = vmul.f32 %v1122, %v1185
      %v1195 = vmul.f32 %v1123, %v1185
      %v1196 = vmul.f32 %v1124, %v1185
      %v1197 = vmul.f32 %v1125, %v1185
      %v1198 = vmul.f32 %v1126, %v1185
      %v1199 = vmul.f32 %v1127, %v1185
      %v1200 = vmul.f32 %v1128, %v1185
      %v1201 = vmul.f32 %v1129, %v1185
      %v1202 = vld [vmem:[%s289] sm:$0x7]
      %v1203 = vld [vmem:[%s289 + $0x4] sm:$0x7]
      %v1204 = vld [vmem:[%s289 + $0x8] sm:$0x7]
      %v1205 = vmax.f32 %v1186, 0.0
      %v1206 = vmax.f32 %v1187, 0.0
      %v1207 = vmax.f32 %v1188, 0.0
      %v1208 = vmax.f32 %v1189, 0.0
      %v1209 = vmax.f32 %v1190, 0.0
      %v1210 = vmax.f32 %v1191, 0.0
      %v1211 = vmax.f32 %v1192, 0.0
      %v1212 = vmax.f32 %v1193, 0.0
      %v1213 = vmax.f32 %v1194, 0.0
      %v1214 = vmax.f32 %v1195, 0.0
      %v1215 = vmax.f32 %v1196, 0.0
      %v1216 = vmax.f32 %v1197, 0.0
      %v1217 = vmax.f32 %v1198, 0.0
      %v1218 = vmax.f32 %v1199, 0.0
      %v1219 = vmax.f32 %v1200, 0.0
      %v1220 = vmax.f32 %v1201, 0.0
      %1221 = vst.msk [vmem:[%s395 + $0x8] sm:$0xff] %vm299, %v1205
      %1222 = vst.msk [vmem:[%s395 + $0x20] sm:$0xff] %vm299, %v1206
      %1223 = vst.msk [vmem:[%s395 + $0x38] sm:$0xff] %vm299, %v1207
      %1224 = vst.msk [vmem:[%s395 + $0x50] sm:$0xff] %vm299, %v1208
      %1225 = vst.msk [vmem:[%s395 + $0x68] sm:$0xff] %vm299, %v1209
      %1226 = vst.msk [vmem:[%s395 + $0x80] sm:$0xff] %vm299, %v1210
      %1227 = vst.msk [vmem:[%s395 + $0x98] sm:$0xff] %vm299, %v1211
      %1228 = vst.msk [vmem:[%s395 + $0xb0] sm:$0xff] %vm299, %v1212
      %1229 = vst.msk [vmem:[%s395 + $0xf8] sm:$0xff] %vm299, %v1213
      %1230 = vst.msk [vmem:[%s395 + $0x110] sm:$0xff] %vm299, %v1214
      %1231 = vst.msk [vmem:[%s395 + $0x128] sm:$0xff] %vm299, %v1215
      %1232 = vst.msk [vmem:[%s395 + $0x140] sm:$0xff] %vm299, %v1216
      %1233 = vst.msk [vmem:[%s395 + $0x158] sm:$0xff] %vm299, %v1217
      %1234 = vst.msk [vmem:[%s395 + $0x170] sm:$0xff] %vm299, %v1218
      %1235 = vst.msk [vmem:[%s395 + $0x188] sm:$0xff] %vm299, %v1219
      %1236 = vst.msk [vmem:[%s395 + $0x1a0] sm:$0xff] %vm299, %v1220
      %v1237 = vld [vmem:[#allocation2 + $0x7] sm:$0xff]
      %v1238 = vld [vmem:[#allocation2 + $0x1f] sm:$0xff]
      %v1239 = vld [vmem:[#allocation2 + $0x37] sm:$0xff]
      %v1240 = vld [vmem:[#allocation2 + $0x4f] sm:$0xff]
      %v1241 = vld [vmem:[#allocation2 + $0x67] sm:$0xff]
      %v1242 = vld [vmem:[#allocation2 + $0x7f] sm:$0xff]
      %v1243 = vld [vmem:[#allocation2 + $0x97] sm:$0xff]
      %v1244 = vld [vmem:[#allocation2 + $0xaf] sm:$0xff]
      %v1245 = vld [vmem:[#allocation2 + $0xf7] sm:$0xff]
      %v1246 = vld [vmem:[#allocation2 + $0x10f] sm:$0xff]
      %v1247 = vld [vmem:[#allocation2 + $0x127] sm:$0xff]
      %v1248 = vld [vmem:[#allocation2 + $0x13f] sm:$0xff]
      %v1249 = vld [vmem:[#allocation2 + $0x157] sm:$0xff]
      %v1250 = vld [vmem:[#allocation2 + $0x16f] sm:$0xff]
      %v1251 = vld [vmem:[#allocation2 + $0x187] sm:$0xff]
      %v1252 = vld [vmem:[#allocation2 + $0x19f] sm:$0xff]
      %v1253 = vlaneseq
      %v1254 = vshrl.u32 %v1253, 7
      %v1255 = vsub.s32 0, %v1254
      %v1256 = vrot.slane %v1202, %v1255
      %v1257 = vmul.f32 %v1237, %v1256
      %v1258 = vmul.f32 %v1238, %v1256
      %v1259 = vmul.f32 %v1239, %v1256
      %v1260 = vmul.f32 %v1240, %v1256
      %v1261 = vmul.f32 %v1241, %v1256
      %v1262 = vmul.f32 %v1242, %v1256
      %v1263 = vmul.f32 %v1243, %v1256
      %v1264 = vmul.f32 %v1244, %v1256
      %v1265 = vmul.f32 %v1245, %v1256
      %v1266 = vmul.f32 %v1246, %v1256
      %v1267 = vmul.f32 %v1247, %v1256
      %v1268 = vmul.f32 %v1248, %v1256
      %v1269 = vmul.f32 %v1249, %v1256
      %v1270 = vmul.f32 %v1250, %v1256
      %v1271 = vmul.f32 %v1251, %v1256
      %v1272 = vmul.f32 %v1252, %v1256
      %v1273 = vadd.f32 %v1257, 0.0
      %v1274 = vadd.f32 %v1258, 0.0
      %v1275 = vadd.f32 %v1259, 0.0
      %v1276 = vadd.f32 %v1260, 0.0
      %v1277 = vadd.f32 %v1261, 0.0
      %v1278 = vadd.f32 %v1262, 0.0
      %v1279 = vadd.f32 %v1263, 0.0
      %v1280 = vadd.f32 %v1264, 0.0
      %v1281 = vadd.f32 %v1265, 0.0
      %v1282 = vadd.f32 %v1266, 0.0
      %v1283 = vadd.f32 %v1267, 0.0
      %v1284 = vadd.f32 %v1268, 0.0
      %v1285 = vadd.f32 %v1269, 0.0
      %v1286 = vadd.f32 %v1270, 0.0
      %v1287 = vadd.f32 %v1271, 0.0
      %v1288 = vadd.f32 %v1272, 0.0
      %v1289 = vld [vmem:[#allocation2 + $0x8] sm:$0xff]
      %v1290 = vld [vmem:[#allocation2 + $0x20] sm:$0xff]
      %v1291 = vld [vmem:[#allocation2 + $0x38] sm:$0xff]
      %v1292 = vld [vmem:[#allocation2 + $0x50] sm:$0xff]
      %v1293 = vld [vmem:[#allocation2 + $0x68] sm:$0xff]
      %v1294 = vld [vmem:[#allocation2 + $0x80] sm:$0xff]
      %v1295 = vld [vmem:[#allocation2 + $0x98] sm:$0xff]
      %v1296 = vld [vmem:[#allocation2 + $0xb0] sm:$0xff]
      %v1297 = vld [vmem:[#allocation2 + $0xf8] sm:$0xff]
      %v1298 = vld [vmem:[#allocation2 + $0x110] sm:$0xff]
      %v1299 = vld [vmem:[#allocation2 + $0x128] sm:$0xff]
      %v1300 = vld [vmem:[#allocation2 + $0x140] sm:$0xff]
      %v1301 = vld [vmem:[#allocation2 + $0x158] sm:$0xff]
      %v1302 = vld [vmem:[#allocation2 + $0x170] sm:$0xff]
      %v1303 = vld [vmem:[#allocation2 + $0x188] sm:$0xff]
      %v1304 = vld [vmem:[#allocation2 + $0x1a0] sm:$0xff]
      %v1305 = vlaneseq
      %v1306 = vshrl.u32 %v1305, 7
      %v1307 = vsub.s32 1, %v1306
      %v1308 = vrot.slane %v1202, %v1307
      %v1309 = vmul.f32 %v1289, %v1308
      %v1310 = vmul.f32 %v1290, %v1308
      %v1311 = vmul.f32 %v1291, %v1308
      %v1312 = vmul.f32 %v1292, %v1308
      %v1313 = vmul.f32 %v1293, %v1308
      %v1314 = vmul.f32 %v1294, %v1308
      %v1315 = vmul.f32 %v1295, %v1308
      %v1316 = vmul.f32 %v1296, %v1308
      %v1317 = vmul.f32 %v1297, %v1308
      %v1318 = vmul.f32 %v1298, %v1308
      %v1319 = vmul.f32 %v1299, %v1308
      %v1320 = vmul.f32 %v1300, %v1308
      %v1321 = vmul.f32 %v1301, %v1308
      %v1322 = vmul.f32 %v1302, %v1308
      %v1323 = vmul.f32 %v1303, %v1308
      %v1324 = vmul.f32 %v1304, %v1308
      %v1325 = vadd.f32 %v1273, %v1309
      %v1326 = vadd.f32 %v1274, %v1310
      %v1327 = vadd.f32 %v1275, %v1311
      %v1328 = vadd.f32 %v1276, %v1312
      %v1329 = vadd.f32 %v1277, %v1313
      %v1330 = vadd.f32 %v1278, %v1314
      %v1331 = vadd.f32 %v1279, %v1315
      %v1332 = vadd.f32 %v1280, %v1316
      %v1333 = vadd.f32 %v1281, %v1317
      %v1334 = vadd.f32 %v1282, %v1318
      %v1335 = vadd.f32 %v1283, %v1319
      %v1336 = vadd.f32 %v1284, %v1320
      %v1337 = vadd.f32 %v1285, %v1321
      %v1338 = vadd.f32 %v1286, %v1322
      %v1339 = vadd.f32 %v1287, %v1323
      %v1340 = vadd.f32 %v1288, %v1324
      %v1341 = vld [vmem:[#allocation2 + $0x9] sm:$0xff]
      %v1342 = vld [vmem:[#allocation2 + $0x21] sm:$0xff]
      %v1343 = vld [vmem:[#allocation2 + $0x39] sm:$0xff]
      %v1344 = vld [vmem:[#allocation2 + $0x51] sm:$0xff]
      %v1345 = vld [vmem:[#allocation2 + $0x69] sm:$0xff]
      %v1346 = vld [vmem:[#allocation2 + $0x81] sm:$0xff]
      %v1347 = vld [vmem:[#allocation2 + $0x99] sm:$0xff]
      %v1348 = vld [vmem:[#allocation2 + $0xb1] sm:$0xff]
      %v1349 = vld [vmem:[#allocation2 + $0xf9] sm:$0xff]
      %v1350 = vld [vmem:[#allocation2 + $0x111] sm:$0xff]
      %v1351 = vld [vmem:[#allocation2 + $0x129] sm:$0xff]
      %v1352 = vld [vmem:[#allocation2 + $0x141] sm:$0xff]
      %v1353 = vld [vmem:[#allocation2 + $0x159] sm:$0xff]
      %v1354 = vld [vmem:[#allocation2 + $0x171] sm:$0xff]
      %v1355 = vld [vmem:[#allocation2 + $0x189] sm:$0xff]
      %v1356 = vld [vmem:[#allocation2 + $0x1a1] sm:$0xff]
      %v1357 = vlaneseq
      %v1358 = vshrl.u32 %v1357, 7
      %v1359 = vsub.s32 2, %v1358
      %v1360 = vrot.slane %v1202, %v1359
      %v1361 = vmul.f32 %v1341, %v1360
      %v1362 = vmul.f32 %v1342, %v1360
      %v1363 = vmul.f32 %v1343, %v1360
      %v1364 = vmul.f32 %v1344, %v1360
      %v1365 = vmul.f32 %v1345, %v1360
      %v1366 = vmul.f32 %v1346, %v1360
      %v1367 = vmul.f32 %v1347, %v1360
      %v1368 = vmul.f32 %v1348, %v1360
      %v1369 = vmul.f32 %v1349, %v1360
      %v1370 = vmul.f32 %v1350, %v1360
      %v1371 = vmul.f32 %v1351, %v1360
      %v1372 = vmul.f32 %v1352, %v1360
      %v1373 = vmul.f32 %v1353, %v1360
      %v1374 = vmul.f32 %v1354, %v1360
      %v1375 = vmul.f32 %v1355, %v1360
      %v1376 = vmul.f32 %v1356, %v1360
      %v1377 = vadd.f32 %v1325, %v1361
      %v1378 = vadd.f32 %v1326, %v1362
      %v1379 = vadd.f32 %v1327, %v1363
      %v1380 = vadd.f32 %v1328, %v1364
      %v1381 = vadd.f32 %v1329, %v1365
      %v1382 = vadd.f32 %v1330, %v1366
      %v1383 = vadd.f32 %v1331, %v1367
      %v1384 = vadd.f32 %v1332, %v1368
      %v1385 = vadd.f32 %v1333, %v1369
      %v1386 = vadd.f32 %v1334, %v1370
      %v1387 = vadd.f32 %v1335, %v1371
      %v1388 = vadd.f32 %v1336, %v1372
      %v1389 = vadd.f32 %v1337, %v1373
      %v1390 = vadd.f32 %v1338, %v1374
      %v1391 = vadd.f32 %v1339, %v1375
      %v1392 = vadd.f32 %v1340, %v1376
      %v1393 = vld [vmem:[%s395 + $0x7] sm:$0xff]
      %v1394 = vld [vmem:[%s395 + $0x1f] sm:$0xff]
      %v1395 = vld [vmem:[%s395 + $0x37] sm:$0xff]
      %v1396 = vld [vmem:[%s395 + $0x4f] sm:$0xff]
      %v1397 = vld [vmem:[%s395 + $0x67] sm:$0xff]
      %v1398 = vld [vmem:[%s395 + $0x7f] sm:$0xff]
      %v1399 = vld [vmem:[%s395 + $0x97] sm:$0xff]
      %v1400 = vld [vmem:[%s395 + $0xaf] sm:$0xff]
      %v1401 = vld [vmem:[%s395 + $0xf7] sm:$0xff]
      %v1402 = vld [vmem:[%s395 + $0x10f] sm:$0xff]
      %v1403 = vld [vmem:[%s395 + $0x127] sm:$0xff]
      %v1404 = vld [vmem:[%s395 + $0x13f] sm:$0xff]
      %v1405 = vld [vmem:[%s395 + $0x157] sm:$0xff]
      %v1406 = vld [vmem:[%s395 + $0x16f] sm:$0xff]
      %v1407 = vld [vmem:[%s395 + $0x187] sm:$0xff]
      %v1408 = vld [vmem:[%s395 + $0x19f] sm:$0xff]
      %v1409 = vlaneseq
      %v1410 = vshrl.u32 %v1409, 7
      %v1411 = vsub.s32 0, %v1410
      %v1412 = vrot.slane %v1203, %v1411
      %v1413 = vmul.f32 %v1393, %v1412
      %v1414 = vmul.f32 %v1394, %v1412
      %v1415 = vmul.f32 %v1395, %v1412
      %v1416 = vmul.f32 %v1396, %v1412
      %v1417 = vmul.f32 %v1397, %v1412
      %v1418 = vmul.f32 %v1398, %v1412
      %v1419 = vmul.f32 %v1399, %v1412
      %v1420 = vmul.f32 %v1400, %v1412
      %v1421 = vmul.f32 %v1401, %v1412
      %v1422 = vmul.f32 %v1402, %v1412
      %v1423 = vmul.f32 %v1403, %v1412
      %v1424 = vmul.f32 %v1404, %v1412
      %v1425 = vmul.f32 %v1405, %v1412
      %v1426 = vmul.f32 %v1406, %v1412
      %v1427 = vmul.f32 %v1407, %v1412
      %v1428 = vmul.f32 %v1408, %v1412
      %v1429 = vadd.f32 %v1377, %v1413
      %v1430 = vadd.f32 %v1378, %v1414
      %v1431 = vadd.f32 %v1379, %v1415
      %v1432 = vadd.f32 %v1380, %v1416
      %v1433 = vadd.f32 %v1381, %v1417
      %v1434 = vadd.f32 %v1382, %v1418
      %v1435 = vadd.f32 %v1383, %v1419
      %v1436 = vadd.f32 %v1384, %v1420
      %v1437 = vadd.f32 %v1385, %v1421
      %v1438 = vadd.f32 %v1386, %v1422
      %v1439 = vadd.f32 %v1387, %v1423
      %v1440 = vadd.f32 %v1388, %v1424
      %v1441 = vadd.f32 %v1389, %v1425
      %v1442 = vadd.f32 %v1390, %v1426
      %v1443 = vadd.f32 %v1391, %v1427
      %v1444 = vadd.f32 %v1392, %v1428
      %v1445 = vld [vmem:[%s395 + $0x8] sm:$0xff]
      %v1446 = vld [vmem:[%s395 + $0x20] sm:$0xff]
      %v1447 = vld [vmem:[%s395 + $0x38] sm:$0xff]
      %v1448 = vld [vmem:[%s395 + $0x50] sm:$0xff]
      %v1449 = vld [vmem:[%s395 + $0x68] sm:$0xff]
      %v1450 = vld [vmem:[%s395 + $0x80] sm:$0xff]
      %v1451 = vld [vmem:[%s395 + $0x98] sm:$0xff]
      %v1452 = vld [vmem:[%s395 + $0xb0] sm:$0xff]
      %v1453 = vld [vmem:[%s395 + $0xf8] sm:$0xff]
      %v1454 = vld [vmem:[%s395 + $0x110] sm:$0xff]
      %v1455 = vld [vmem:[%s395 + $0x128] sm:$0xff]
      %v1456 = vld [vmem:[%s395 + $0x140] sm:$0xff]
      %v1457 = vld [vmem:[%s395 + $0x158] sm:$0xff]
      %v1458 = vld [vmem:[%s395 + $0x170] sm:$0xff]
      %v1459 = vld [vmem:[%s395 + $0x188] sm:$0xff]
      %v1460 = vld [vmem:[%s395 + $0x1a0] sm:$0xff]
      %v1461 = vlaneseq
      %v1462 = vshrl.u32 %v1461, 7
      %v1463 = vsub.s32 1, %v1462
      %v1464 = vrot.slane %v1203, %v1463
      %v1465 = vmul.f32 %v1445, %v1464
      %v1466 = vmul.f32 %v1446, %v1464
      %v1467 = vmul.f32 %v1447, %v1464
      %v1468 = vmul.f32 %v1448, %v1464
      %v1469 = vmul.f32 %v1449, %v1464
      %v1470 = vmul.f32 %v1450, %v1464
      %v1471 = vmul.f32 %v1451, %v1464
      %v1472 = vmul.f32 %v1452, %v1464
      %v1473 = vmul.f32 %v1453, %v1464
      %v1474 = vmul.f32 %v1454, %v1464
      %v1475 = vmul.f32 %v1455, %v1464
      %v1476 = vmul.f32 %v1456, %v1464
      %v1477 = vmul.f32 %v1457, %v1464
      %v1478 = vmul.f32 %v1458, %v1464
      %v1479 = vmul.f32 %v1459, %v1464
      %v1480 = vmul.f32 %v1460, %v1464
      %v1481 = vadd.f32 %v1429, %v1465
      %v1482 = vadd.f32 %v1430, %v1466
      %v1483 = vadd.f32 %v1431, %v1467
      %v1484 = vadd.f32 %v1432, %v1468
      %v1485 = vadd.f32 %v1433, %v1469
      %v1486 = vadd.f32 %v1434, %v1470
      %v1487 = vadd.f32 %v1435, %v1471
      %v1488 = vadd.f32 %v1436, %v1472
      %v1489 = vadd.f32 %v1437, %v1473
      %v1490 = vadd.f32 %v1438, %v1474
      %v1491 = vadd.f32 %v1439, %v1475
      %v1492 = vadd.f32 %v1440, %v1476
      %v1493 = vadd.f32 %v1441, %v1477
      %v1494 = vadd.f32 %v1442, %v1478
      %v1495 = vadd.f32 %v1443, %v1479
      %v1496 = vadd.f32 %v1444, %v1480
      %v1497 = vld [vmem:[%s395 + $0x9] sm:$0xff]
      %v1498 = vld [vmem:[%s395 + $0x21] sm:$0xff]
      %v1499 = vld [vmem:[%s395 + $0x39] sm:$0xff]
      %v1500 = vld [vmem:[%s395 + $0x51] sm:$0xff]
      %v1501 = vld [vmem:[%s395 + $0x69] sm:$0xff]
      %v1502 = vld [vmem:[%s395 + $0x81] sm:$0xff]
      %v1503 = vld [vmem:[%s395 + $0x99] sm:$0xff]
      %v1504 = vld [vmem:[%s395 + $0xb1] sm:$0xff]
      %v1505 = vld [vmem:[%s395 + $0xf9] sm:$0xff]
      %v1506 = vld [vmem:[%s395 + $0x111] sm:$0xff]
      %v1507 = vld [vmem:[%s395 + $0x129] sm:$0xff]
      %v1508 = vld [vmem:[%s395 + $0x141] sm:$0xff]
      %v1509 = vld [vmem:[%s395 + $0x159] sm:$0xff]
      %v1510 = vld [vmem:[%s395 + $0x171] sm:$0xff]
      %v1511 = vld [vmem:[%s395 + $0x189] sm:$0xff]
      %v1512 = vld [vmem:[%s395 + $0x1a1] sm:$0xff]
      %v1513 = vlaneseq
      %v1514 = vshrl.u32 %v1513, 7
      %v1515 = vsub.s32 2, %v1514
      %v1516 = vrot.slane %v1203, %v1515
      %v1517 = vmul.f32 %v1497, %v1516
      %v1518 = vmul.f32 %v1498, %v1516
      %v1519 = vmul.f32 %v1499, %v1516
      %v1520 = vmul.f32 %v1500, %v1516
      %v1521 = vmul.f32 %v1501, %v1516
      %v1522 = vmul.f32 %v1502, %v1516
      %v1523 = vmul.f32 %v1503, %v1516
      %v1524 = vmul.f32 %v1504, %v1516
      %v1525 = vmul.f32 %v1505, %v1516
      %v1526 = vmul.f32 %v1506, %v1516
      %v1527 = vmul.f32 %v1507, %v1516
      %v1528 = vmul.f32 %v1508, %v1516
      %v1529 = vmul.f32 %v1509, %v1516
      %v1530 = vmul.f32 %v1510, %v1516
      %v1531 = vmul.f32 %v1511, %v1516
      %v1532 = vmul.f32 %v1512, %v1516
      %v1533 = vadd.f32 %v1481, %v1517
      %v1534 = vadd.f32 %v1482, %v1518
      %v1535 = vadd.f32 %v1483, %v1519
      %v1536 = vadd.f32 %v1484, %v1520
      %v1537 = vadd.f32 %v1485, %v1521
      %v1538 = vadd.f32 %v1486, %v1522
      %v1539 = vadd.f32 %v1487, %v1523
      %v1540 = vadd.f32 %v1488, %v1524
      %v1541 = vadd.f32 %v1489, %v1525
      %v1542 = vadd.f32 %v1490, %v1526
      %v1543 = vadd.f32 %v1491, %v1527
      %v1544 = vadd.f32 %v1492, %v1528
      %v1545 = vadd.f32 %v1493, %v1529
      %v1546 = vadd.f32 %v1494, %v1530
      %v1547 = vadd.f32 %v1495, %v1531
      %v1548 = vadd.f32 %v1496, %v1532
      %v1549 = vld [vmem:[%s724 + $0x7] sm:$0xff]
      %v1550 = vld [vmem:[%s724 + $0x1f] sm:$0xff]
      %v1551 = vld [vmem:[%s724 + $0x37] sm:$0xff]
      %v1552 = vld [vmem:[%s724 + $0x4f] sm:$0xff]
      %v1553 = vld [vmem:[%s724 + $0x67] sm:$0xff]
      %v1554 = vld [vmem:[%s724 + $0x7f] sm:$0xff]
      %v1555 = vld [vmem:[%s724 + $0x97] sm:$0xff]
      %v1556 = vld [vmem:[%s724 + $0xaf] sm:$0xff]
      %v1557 = vld [vmem:[%s724 + $0xf7] sm:$0xff]
      %v1558 = vld [vmem:[%s724 + $0x10f] sm:$0xff]
      %v1559 = vld [vmem:[%s724 + $0x127] sm:$0xff]
      %v1560 = vld [vmem:[%s724 + $0x13f] sm:$0xff]
      %v1561 = vld [vmem:[%s724 + $0x157] sm:$0xff]
      %v1562 = vld [vmem:[%s724 + $0x16f] sm:$0xff]
      %v1563 = vld [vmem:[%s724 + $0x187] sm:$0xff]
      %v1564 = vld [vmem:[%s724 + $0x19f] sm:$0xff]
      %v1565 = vlaneseq
      %v1566 = vshrl.u32 %v1565, 7
      %v1567 = vsub.s32 0, %v1566
      %v1568 = vrot.slane %v1204, %v1567
      %v1569 = vmul.f32 %v1549, %v1568
      %v1570 = vmul.f32 %v1550, %v1568
      %v1571 = vmul.f32 %v1551, %v1568
      %v1572 = vmul.f32 %v1552, %v1568
      %v1573 = vmul.f32 %v1553, %v1568
      %v1574 = vmul.f32 %v1554, %v1568
      %v1575 = vmul.f32 %v1555, %v1568
      %v1576 = vmul.f32 %v1556, %v1568
      %v1577 = vmul.f32 %v1557, %v1568
      %v1578 = vmul.f32 %v1558, %v1568
      %v1579 = vmul.f32 %v1559, %v1568
      %v1580 = vmul.f32 %v1560, %v1568
      %v1581 = vmul.f32 %v1561, %v1568
      %v1582 = vmul.f32 %v1562, %v1568
      %v1583 = vmul.f32 %v1563, %v1568
      %v1584 = vmul.f32 %v1564, %v1568
      %v1585 = vadd.f32 %v1533, %v1569
      %v1586 = vadd.f32 %v1534, %v1570
      %v1587 = vadd.f32 %v1535, %v1571
      %v1588 = vadd.f32 %v1536, %v1572
      %v1589 = vadd.f32 %v1537, %v1573
      %v1590 = vadd.f32 %v1538, %v1574
      %v1591 = vadd.f32 %v1539, %v1575
      %v1592 = vadd.f32 %v1540, %v1576
      %v1593 = vadd.f32 %v1541, %v1577
      %v1594 = vadd.f32 %v1542, %v1578
      %v1595 = vadd.f32 %v1543, %v1579
      %v1596 = vadd.f32 %v1544, %v1580
      %v1597 = vadd.f32 %v1545, %v1581
      %v1598 = vadd.f32 %v1546, %v1582
      %v1599 = vadd.f32 %v1547, %v1583
      %v1600 = vadd.f32 %v1548, %v1584
      %v1601 = vld [vmem:[%s724 + $0x8] sm:$0xff]
      %v1602 = vld [vmem:[%s724 + $0x20] sm:$0xff]
      %v1603 = vld [vmem:[%s724 + $0x38] sm:$0xff]
      %v1604 = vld [vmem:[%s724 + $0x50] sm:$0xff]
      %v1605 = vld [vmem:[%s724 + $0x68] sm:$0xff]
      %v1606 = vld [vmem:[%s724 + $0x80] sm:$0xff]
      %v1607 = vld [vmem:[%s724 + $0x98] sm:$0xff]
      %v1608 = vld [vmem:[%s724 + $0xb0] sm:$0xff]
      %v1609 = vld [vmem:[%s724 + $0xf8] sm:$0xff]
      %v1610 = vld [vmem:[%s724 + $0x110] sm:$0xff]
      %v1611 = vld [vmem:[%s724 + $0x128] sm:$0xff]
      %v1612 = vld [vmem:[%s724 + $0x140] sm:$0xff]
      %v1613 = vld [vmem:[%s724 + $0x158] sm:$0xff]
      %v1614 = vld [vmem:[%s724 + $0x170] sm:$0xff]
      %v1615 = vld [vmem:[%s724 + $0x188] sm:$0xff]
      %v1616 = vld [vmem:[%s724 + $0x1a0] sm:$0xff]
      %v1617 = vlaneseq
      %v1618 = vshrl.u32 %v1617, 7
      %v1619 = vsub.s32 1, %v1618
      %v1620 = vrot.slane %v1204, %v1619
      %v1621 = vmul.f32 %v1601, %v1620
      %v1622 = vmul.f32 %v1602, %v1620
      %v1623 = vmul.f32 %v1603, %v1620
      %v1624 = vmul.f32 %v1604, %v1620
      %v1625 = vmul.f32 %v1605, %v1620
      %v1626 = vmul.f32 %v1606, %v1620
      %v1627 = vmul.f32 %v1607, %v1620
      %v1628 = vmul.f32 %v1608, %v1620
      %v1629 = vmul.f32 %v1609, %v1620
      %v1630 = vmul.f32 %v1610, %v1620
      %v1631 = vmul.f32 %v1611, %v1620
      %v1632 = vmul.f32 %v1612, %v1620
      %v1633 = vmul.f32 %v1613, %v1620
      %v1634 = vmul.f32 %v1614, %v1620
      %v1635 = vmul.f32 %v1615, %v1620
      %v1636 = vmul.f32 %v1616, %v1620
      %v1637 = vadd.f32 %v1585, %v1621
      %v1638 = vadd.f32 %v1586, %v1622
      %v1639 = vadd.f32 %v1587, %v1623
      %v1640 = vadd.f32 %v1588, %v1624
      %v1641 = vadd.f32 %v1589, %v1625
      %v1642 = vadd.f32 %v1590, %v1626
      %v1643 = vadd.f32 %v1591, %v1627
      %v1644 = vadd.f32 %v1592, %v1628
      %v1645 = vadd.f32 %v1593, %v1629
      %v1646 = vadd.f32 %v1594, %v1630
      %v1647 = vadd.f32 %v1595, %v1631
      %v1648 = vadd.f32 %v1596, %v1632
      %v1649 = vadd.f32 %v1597, %v1633
      %v1650 = vadd.f32 %v1598, %v1634
      %v1651 = vadd.f32 %v1599, %v1635
      %v1652 = vadd.f32 %v1600, %v1636
      %v1653 = vld [vmem:[%s724 + $0x9] sm:$0xff]
      %v1654 = vld [vmem:[%s724 + $0x21] sm:$0xff]
      %v1655 = vld [vmem:[%s724 + $0x39] sm:$0xff]
      %v1656 = vld [vmem:[%s724 + $0x51] sm:$0xff]
      %v1657 = vld [vmem:[%s724 + $0x69] sm:$0xff]
      %v1658 = vld [vmem:[%s724 + $0x81] sm:$0xff]
      %v1659 = vld [vmem:[%s724 + $0x99] sm:$0xff]
      %v1660 = vld [vmem:[%s724 + $0xb1] sm:$0xff]
      %v1661 = vld [vmem:[%s724 + $0xf9] sm:$0xff]
      %v1662 = vld [vmem:[%s724 + $0x111] sm:$0xff]
      %v1663 = vld [vmem:[%s724 + $0x129] sm:$0xff]
      %v1664 = vld [vmem:[%s724 + $0x141] sm:$0xff]
      %v1665 = vld [vmem:[%s724 + $0x159] sm:$0xff]
      %v1666 = vld [vmem:[%s724 + $0x171] sm:$0xff]
      %v1667 = vld [vmem:[%s724 + $0x189] sm:$0xff]
      %v1668 = vld [vmem:[%s724 + $0x1a1] sm:$0xff]
      %v1669 = vlaneseq
      %v1670 = vshrl.u32 %v1669, 7
      %v1671 = vsub.s32 2, %v1670
      %v1672 = vrot.slane %v1204, %v1671
      %v1673 = vmul.f32 %v1653, %v1672
      %v1674 = vmul.f32 %v1654, %v1672
      %v1675 = vmul.f32 %v1655, %v1672
      %v1676 = vmul.f32 %v1656, %v1672
      %v1677 = vmul.f32 %v1657, %v1672
      %v1678 = vmul.f32 %v1658, %v1672
      %v1679 = vmul.f32 %v1659, %v1672
      %v1680 = vmul.f32 %v1660, %v1672
      %v1681 = vmul.f32 %v1661, %v1672
      %v1682 = vmul.f32 %v1662, %v1672
      %v1683 = vmul.f32 %v1663, %v1672
      %v1684 = vmul.f32 %v1664, %v1672
      %v1685 = vmul.f32 %v1665, %v1672
      %v1686 = vmul.f32 %v1666, %v1672
      %v1687 = vmul.f32 %v1667, %v1672
      %v1688 = vmul.f32 %v1668, %v1672
      %v1689 = vadd.f32 %v1637, %v1673
      %v1690 = vadd.f32 %v1638, %v1674
      %v1691 = vadd.f32 %v1639, %v1675
      %v1692 = vadd.f32 %v1640, %v1676
      %v1693 = vadd.f32 %v1641, %v1677
      %v1694 = vadd.f32 %v1642, %v1678
      %v1695 = vadd.f32 %v1643, %v1679
      %v1696 = vadd.f32 %v1644, %v1680
      %v1697 = vadd.f32 %v1645, %v1681
      %v1698 = vadd.f32 %v1646, %v1682
      %v1699 = vadd.f32 %v1647, %v1683
      %v1700 = vadd.f32 %v1648, %v1684
      %v1701 = vadd.f32 %v1649, %v1685
      %v1702 = vadd.f32 %v1650, %v1686
      %v1703 = vadd.f32 %v1651, %v1687
      %v1704 = vadd.f32 %v1652, %v1688
      %v1705 = vld [vmem:[%s293] sm:$0xff]
      %v1707 = vsel %vm299, %v1689, 0
      %v1710 = vsel %vm299, %v1690, 0
      %v1713 = vsel %vm299, %v1691, 0
      %v1716 = vsel %vm299, %v1692, 0
      %v1719 = vsel %vm299, %v1693, 0
      %v1722 = vsel %vm299, %v1694, 0
      %v1725 = vsel %vm299, %v1695, 0
      %v1728 = vsel %vm299, %v1696, 0
      %v1731 = vsel %vm299, %v1697, 0
      %v1734 = vsel %vm299, %v1698, 0
      %v1737 = vsel %vm299, %v1699, 0
      %v1740 = vsel %vm299, %v1700, 0
      %v1743 = vsel %vm299, %v1701, 0
      %v1746 = vsel %vm299, %v1702, 0
      %v1749 = vsel %vm299, %v1703, 0
      %v1752 = vsel %vm299, %v1704, 0
      %1754 = vmatprep.subr.mxu0 0.0
      %1755 = vmatpush1.msra.mxu0 0.0
      %1756 = vmatprep.subr.mxu0 0.0
      %1757 = vmatpush1.msra.mxu0 0.0
      %1758 = vmatprep.subr.mxu0 0.0
      %1759 = vmatpush1.msra.mxu0 0.0
      %1760 = vmatprep.subr.mxu0 0.0
      %1761 = vmatpush1.msra.mxu0 0.0
      %1762 = vmatprep.subr.mxu0 0.0
      %1763 = vmatpush1.msra.mxu0 0.0
      %1764 = vmatprep.subr.mxu0 0.0
      %1765 = vmatpush1.msra.mxu0 0.0
      %1766 = vmatprep.subr.mxu0 0.0
      %1767 = vmatpush1.msra.mxu0 0.0
      %1768 = vmatprep.subr.mxu0 0.0
      %1769 = vmatpush1.msra.mxu0 0.0
      %1770 = vmatprep.subr.mxu0 0.0
      %1771 = vmatpush1.msra.mxu0 0.0
      %1772 = vmatprep.subr.mxu0 0.0
      %1773 = vmatpush1.msra.mxu0 0.0
      %1774 = vmatprep.subr.mxu0 0.0
      %1775 = vmatpush1.msra.mxu0 0.0
      %1776 = vmatprep.subr.mxu0 0.0
      %1777 = vmatpush1.msra.mxu0 0.0
      %1778 = vmatprep.subr.mxu0 0.0
      %1779 = vmatpush1.msra.mxu0 0.0
      %1780 = vmatprep.subr.mxu0 0.0
      %1781 = vmatpush1.msra.mxu0 0.0
      %1782 = vmatprep.subr.mxu0 0.0
      %1783 = vmatpush1.msra.mxu0 0.0
      %1784 = vmatprep.subr.mxu0 0.0
      %1785 = vmatpush1.msra.mxu0 %v1705
      %1786 = vmatprep.subr.mxu0 0.0
      %1787 = vmatpush2.msra.mxu0 0.0
      %1788 = vmatprep.subr.mxu0 0.0
      %1789 = vmatpush2.msra.mxu0 0.0
      %1790 = vmatprep.subr.mxu0 0.0
      %1791 = vmatpush2.msra.mxu0 0.0
      %1792 = vmatprep.subr.mxu0 0.0
      %1793 = vmatpush2.msra.mxu0 0.0
      %1794 = vmatprep.subr.mxu0 0.0
      %1795 = vmatpush2.msra.mxu0 0.0
      %1796 = vmatprep.subr.mxu0 0.0
      %1797 = vmatpush2.msra.mxu0 0.0
      %1798 = vmatprep.subr.mxu0 0.0
      %1799 = vmatpush2.msra.mxu0 0.0
      %1800 = vmatprep.subr.mxu0 0.0
      %1801 = vmatpush2.msra.mxu0 0.0
      %1802 = vmatprep.subr.mxu0 0.0
      %1803 = vmatpush2.msra.mxu0 0.0
      %1804 = vmatprep.subr.mxu0 0.0
      %1805 = vmatpush2.msra.mxu0 0.0
      %1806 = vmatprep.subr.mxu0 0.0
      %1807 = vmatpush2.msra.mxu0 0.0
      %1808 = vmatprep.subr.mxu0 0.0
      %1809 = vmatpush2.msra.mxu0 0.0
      %1810 = vmatprep.subr.mxu0 0.0
      %1811 = vmatpush2.msra.mxu0 0.0
      %1812 = vmatprep.subr.mxu0 0.0
      %1813 = vmatpush2.msra.mxu0 0.0
      %1814 = vmatprep.subr.mxu0 0.0
      %1815 = vmatpush2.msra.mxu0 0.0
      %1816 = vmatprep.subr.mxu0 0.0
      %1817 = vmatpush2.msra.mxu0 0.0
      %1818 = vmatprep.mubr.f32.mxu0 0.0
      %1819 = vmatmul.mubr.f32.gmra.mxu0 %v1707
      %v1820 = vpop.f32.mrf.mxu0
      %v1821 = vadd.f32 0.0, %v1820
      %v1822 = vpop.f32.mrf.mxu0
      %1823 = vmatprep.mubr.f32.mxu0 0.0
      %1824 = vmatmul.mubr.f32.gmra.mxu0 %v1710
      %v1825 = vpop.f32.mrf.mxu0
      %v1826 = vadd.f32 0.0, %v1825
      %v1827 = vpop.f32.mrf.mxu0
      %1828 = vmatprep.mubr.f32.mxu0 0.0
      %1829 = vmatmul.mubr.f32.gmra.mxu0 %v1713
      %v1830 = vpop.f32.mrf.mxu0
      %v1831 = vadd.f32 0.0, %v1830
      %v1832 = vpop.f32.mrf.mxu0
      %1833 = vmatprep.mubr.f32.mxu0 0.0
      %1834 = vmatmul.mubr.f32.gmra.mxu0 %v1716
      %v1835 = vpop.f32.mrf.mxu0
      %v1836 = vadd.f32 0.0, %v1835
      %v1837 = vpop.f32.mrf.mxu0
      %1838 = vmatprep.mubr.f32.mxu0 0.0
      %1839 = vmatmul.mubr.f32.gmra.mxu0 %v1719
      %v1840 = vpop.f32.mrf.mxu0
      %v1841 = vadd.f32 0.0, %v1840
      %v1842 = vpop.f32.mrf.mxu0
      %1843 = vmatprep.mubr.f32.mxu0 0.0
      %1844 = vmatmul.mubr.f32.gmra.mxu0 %v1722
      %v1845 = vpop.f32.mrf.mxu0
      %v1846 = vadd.f32 0.0, %v1845
      %v1847 = vpop.f32.mrf.mxu0
      %1848 = vmatprep.mubr.f32.mxu0 0.0
      %1849 = vmatmul.mubr.f32.gmra.mxu0 %v1725
      %v1850 = vpop.f32.mrf.mxu0
      %v1851 = vadd.f32 0.0, %v1850
      %v1852 = vpop.f32.mrf.mxu0
      %1853 = vmatprep.mubr.f32.mxu0 0.0
      %1854 = vmatmul.mubr.f32.gmra.mxu0 %v1728
      %v1855 = vpop.f32.mrf.mxu0
      %v1856 = vadd.f32 0.0, %v1855
      %v1857 = vpop.f32.mrf.mxu0
      %1858 = vmatprep.mubr.f32.mxu0 0.0
      %1859 = vmatmul.mubr.f32.gmra.mxu0 %v1731
      %v1860 = vpop.f32.mrf.mxu0
      %v1861 = vadd.f32 0.0, %v1860
      %v1862 = vpop.f32.mrf.mxu0
      %1863 = vmatprep.mubr.f32.mxu0 0.0
      %1864 = vmatmul.mubr.f32.gmra.mxu0 %v1734
      %v1865 = vpop.f32.mrf.mxu0
      %v1866 = vadd.f32 0.0, %v1865
      %v1867 = vpop.f32.mrf.mxu0
      %1868 = vmatprep.mubr.f32.mxu0 0.0
      %1869 = vmatmul.mubr.f32.gmra.mxu0 %v1737
      %v1870 = vpop.f32.mrf.mxu0
      %v1871 = vadd.f32 0.0, %v1870
      %v1872 = vpop.f32.mrf.mxu0
      %1873 = vmatprep.mubr.f32.mxu0 0.0
      %1874 = vmatmul.mubr.f32.gmra.mxu0 %v1740
      %v1875 = vpop.f32.mrf.mxu0
      %v1876 = vadd.f32 0.0, %v1875
      %v1877 = vpop.f32.mrf.mxu0
      %1878 = vmatprep.mubr.f32.mxu0 0.0
      %1879 = vmatmul.mubr.f32.gmra.mxu0 %v1743
      %v1880 = vpop.f32.mrf.mxu0
      %v1881 = vadd.f32 0.0, %v1880
      %v1882 = vpop.f32.mrf.mxu0
      %1883 = vmatprep.mubr.f32.mxu0 0.0
      %1884 = vmatmul.mubr.f32.gmra.mxu0 %v1746
      %v1885 = vpop.f32.mrf.mxu0
      %v1886 = vadd.f32 0.0, %v1885
      %v1887 = vpop.f32.mrf.mxu0
      %1888 = vmatprep.mubr.f32.mxu0 0.0
      %1889 = vmatmul.mubr.f32.gmra.mxu0 %v1749
      %v1890 = vpop.f32.mrf.mxu0
      %v1891 = vadd.f32 0.0, %v1890
      %v1892 = vpop.f32.mrf.mxu0
      %1893 = vmatprep.mubr.f32.mxu0 0.0
      %1894 = vmatmul.mubr.f32.gmra.mxu0 %v1752
      %v1895 = vpop.f32.mrf.mxu0
      %v1896 = vadd.f32 0.0, %v1895
      %v1897 = vpop.f32.mrf.mxu0
      %1898 = vdwg.mxu0
      %v1899 = vsel %vm299, %v1821, 0.0
      %v1900 = vsel %vm299, %v1826, 0.0
      %v1901 = vadd.f32 %v1899, %v1900
      %v1902 = vsel %vm299, %v1831, 0.0
      %v1903 = vadd.f32 %v1901, %v1902
      %v1904 = vsel %vm299, %v1836, 0.0
      %v1905 = vadd.f32 %v1903, %v1904
      %v1906 = vsel %vm299, %v1841, 0.0
      %v1907 = vadd.f32 %v1905, %v1906
      %v1908 = vsel %vm299, %v1846, 0.0
      %v1909 = vadd.f32 %v1907, %v1908
      %v1910 = vsel %vm299, %v1851, 0.0
      %v1911 = vadd.f32 %v1909, %v1910
      %v1912 = vsel %vm299, %v1856, 0.0
      %v1913 = vadd.f32 %v1911, %v1912
      %v1914 = vsel %vm299, %v1861, 0.0
      %v1915 = vadd.f32 %v1913, %v1914
      %v1916 = vsel %vm299, %v1866, 0.0
      %v1917 = vadd.f32 %v1915, %v1916
      %v1918 = vsel %vm299, %v1871, 0.0
      %v1919 = vadd.f32 %v1917, %v1918
      %v1920 = vsel %vm299, %v1876, 0.0
      %v1921 = vadd.f32 %v1919, %v1920
      %v1922 = vsel %vm299, %v1881, 0.0
      %v1923 = vadd.f32 %v1921, %v1922
      %v1924 = vsel %vm299, %v1886, 0.0
      %v1925 = vadd.f32 %v1923, %v1924
      %v1926 = vsel %vm299, %v1891, 0.0
      %v1927 = vadd.f32 %v1925, %v1926
      %v1928 = vsel %vm299, %v1896, 0.0
      %v1929 = vadd.f32 %v1927, %v1928
      %v1930 = vrot.slane %v1929, 4
      %v1931 = vadd.f32 %v1929, %v1930
      %v1932 = vrot.slane %v1931, 2
      %v1933 = vadd.f32 %v1931, %v1932
      %v1934 = vrot.slane %v1933, 1
      %v1935 = vadd.f32 %v1933, %v1934
      %v1936 = vmul.f32 %v1935, %v1112
      %v1937 = vsub.f32 %v1821, %v1936
      %v1938 = vsub.f32 %v1826, %v1936
      %v1939 = vsub.f32 %v1831, %v1936
      %v1940 = vsub.f32 %v1836, %v1936
      %v1941 = vsub.f32 %v1841, %v1936
      %v1942 = vsub.f32 %v1846, %v1936
      %v1943 = vsub.f32 %v1851, %v1936
      %v1944 = vsub.f32 %v1856, %v1936
      %v1945 = vsub.f32 %v1861, %v1936
      %v1946 = vsub.f32 %v1866, %v1936
      %v1947 = vsub.f32 %v1871, %v1936
      %v1948 = vsub.f32 %v1876, %v1936
      %v1949 = vsub.f32 %v1881, %v1936
      %v1950 = vsub.f32 %v1886, %v1936
      %v1951 = vsub.f32 %v1891, %v1936
      %v1952 = vsub.f32 %v1896, %v1936
      %v1953 = vmul.f32 %v1937, %v1937
      %v1954 = vmul.f32 %v1938, %v1938
      %v1955 = vmul.f32 %v1939, %v1939
      %v1956 = vmul.f32 %v1940, %v1940
      %v1957 = vmul.f32 %v1941, %v1941
      %v1958 = vmul.f32 %v1942, %v1942
      %v1959 = vmul.f32 %v1943, %v1943
      %v1960 = vmul.f32 %v1944, %v1944
      %v1961 = vmul.f32 %v1945, %v1945
      %v1962 = vmul.f32 %v1946, %v1946
      %v1963 = vmul.f32 %v1947, %v1947
      %v1964 = vmul.f32 %v1948, %v1948
      %v1965 = vmul.f32 %v1949, %v1949
      %v1966 = vmul.f32 %v1950, %v1950
      %v1967 = vmul.f32 %v1951, %v1951
      %v1968 = vmul.f32 %v1952, %v1952
      %v1969 = vsel %vm299, %v1953, 0.0
      %v1970 = vsel %vm299, %v1954, 0.0
      %v1971 = vadd.f32 %v1969, %v1970
      %v1972 = vsel %vm299, %v1955, 0.0
      %v1973 = vadd.f32 %v1971, %v1972
      %v1974 = vsel %vm299, %v1956, 0.0
      %v1975 = vadd.f32 %v1973, %v1974
      %v1976 = vsel %vm299, %v1957, 0.0
      %v1977 = vadd.f32 %v1975, %v1976
      %v1978 = vsel %vm299, %v1958, 0.0
      %v1979 = vadd.f32 %v1977, %v1978
      %v1980 = vsel %vm299, %v1959, 0.0
      %v1981 = vadd.f32 %v1979, %v1980
      %v1982 = vsel %vm299, %v1960, 0.0
      %v1983 = vadd.f32 %v1981, %v1982
      %v1984 = vsel %vm299, %v1961, 0.0
      %v1985 = vadd.f32 %v1983, %v1984
      %v1986 = vsel %vm299, %v1962, 0.0
      %v1987 = vadd.f32 %v1985, %v1986
      %v1988 = vsel %vm299, %v1963, 0.0
      %v1989 = vadd.f32 %v1987, %v1988
      %v1990 = vsel %vm299, %v1964, 0.0
      %v1991 = vadd.f32 %v1989, %v1990
      %v1992 = vsel %vm299, %v1965, 0.0
      %v1993 = vadd.f32 %v1991, %v1992
      %v1994 = vsel %vm299, %v1966, 0.0
      %v1995 = vadd.f32 %v1993, %v1994
      %v1996 = vsel %vm299, %v1967, 0.0
      %v1997 = vadd.f32 %v1995, %v1996
      %v1998 = vsel %vm299, %v1968, 0.0
      %v1999 = vadd.f32 %v1997, %v1998
      %v2000 = vrot.slane %v1999, 4
      %v2001 = vadd.f32 %v1999, %v2000
      %v2002 = vrot.slane %v2001, 2
      %v2003 = vadd.f32 %v2001, %v2002
      %v2004 = vrot.slane %v2003, 1
      %v2005 = vadd.f32 %v2003, %v2004
      %v2006 = vmul.f32 %v2005, %v1112
      %v2007 = vadd.f32 %v2006, 1e-05
      %v2008 = vrsqrt.pop %v2007
      %v2009 = vmul.f32 %v1937, %v2008
      %v2010 = vmul.f32 %v1938, %v2008
      %v2011 = vmul.f32 %v1939, %v2008
      %v2012 = vmul.f32 %v1940, %v2008
      %v2013 = vmul.f32 %v1941, %v2008
      %v2014 = vmul.f32 %v1942, %v2008
      %v2015 = vmul.f32 %v1943, %v2008
      %v2016 = vmul.f32 %v1944, %v2008
      %v2017 = vmul.f32 %v1945, %v2008
      %v2018 = vmul.f32 %v1946, %v2008
      %v2019 = vmul.f32 %v1947, %v2008
      %v2020 = vmul.f32 %v1948, %v2008
      %v2021 = vmul.f32 %v1949, %v2008
      %v2022 = vmul.f32 %v1950, %v2008
      %v2023 = vmul.f32 %v1951, %v2008
      %v2024 = vmul.f32 %v1952, %v2008
      %2025 = vst.msk [vmem:[%s298] sm:$0xff] %vm299, %v2009
      %2026 = vst.msk [vmem:[%s298 + $0x8] sm:$0xff] %vm299, %v2010
      %2027 = vst.msk [vmem:[%s298 + $0x10] sm:$0xff] %vm299, %v2011
      %2028 = vst.msk [vmem:[%s298 + $0x18] sm:$0xff] %vm299, %v2012
      %2029 = vst.msk [vmem:[%s298 + $0x20] sm:$0xff] %vm299, %v2013
      %2030 = vst.msk [vmem:[%s298 + $0x28] sm:$0xff] %vm299, %v2014
      %2031 = vst.msk [vmem:[%s298 + $0x30] sm:$0xff] %vm299, %v2015
      %2032 = vst.msk [vmem:[%s298 + $0x38] sm:$0xff] %vm299, %v2016
      %2033 = vst.msk [vmem:[%s298 + $0x40] sm:$0xff] %vm299, %v2017
      %2034 = vst.msk [vmem:[%s298 + $0x48] sm:$0xff] %vm299, %v2018
      %2035 = vst.msk [vmem:[%s298 + $0x50] sm:$0xff] %vm299, %v2019
      %2036 = vst.msk [vmem:[%s298 + $0x58] sm:$0xff] %vm299, %v2020
      %2037 = vst.msk [vmem:[%s298 + $0x60] sm:$0xff] %vm299, %v2021
      %2038 = vst.msk [vmem:[%s298 + $0x68] sm:$0xff] %vm299, %v2022
      %2039 = vst.msk [vmem:[%s298 + $0x70] sm:$0xff] %vm299, %v2023
      %2040 = vst.msk [vmem:[%s298 + $0x78] sm:$0xff] %vm299, %v2024
      %p2041 = scmp.lt.s32.totalorder %s16, 1
      %s2042 = scalar_select %p2041, %s16, 1
      %s2043 = smul.addr %s2042, 16
      %s2044 = smul.addr %s2043, 8
      %s2045 = scalar_lea.vmem %s5, %s2044
      // Predicated region
      $region41: #{_lambda_.4} parent=39 // pred_check
        %p2046 = pneg %p164
      $region42: #{_lambda_.4} parent=39 // pred_check_branch
        %2048 = sbr.rel (%p2046) target = $region44
      $region43: #{_lambda_.4} parent=39 // pred_region
        _
      $region44: #{_lambda_.4} parent=39 // pred_fallthru
        _
    $region40: #{_lambda_.4} parent=5 // pred_fallthru
      _
    %p2049 = scmp.le.s32.totalorder 2, %s11
    // Predicated region
    $region45: #{_lambda_.4} parent=5 // pred_check
      %p2050 = pneg %p2049
    $region46: #{_lambda_.4} parent=5 // pred_check_branch
      %2052 = sbr.rel (%p2050) target = $region48
    $region47: #{_lambda_.4} parent=5 // pred_region
      %s2053 = ssub.s32 %s11, 2
      // Predicated region
      $region49: #{_lambda_.4} parent=47 // pred_check
        %p2054 = pneg %p170
      $region50: #{_lambda_.4} parent=47 // pred_check_branch
        %2056 = sbr.rel (%p2054) target = $region52
      $region51: #{_lambda_.4} parent=47 // pred_region
        %p2057 = scmp.lt.s32.totalorder %s17, 1
        %s2058 = scalar_select %p2057, %s17, 1
        %s2059 = smul.addr %s2058, 16
        %s2060 = smul.addr %s2059, 8
        %s2061 = scalar_lea.vmem %s5, %s2060
      $region52: #{_lambda_.4} parent=47 // pred_fallthru
        _
    $region48: #{_lambda_.4} parent=5 // pred_fallthru
      _
  $region6: #{_lambda_.4} parent=0 // loop_footer
    %s15 = sadd.s32 1, %s11
  $region7: #{_lambda_.4} parent=0 // loop_footer_branch
    %10 = sbr.rel target = $region3
  $region8: #{_lambda_.4} parent=0 // loop_exit
    _

</llo_original>
